<compile_context>
chip_gen: v7x
topology: tpu7x:2x2x1
jax: 0.10.0
libtpu: 0.0.40
codegen_flags: <defaults>
</compile_context>

<pallas_src>
import functools

import jax
import jax.numpy as jnp
import numpy as np
from jax import lax
from jax.experimental import pallas as pl
from jax.experimental.pallas import tpu as pltpu

_LANE = 128
_AUG = 8  # extra K rows appended to fold the expert biases into the MXU matmul


def _round_up(v, m):
    return (v + m - 1) // m * m


def _moe_kernel(x_ref, comb_ref, wall_ref, o_ref, *, num_experts, out_dim):
    """One token tile: fused all-expert matmul (bias folded in) + gated combine."""
    # (TN, D_aug) bf16 @ (D_aug, E*Dout) bf16 -> f32 on the MXU.  The last _AUG
    # rows of W hold the expert biases; x carries a matching ones column.
    y_all = jnp.dot(x_ref[...], wall_ref[...], preferred_element_type=jnp.float32)

    comb = comb_ref[...]                               # (TN, E) f32; 0 for unselected experts
    acc = comb[:, 0:1] * y_all[:, 0:out_dim]
    for e in range(1, num_experts):                    # small static E; lane-tile aligned slices
        acc = acc + comb[:, e:e + 1] * y_all[:, e * out_dim:(e + 1) * out_dim]
    o_ref[...] = acc.astype(o_ref.dtype)
    # TODO(synk): for large E with small sel, switch to grouped (selected-expert)
    # routing via PrefetchScalarGridSpec scalar prefetch of per-expert token
    # offsets, and stream W over an expert/Dout grid axis with a pl.when-initialized
    # accumulator instead of keeping the fused operand fully VMEM-resident.


def moe_layer_pallas(x, gate_w, gate_b, exp_w, exp_b, sel_experts, *,
                     token_tile=512, matmul_dtype=jnp.bfloat16):
    """x: (B, T, D) f32; gate_w: (E, D); gate_b: (E,); exp_w: (E, Dout, D); exp_b: (E, Dout)."""
    B, T, D = x.shape
    E, Dout, D2 = exp_w.shape
    assert D2 == D, "expert weight input dim must match x"
    N = B * T

    x2 = x.reshape(N, D).astype(jnp.float32)

    # ---- gate hoisted out of the kernel: exact f32 routing in plain XLA ----
    logits = x2 @ gate_w.T.astype(jnp.float32) + gate_b.astype(jnp.float32)   # (N, E)
    vals, idx = lax.top_k(logits, sel_experts)                                # (N, S)
    gates = jax.nn.sigmoid(vals)                                              # (N, S)
    comb = jnp.sum(jax.nn.one_hot(idx, E, dtype=jnp.float32) * gates[..., None],
                   axis=1)                                                    # (N, E)

    # ---- pad feature dims so slices / output stores are lane-dense ----
    D_p = _round_up(D, _LANE)
    Dout_p = _round_up(Dout, _LANE)
    D_aug = D_p + _AUG

    # x_aug = [x | 0-pad to D_p | 1 | 0 x (_AUG-1)]  (bf16 operand for the MXU)
    x_p = x2 if D_p == D else jnp.pad(x2, ((0, 0), (0, D_p - D)))
    x_aug = jnp.concatenate(
        [x_p, jnp.ones((N, 1), jnp.float32), jnp.zeros((N, _AUG - 1), jnp.float32)],
        axis=1).astype(matmul_dtype)                                          # (N, D_aug)

    # W_aug: stacked expert weights (column e*Dout_p + o == W_e[o, :]) with a bias row.
    w = jnp.transpose(exp_w, (2, 0, 1)).astype(jnp.float32)                   # (D, E, Dout)
    if Dout_p != Dout:
        w = jnp.pad(w, ((0, 0), (0, 0), (0, Dout_p - Dout)))
    w = w.reshape(D, E * Dout_p)
    if D_p != D:
        w = jnp.pad(w, ((0, D_p - D), (0, 0)))
    b = exp_b.astype(jnp.float32)
    if Dout_p != Dout:
        b = jnp.pad(b, ((0, 0), (0, Dout_p - Dout)))
    b_row = b.reshape(1, E * Dout_p)
    w_aug = jnp.concatenate(
        [w, b_row, jnp.zeros((_AUG - 1, E * Dout_p), jnp.float32)],
        axis=0).astype(matmul_dtype)                                          # (D_aug, E*Dout_p)

    # ---- generation-aware token tiling / VMEM budget ----
    try:
        vmem_cap = int(pltpu.get_tpu_info().vmem_capacity_bytes)
    except Exception:
        vmem_cap = 64 * 1024 * 1024   # conservative (v7x per-TC)

    w_itemsize = jnp.dtype(matmul_dtype).itemsize

    def _vmem_needed(tt):
        resident = 2 * D_aug * E * Dout_p * w_itemsize            # fused W (default 2 buffers)
        streamed = 2 * tt * (D_aug * w_itemsize + E * 4 + Dout_p * 4)  # x, comb, out tiles
        interm = tt * (E * Dout_p + Dout_p) * 4                    # y_all + acc
        return resident + streamed + interm

    token_tile = max(16, _round_up(int(token_tile), 16))           # multiple of 16 (bf16 sublanes)
    while _vmem_needed(token_tile) > int(0.6 * vmem_cap) and token_tile > 64:
        token_tile = max(64, token_tile // 2)
    token_tile = min(token_tile, _round_up(N, 16))

    Np = _round_up(N, token_tile)
    if Np != N:                                                    # padded rows dropped on return
        x_aug = jnp.pad(x_aug, ((0, Np - N), (0, 0)))
        comb = jnp.pad(comb, ((0, Np - N), (0, 0)))

    vmem_limit = min(max(_vmem_needed(token_tile) + (16 << 20), 32 << 20),
                     int(0.75 * vmem_cap))

    kernel = functools.partial(_moe_kernel, num_experts=E, out_dim=Dout_p)
    grid = (Np // token_tile,)

    out = pl.pallas_call(
        kernel,
        out_shape=jax.ShapeDtypeStruct((Np, Dout_p), jnp.float32),
        grid_spec=pltpu.PrefetchScalarGridSpec(
            num_scalar_prefetch=0,
            grid=grid,
            in_specs=[
                pl.BlockSpec((token_tile, D_aug), lambda i: (i, 0)),     # x tile (streamed, bf16)
                pl.BlockSpec((token_tile, E), lambda i: (i, 0)),         # gate combine weights (f32)
                pl.BlockSpec((D_aug, E * Dout_p), lambda i: (0, 0)),     # fused expert weights+bias
            ],
            out_specs=pl.BlockSpec((token_tile, Dout_p), lambda i: (i, 0)),
        ),
        compiler_params=pltpu.CompilerParams(
            dimension_semantics=("parallel",),
            vmem_limit_bytes=vmem_limit),
    )(x_aug, comb, w_aug)

    return out[:N, :Dout].reshape(B, T, Dout)


def moe_layer_ref(x, gate_w, gate_b, exp_w, exp_b, sel_experts):
    """Pure-JAX f32 reference mirroring the PyTorch forward."""
    logits = jnp.einsum("btd,ed->bte", x, gate_w) + gate_b
    vals, idx = lax.top_k(logits, sel_experts)                      # (B,T,S)
    w = jax.nn.sigmoid(vals)
    expert_out = jnp.einsum("btd,eod->bteo", x, exp_w) + exp_b      # (B,T,E,O)
    sel_out = jnp.take_along_axis(expert_out, idx[..., None], axis=2)
    return jnp.sum(w[..., None] * sel_out, axis=2)


if __name__ == "__main__":
    # input_dim == output_dim is required by the original `results` buffer.
    # D = Dout = 128 keeps tiles lane-dense; 2048 tokens with token_tile=512
    # gives a 4-step even "parallel" grid (pipelined, v7x 2-TC friendly).
    B, T, D = 4, 512, 128
    E, SEL = 8, 2
    Dout = D

    key = jax.random.PRNGKey(0)
    kx, kgw, kgb, kew, keb = jax.random.split(key, 5)

    x = jax.random.normal(kx, (B, T, D), dtype=jnp.float32)

    # PyTorch Linear shapes: weight (out, in), bias (out,)
    gate_w = jax.random.uniform(kgw, (E, D), jnp.float32, -1.0, 1.0) / np.sqrt(D)
    gate_b = jax.random.uniform(kgb, (E,), jnp.float32, -1.0, 1.0) / np.sqrt(D)
    exp_w = jax.random.uniform(kew, (E, Dout, D), jnp.float32, -1.0, 1.0) / np.sqrt(D)
    exp_b = jax.random.uniform(keb, (E, Dout), jnp.float32, -1.0, 1.0) / np.sqrt(D)

    out = moe_layer_pallas(x, gate_w, gate_b, exp_w, exp_b, SEL)
    out = jax.block_until_ready(out)

    ref = moe_layer_ref(x, gate_w, gate_b, exp_w, exp_b, SEL)
    # Routing / combine weights are exact f32; tolerance covers the bf16
    # expert-matmul operands (f32-accumulated, error ~ sqrt(D) * bf16 eps).
    np.testing.assert_allclose(np.asarray(out), np.asarray(ref), rtol=2e-2, atol=2e-2)

    print("KERNEL_OK")
</pallas_src>

<mosaic_0001>
module attributes {stable_mosaic.version = 11 : i64} {
  func.func @_moe_kernel(%arg0: i32, %arg1: memref<512x136xbf16, #tpu.memory_space<vmem>>, %arg2: memref<512x8xf32, #tpu.memory_space<vmem>>, %arg3: memref<136x1024xbf16, #tpu.memory_space<vmem>>, %arg4: memref<512x128xf32, #tpu.memory_space<vmem>>) attributes {dimension_semantics = [#tpu.dimension_semantics<parallel>], iteration_bounds = array<i64: 4>, scalar_prefetch = 0 : i64, scratch_operands = 0 : i64, tpu.core_type = #tpu.core_type<tc>, window_params = [{transform_indices = @transform_0, window_bounds = array<i64: 512, 136>}, {transform_indices = @transform_1, window_bounds = array<i64: 512, 8>}, {pipeline_mode = #tpu.pipeline_mode<synchronous>, transform_indices = @transform_2, window_bounds = array<i64: 136, 1024>}, {transform_indices = @transform_3, window_bounds = array<i64: 512, 128>}]} {
    %c0 = arith.constant 0 : index
    %c0_0 = arith.constant 0 : index
    %0 = vector.load %arg1[%c0, %c0_0] : memref<512x136xbf16, #tpu.memory_space<vmem>>, vector<512x136xbf16>
    %c0_1 = arith.constant 0 : index
    %c0_2 = arith.constant 0 : index
    %1 = vector.load %arg3[%c0_1, %c0_2] : memref<136x1024xbf16, #tpu.memory_space<vmem>>, vector<136x1024xbf16>
    %cst = arith.constant dense<0.000000e+00> : vector<512x1024xf32>
    %2 = tpu.matmul %0, %1, %cst {dimension_numbers = #tpu.dot_dimension_numbers<[1], [0], [0], [1], [0, 0, 1, 1], [], []>} : vector<512x136xbf16>, vector<136x1024xbf16>, vector<512x1024xf32> -> vector<512x1024xf32>
    %c0_3 = arith.constant 0 : index
    %c0_4 = arith.constant 0 : index
    %3 = vector.load %arg2[%c0_3, %c0_4] : memref<512x8xf32, #tpu.memory_space<vmem>>, vector<512x8xf32>
    %4 = vector.extract_strided_slice %3 {offsets = [0, 0], sizes = [512, 1], strides = [1, 1]} : vector<512x8xf32> to vector<512x1xf32>
    %5 = vector.extract_strided_slice %2 {offsets = [0, 0], sizes = [512, 128], strides = [1, 1]} : vector<512x1024xf32> to vector<512x128xf32>
    %6 = vector.broadcast %4 : vector<512x1xf32> to vector<512x128xf32>
    %7 = arith.mulf %6, %5 : vector<512x128xf32>
    %8 = vector.extract_strided_slice %3 {offsets = [0, 1], sizes = [512, 1], strides = [1, 1]} : vector<512x8xf32> to vector<512x1xf32>
    %9 = vector.extract_strided_slice %2 {offsets = [0, 128], sizes = [512, 128], strides = [1, 1]} : vector<512x1024xf32> to vector<512x128xf32>
    %10 = vector.broadcast %8 : vector<512x1xf32> to vector<512x128xf32>
    %11 = arith.mulf %10, %9 : vector<512x128xf32>
    %12 = arith.addf %7, %11 : vector<512x128xf32>
    %13 = vector.extract_strided_slice %3 {offsets = [0, 2], sizes = [512, 1], strides = [1, 1]} : vector<512x8xf32> to vector<512x1xf32>
    %14 = vector.extract_strided_slice %2 {offsets = [0, 256], sizes = [512, 128], strides = [1, 1]} : vector<512x1024xf32> to vector<512x128xf32>
    %15 = vector.broadcast %13 : vector<512x1xf32> to vector<512x128xf32>
    %16 = arith.mulf %15, %14 : vector<512x128xf32>
    %17 = arith.addf %12, %16 : vector<512x128xf32>
    %18 = vector.extract_strided_slice %3 {offsets = [0, 3], sizes = [512, 1], strides = [1, 1]} : vector<512x8xf32> to vector<512x1xf32>
    %19 = vector.extract_strided_slice %2 {offsets = [0, 384], sizes = [512, 128], strides = [1, 1]} : vector<512x1024xf32> to vector<512x128xf32>
    %20 = vector.broadcast %18 : vector<512x1xf32> to vector<512x128xf32>
    %21 = arith.mulf %20, %19 : vector<512x128xf32>
    %22 = arith.addf %17, %21 : vector<512x128xf32>
    %23 = vector.extract_strided_slice %3 {offsets = [0, 4], sizes = [512, 1], strides = [1, 1]} : vector<512x8xf32> to vector<512x1xf32>
    %24 = vector.extract_strided_slice %2 {offsets = [0, 512], sizes = [512, 128], strides = [1, 1]} : vector<512x1024xf32> to vector<512x128xf32>
    %25 = vector.broadcast %23 : vector<512x1xf32> to vector<512x128xf32>
    %26 = arith.mulf %25, %24 : vector<512x128xf32>
    %27 = arith.addf %22, %26 : vector<512x128xf32>
    %28 = vector.extract_strided_slice %3 {offsets = [0, 5], sizes = [512, 1], strides = [1, 1]} : vector<512x8xf32> to vector<512x1xf32>
    %29 = vector.extract_strided_slice %2 {offsets = [0, 640], sizes = [512, 128], strides = [1, 1]} : vector<512x1024xf32> to vector<512x128xf32>
    %30 = vector.broadcast %28 : vector<512x1xf32> to vector<512x128xf32>
    %31 = arith.mulf %30, %29 : vector<512x128xf32>
    %32 = arith.addf %27, %31 : vector<512x128xf32>
    %33 = vector.extract_strided_slice %3 {offsets = [0, 6], sizes = [512, 1], strides = [1, 1]} : vector<512x8xf32> to vector<512x1xf32>
    %34 = vector.extract_strided_slice %2 {offsets = [0, 768], sizes = [512, 128], strides = [1, 1]} : vector<512x1024xf32> to vector<512x128xf32>
    %35 = vector.broadcast %33 : vector<512x1xf32> to vector<512x128xf32>
    %36 = arith.mulf %35, %34 : vector<512x128xf32>
    %37 = arith.addf %32, %36 : vector<512x128xf32>
    %38 = vector.extract_strided_slice %3 {offsets = [0, 7], sizes = [512, 1], strides = [1, 1]} : vector<512x8xf32> to vector<512x1xf32>
    %39 = vector.extract_strided_slice %2 {offsets = [0, 896], sizes = [512, 128], strides = [1, 1]} : vector<512x1024xf32> to vector<512x128xf32>
    %40 = vector.broadcast %38 : vector<512x1xf32> to vector<512x128xf32>
    %41 = arith.mulf %40, %39 : vector<512x128xf32>
    %42 = arith.addf %37, %41 : vector<512x128xf32>
    %c0_5 = arith.constant 0 : index
    %c0_6 = arith.constant 0 : index
    %43 = vector.load %arg4[%c0_5, %c0_6] : memref<512x128xf32, #tpu.memory_space<vmem>>, vector<512x128xf32>
    tpu.vector_store %arg4[%c0_5, %c0_6], %42 {strides = array<i32>} : memref<512x128xf32, #tpu.memory_space<vmem>>, vector<512x128xf32>,
    return
  }
  func.func @transform_0(%arg0: i32) -> (i32, i32) {
    %c0_i32 = arith.constant 0 : i32
    %c0_i32_0 = arith.constant 0 : i32
    return %arg0, %c0_i32 : i32, i32
  }
  func.func @transform_1(%arg0: i32) -> (i32, i32) {
    %c0_i32 = arith.constant 0 : i32
    %c0_i32_0 = arith.constant 0 : i32
    return %arg0, %c0_i32 : i32, i32
  }
  func.func @transform_2(%arg0: i32) -> (i32, i32) {
    %c0_i32 = arith.constant 0 : i32
    %c0_i32_0 = arith.constant 0 : i32
    %c0_i32_1 = arith.constant 0 : i32
    return %c0_i32, %c0_i32_0 : i32, i32
  }
  func.func @transform_3(%arg0: i32) -> (i32, i32) {
    %c0_i32 = arith.constant 0 : i32
    %c0_i32_0 = arith.constant 0 : i32
    return %arg0, %c0_i32 : i32, i32
  }
}

</mosaic_0001>

<llo_original>
// kernel: tpu_custom_call.1
$region0: #{tpu_custom_call.1}
  #allocation0 [shape = 'u32[]', space=smem, size = 0x4, offset = 0x4, fixed_abs, tag = 'smem constant byte address 0x4 - core index']
  #allocation1 [shape = 'u32[144,128]{1,0:T(1,128)}', space=vmem, size = 0x12000, scoped, tag = 'internal scratch']
  %s0 = inlined_call_operand.vmem [shape: bf16[2048,136], index: 0, kind: input, shape index: {}]
  %s1 = inlined_call_operand.vmem [shape: f32[2048,8], index: 1, kind: input, shape index: {}]
  %s2 = inlined_call_operand.vmem [shape: bf16[136,1024], index: 2, kind: input, shape index: {}]
  %s3 = inlined_call_operand.hbm [shape: f32[2048,128], index: 3, kind: output, shape index: {}]
  %s4 = sld [smem:[#allocation0]]
  $region45: #{tpu_custom_call.1} parent=0
    _
  %s6 = ssub.s32 1, %s4
  %s7 = scalar_select 0, %s6, %s4
  $region1: #{tpu_custom_call.1} parent=0
    #allocation2 [shape = 'u8[524288]{0}', space=vmem, size = 0x80000, scoped, tag = 'output window, operand 0']
    #allocation3 [shape = 's32[2]{0}', space=sflag, size = 0x8, scoped, tag = 'scoped memory for tpu_custom_call.1']
    %8 = vsyncpa [#allocation3], 0
    %s9 = scalar_lea.sflag [#allocation3], 1
    %10 = vsyncpa %s9, 0
    loop: start=0, step=1, limit=6
    $region2: #{tpu_custom_call.1} parent=1 // loop_pre_header
      _
    $region3: #{tpu_custom_call.1} parent=1 // loop_header
      %s12 = sphi 0, %s16
      %p13 = scmp.ge.s32.totalorder %s12, 6
      %s22 = sphi 0, %s24
      %s25 = sphi 0, %s22
      %s26 = sphi 0, %s25
      %s42 = sphi 0, %s26
      %s48 = sphi 0, %s50
      %s51 = sphi 0, %s48
      %s52 = sphi 0, %s51
      %s68 = sphi 0, %s52
      %s72 = sphi 0, %s72
      %s74 = sphi 0, %s72
      %s75 = sphi 0, %s74
      %s89 = sphi 0, %s75
      %s95 = sphi 0, %s97
      %s98 = sphi 0, %s95
      %s99 = sphi 0, %s98
      %s115 = sphi 0, %s99
    $region4: #{tpu_custom_call.1} parent=1 // loop_header_branch
      %15 = sbr.rel (%p13) target = $region8
    $region5: #{tpu_custom_call.1} parent=1 // loop_body
      %s17 = ssub.s32 %s12, 1
      %s18 = ssub.s32 %s12, 2
      %s19 = sadd.s32 %s12, 1
      %s20 = ssub.s32 %s12, %s19
      %p21 = scmp.eq.s32.totalorder %s20, 0
      %s23 = sadd.s32 %s22, 1
      %s24 = scalar_select %p21, %s22, %s23
      %p27 = pneg %p21
      %p28 = scmp.eq.s32.totalorder %s12, 3
      %p29 = por %p27, %p28
      %p30 = scmp.ne.s32.totalorder %s22, %s25
      %p31 = scmp.eq.s32.totalorder %s12, 0
      %p32 = por %p30, %p31
      %p33 = scmp.ne.s32.totalorder %s22, %s25
      %p34 = scmp.eq.s32.totalorder %s17, 3
      %p35 = por %p33, %p34
      %p36 = scmp.ne.s32.totalorder %s25, %s26
      %p37 = scmp.eq.s32.totalorder %s17, 0
      %p38 = por %p36, %p37
      %p39 = scmp.ne.s32.totalorder %s25, %s26
      %p40 = scmp.eq.s32.totalorder %s18, 3
      %p41 = por %p39, %p40
      %p43 = scmp.ne.s32.totalorder %s26, %s42
      %p44 = scmp.eq.s32.totalorder %s18, 0
      %p45 = por %p43, %p44
      %s46 = ssub.s32 %s12, %s19
      %p47 = scmp.eq.s32.totalorder %s46, 0
      %s49 = sadd.s32 %s48, 1
      %s50 = scalar_select %p47, %s48, %s49
      %p53 = pneg %p47
      %p54 = scmp.eq.s32.totalorder %s12, 3
      %p55 = por %p53, %p54
      %p56 = scmp.ne.s32.totalorder %s48, %s51
      %p57 = scmp.eq.s32.totalorder %s12, 0
      %p58 = por %p56, %p57
      %p59 = scmp.ne.s32.totalorder %s48, %s51
      %p60 = scmp.eq.s32.totalorder %s17, 3
      %p61 = por %p59, %p60
      %p62 = scmp.ne.s32.totalorder %s51, %s52
      %p63 = scmp.eq.s32.totalorder %s17, 0
      %p64 = por %p62, %p63
      %p65 = scmp.ne.s32.totalorder %s51, %s52
      %p66 = scmp.eq.s32.totalorder %s18, 3
      %p67 = por %p65, %p66
      %p69 = scmp.ne.s32.totalorder %s52, %s68
      %p70 = scmp.eq.s32.totalorder %s18, 0
      %p71 = por %p69, %p70
      %s73 = sadd.s32 %s72, 1
      %p76 = scmp.eq.s32.totalorder %s12, 3
      %p77 = scmp.ne.s32.totalorder %s72, %s74
      %p78 = scmp.eq.s32.totalorder %s12, 0
      %p79 = por %p77, %p78
      %p80 = scmp.ne.s32.totalorder %s72, %s74
      %p81 = scmp.eq.s32.totalorder %s17, 3
      %p82 = por %p80, %p81
      %p83 = scmp.ne.s32.totalorder %s74, %s75
      %p84 = scmp.eq.s32.totalorder %s17, 0
      %p85 = por %p83, %p84
      %p86 = scmp.ne.s32.totalorder %s74, %s75
      %p87 = scmp.eq.s32.totalorder %s18, 3
      %p88 = por %p86, %p87
      %p90 = scmp.ne.s32.totalorder %s75, %s89
      %p91 = scmp.eq.s32.totalorder %s18, 0
      %p92 = por %p90, %p91
      %s93 = ssub.s32 %s12, %s19
      %p94 = scmp.eq.s32.totalorder %s93, 0
      %s96 = sadd.s32 %s95, 1
      %s97 = scalar_select %p94, %s95, %s96
      %p100 = pneg %p94
      %p101 = scmp.eq.s32.totalorder %s12, 3
      %p102 = por %p100, %p101
      %p103 = scmp.ne.s32.totalorder %s95, %s98
      %p104 = scmp.eq.s32.totalorder %s12, 0
      %p105 = por %p103, %p104
      %p106 = scmp.ne.s32.totalorder %s95, %s98
      %p107 = scmp.eq.s32.totalorder %s17, 3
      %p108 = por %p106, %p107
      %p109 = scmp.ne.s32.totalorder %s98, %s99
      %p110 = scmp.eq.s32.totalorder %s17, 0
      %p111 = por %p109, %p110
      %p112 = scmp.ne.s32.totalorder %s98, %s99
      %p113 = scmp.eq.s32.totalorder %s18, 3
      %p114 = por %p112, %p113
      %p116 = scmp.ne.s32.totalorder %s99, %s115
      %p117 = scmp.eq.s32.totalorder %s18, 0
      %p118 = por %p116, %p117
      %p119 = scmp.le.s32.totalorder 1, %s12
      %p120 = scmp.lt.s32.totalorder %s12, 5
      %p121 = pnand %p119, %p120
      %p122 = pneg %p121
      // Predicated region
      $region9: #{tpu_custom_call.1} parent=5 // pred_check
        _
      $region10: #{tpu_custom_call.1} parent=5 // pred_check_branch
        %124 = sbr.rel (%p121) target = $region12
      $region11: #{tpu_custom_call.1} parent=5 // pred_region
        %s125 = ssub.s32 %s12, 1
        // Predicated region
        $region13: #{tpu_custom_call.1} parent=11 // pred_check
          %p126 = pneg %p85
        $region14: #{tpu_custom_call.1} parent=11 // pred_check_branch
          %128 = sbr.rel (%p126) target = $region16
        $region15: #{tpu_custom_call.1} parent=11 // pred_region
          _
        $region16: #{tpu_custom_call.1} parent=11 // pred_fallthru
          _
      $region12: #{tpu_custom_call.1} parent=5 // pred_fallthru
        _
      %p129 = scmp.lt.s32.totalorder %s12, 4
      // Predicated region
      $region17: #{tpu_custom_call.1} parent=5 // pred_check
        %p130 = pneg %p129
      $region18: #{tpu_custom_call.1} parent=5 // pred_check_branch
        %132 = sbr.rel (%p130) target = $region20
      $region19: #{tpu_custom_call.1} parent=5 // pred_region
        // Predicated region
        $region21: #{tpu_custom_call.1} parent=19 // pred_check
          %p133 = pneg %p32
        $region22: #{tpu_custom_call.1} parent=19 // pred_check_branch
          %135 = sbr.rel (%p133) target = $region24
        $region23: #{tpu_custom_call.1} parent=19 // pred_region
          %s136 = smul.u32 64, %s12
          %p137 = scmp.lt.s32.totalorder %s136, 255
          %s138 = scalar_select %p137, %s136, 255
          %s139 = smul.addr %s138, 2
          %s140 = smul.addr %s139, 4
          %s141 = scalar_lea.vmem %s0, %s140
          %s142 = smul.u32 64, %s12
        $region24: #{tpu_custom_call.1} parent=19 // pred_fallthru
          _
        // Predicated region
        $region25: #{tpu_custom_call.1} parent=19 // pred_check
          %p143 = pneg %p58
        $region26: #{tpu_custom_call.1} parent=19 // pred_check_branch
          %145 = sbr.rel (%p143) target = $region28
        $region27: #{tpu_custom_call.1} parent=19 // pred_region
          %s146 = smul.u32 64, %s12
          %p147 = scmp.lt.s32.totalorder %s146, 255
          %s148 = scalar_select %p147, %s146, 255
          %s149 = smul.addr %s148, 8
          %s150 = scalar_lea.vmem %s1, %s149
          %s151 = smul.u32 64, %s12
        $region28: #{tpu_custom_call.1} parent=19 // pred_fallthru
          _
      $region20: #{tpu_custom_call.1} parent=5 // pred_fallthru
        _
      %p152 = scmp.le.s32.totalorder 1, %s12
      %p153 = scmp.lt.s32.totalorder %s12, 5
      %p154 = pnand %p152, %p153
      %p155 = pneg %p154
      // Predicated region
      $region29: #{tpu_custom_call.1} parent=5 // pred_check
        _
      $region30: #{tpu_custom_call.1} parent=5 // pred_check_branch
        %157 = sbr.rel (%p154) target = $region32
      $region31: #{tpu_custom_call.1} parent=5 // pred_region
        %s158 = ssub.s32 %s12, 1
        %s159 = smul.u32 64, %s17
        %p160 = scmp.lt.s32.totalorder %s159, 255
        %s161 = scalar_select %p160, %s159, 255
        %s162 = smul.addr %s161, 2
        %s163 = smul.addr %s162, 4
        %s164 = scalar_lea.vmem %s0, %s163
        %p165 = pneg %p38
        %p166 = pneg %p35
        %s167 = smul.u32 64, %s17
        %p168 = scmp.lt.s32.totalorder %s167, 255
        %s169 = scalar_select %p168, %s167, 255
        %s170 = smul.addr %s169, 8
        %s171 = scalar_lea.vmem %s1, %s170
        %p172 = pneg %p64
        %p173 = pneg %p61
        %p174 = pneg %p85
        %p175 = pneg %p82
        %p176 = pneg %p111
        %p177 = pneg %p108
        %s178 = sand.u32 %s98, 1
        %s179 = scalar_lea.sflag [#allocation3], %s178
        %s180 = sand.u32 %s98, 1
        %s181 = smul.addr %s180, 512
        %s182 = scalar_lea.vmem [#allocation2], %s181
        %s183 = smul.u32 64, %s17
        %p184 = scmp.lt.s32.totalorder %s183, 255
        %s185 = scalar_select %p184, %s183, 255
        %s186 = smul.addr %s185, 2
        %s187 = smul.addr %s186, 4
        %s188 = scalar_lea.vmem %s0, %s187
        %s189 = smul.u32 64, %s17
        %s190 = smul.u32 64, %s17
        %p191 = scmp.lt.s32.totalorder %s190, 255
        %s192 = scalar_select %p191, %s190, 255
        %s193 = smul.addr %s192, 8
        %s194 = scalar_lea.vmem %s1, %s193
        %s195 = smul.u32 64, %s17
        %s196 = smul.u32 64, %s17
        %v198 = vld [vmem:[%s188] sm:$0xff]
        %v199 = vld [vmem:[%s188 + $0x8] sm:$0xff]
        %v200 = vld [vmem:[%s188 + $0x10] sm:$0xff]
        %v201 = vld [vmem:[%s188 + $0x18] sm:$0xff]
        %v202 = vld [vmem:[%s188 + $0x20] sm:$0xff]
        %v203 = vld [vmem:[%s188 + $0x28] sm:$0xff]
        %v204 = vld [vmem:[%s188 + $0x30] sm:$0xff]
        %v205 = vld [vmem:[%s188 + $0x38] sm:$0xff]
        %v206 = vld [vmem:[%s188 + $0x40] sm:$0xff]
        %v207 = vld [vmem:[%s188 + $0x48] sm:$0xff]
        %v208 = vld [vmem:[%s188 + $0x50] sm:$0xff]
        %v209 = vld [vmem:[%s188 + $0x58] sm:$0xff]
        %v210 = vld [vmem:[%s188 + $0x60] sm:$0xff]
        %v211 = vld [vmem:[%s188 + $0x68] sm:$0xff]
        %v212 = vld [vmem:[%s188 + $0x70] sm:$0xff]
        %v213 = vld [vmem:[%s188 + $0x78] sm:$0xff]
        %v214 = vld [vmem:[%s188 + $0x80] sm:$0xff]
        %v215 = vld [vmem:[%s188 + $0x88] sm:$0xff]
        %v216 = vld [vmem:[%s188 + $0x90] sm:$0xff]
        %v217 = vld [vmem:[%s188 + $0x98] sm:$0xff]
        %v218 = vld [vmem:[%s188 + $0xa0] sm:$0xff]
        %v219 = vld [vmem:[%s188 + $0xa8] sm:$0xff]
        %v220 = vld [vmem:[%s188 + $0xb0] sm:$0xff]
        %v221 = vld [vmem:[%s188 + $0xb8] sm:$0xff]
        %v222 = vld [vmem:[%s188 + $0xc0] sm:$0xff]
        %v223 = vld [vmem:[%s188 + $0xc8] sm:$0xff]
        %v224 = vld [vmem:[%s188 + $0xd0] sm:$0xff]
        %v225 = vld [vmem:[%s188 + $0xd8] sm:$0xff]
        %v226 = vld [vmem:[%s188 + $0xe0] sm:$0xff]
        %v227 = vld [vmem:[%s188 + $0xe8] sm:$0xff]
        %v228 = vld [vmem:[%s188 + $0xf0] sm:$0xff]
        %v229 = vld [vmem:[%s188 + $0xf8] sm:$0xff]
        %v230 = vld [vmem:[%s188 + $0x100] sm:$0xff]
        %v231 = vld [vmem:[%s188 + $0x108] sm:$0xff]
        %v232 = vld [vmem:[%s188 + $0x110] sm:$0xff]
        %v233 = vld [vmem:[%s188 + $0x118] sm:$0xff]
        %v234 = vld [vmem:[%s188 + $0x120] sm:$0xff]
        %v235 = vld [vmem:[%s188 + $0x128] sm:$0xff]
        %v236 = vld [vmem:[%s188 + $0x130] sm:$0xff]
        %v237 = vld [vmem:[%s188 + $0x138] sm:$0xff]
        %v238 = vld [vmem:[%s188 + $0x140] sm:$0xff]
        %v239 = vld [vmem:[%s188 + $0x148] sm:$0xff]
        %v240 = vld [vmem:[%s188 + $0x150] sm:$0xff]
        %v241 = vld [vmem:[%s188 + $0x158] sm:$0xff]
        %v242 = vld [vmem:[%s188 + $0x160] sm:$0xff]
        %v243 = vld [vmem:[%s188 + $0x168] sm:$0xff]
        %v244 = vld [vmem:[%s188 + $0x170] sm:$0xff]
        %v245 = vld [vmem:[%s188 + $0x178] sm:$0xff]
        %v246 = vld [vmem:[%s188 + $0x180] sm:$0xff]
        %v247 = vld [vmem:[%s188 + $0x188] sm:$0xff]
        %v248 = vld [vmem:[%s188 + $0x190] sm:$0xff]
        %v249 = vld [vmem:[%s188 + $0x198] sm:$0xff]
        %v250 = vld [vmem:[%s188 + $0x1a0] sm:$0xff]
        %v251 = vld [vmem:[%s188 + $0x1a8] sm:$0xff]
        %v252 = vld [vmem:[%s188 + $0x1b0] sm:$0xff]
        %v253 = vld [vmem:[%s188 + $0x1b8] sm:$0xff]
        %v254 = vld [vmem:[%s188 + $0x1c0] sm:$0xff]
        %v255 = vld [vmem:[%s188 + $0x1c8] sm:$0xff]
        %v256 = vld [vmem:[%s188 + $0x1d0] sm:$0xff]
        %v257 = vld [vmem:[%s188 + $0x1d8] sm:$0xff]
        %v258 = vld [vmem:[%s188 + $0x1e0] sm:$0xff]
        %v259 = vld [vmem:[%s188 + $0x1e8] sm:$0xff]
        %v260 = vld [vmem:[%s188 + $0x1f0] sm:$0xff]
        %v261 = vld [vmem:[%s188 + $0x1f8] sm:$0xff]
        %v262 = vld [vmem:[%s2] sm:$0xff]
        %v263 = vld [vmem:[%s2 + $0x8] sm:$0xff]
        %v264 = vld [vmem:[%s2 + $0x10] sm:$0xff]
        %v265 = vld [vmem:[%s2 + $0x18] sm:$0xff]
        %v266 = vld [vmem:[%s2 + $0x20] sm:$0xff]
        %v267 = vld [vmem:[%s2 + $0x28] sm:$0xff]
        %v268 = vld [vmem:[%s2 + $0x30] sm:$0xff]
        %v269 = vld [vmem:[%s2 + $0x38] sm:$0xff]
        %v270 = vld [vmem:[%s2 + $0x40] sm:$0xff]
        %v271 = vld [vmem:[%s2 + $0x48] sm:$0xff]
        %v272 = vld [vmem:[%s2 + $0x50] sm:$0xff]
        %v273 = vld [vmem:[%s2 + $0x58] sm:$0xff]
        %v274 = vld [vmem:[%s2 + $0x60] sm:$0xff]
        %v275 = vld [vmem:[%s2 + $0x68] sm:$0xff]
        %v276 = vld [vmem:[%s2 + $0x70] sm:$0xff]
        %v277 = vld [vmem:[%s2 + $0x78] sm:$0xff]
        %v278 = vld [vmem:[%s2 + $0x80] sm:$0xff]
        %v279 = vld [vmem:[%s2 + $0x88] sm:$0xff]
        %v280 = vld [vmem:[%s2 + $0x90] sm:$0xff]
        %v281 = vld [vmem:[%s2 + $0x98] sm:$0xff]
        %v282 = vld [vmem:[%s2 + $0xa0] sm:$0xff]
        %v283 = vld [vmem:[%s2 + $0xa8] sm:$0xff]
        %v284 = vld [vmem:[%s2 + $0xb0] sm:$0xff]
        %v285 = vld [vmem:[%s2 + $0xb8] sm:$0xff]
        %v286 = vld [vmem:[%s2 + $0xc0] sm:$0xff]
        %v287 = vld [vmem:[%s2 + $0xc8] sm:$0xff]
        %v288 = vld [vmem:[%s2 + $0xd0] sm:$0xff]
        %v289 = vld [vmem:[%s2 + $0xd8] sm:$0xff]
        %v290 = vld [vmem:[%s2 + $0xe0] sm:$0xff]
        %v291 = vld [vmem:[%s2 + $0xe8] sm:$0xff]
        %v292 = vld [vmem:[%s2 + $0xf0] sm:$0xff]
        %v293 = vld [vmem:[%s2 + $0xf8] sm:$0xff]
        %v294 = vld [vmem:[%s2 + $0x100] sm:$0xff]
        %v295 = vld [vmem:[%s2 + $0x108] sm:$0xff]
        %v296 = vld [vmem:[%s2 + $0x110] sm:$0xff]
        %v297 = vld [vmem:[%s2 + $0x118] sm:$0xff]
        %v298 = vld [vmem:[%s2 + $0x120] sm:$0xff]
        %v299 = vld [vmem:[%s2 + $0x128] sm:$0xff]
        %v300 = vld [vmem:[%s2 + $0x130] sm:$0xff]
        %v301 = vld [vmem:[%s2 + $0x138] sm:$0xff]
        %v302 = vld [vmem:[%s2 + $0x140] sm:$0xff]
        %v303 = vld [vmem:[%s2 + $0x148] sm:$0xff]
        %v304 = vld [vmem:[%s2 + $0x150] sm:$0xff]
        %v305 = vld [vmem:[%s2 + $0x158] sm:$0xff]
        %v306 = vld [vmem:[%s2 + $0x160] sm:$0xff]
        %v307 = vld [vmem:[%s2 + $0x168] sm:$0xff]
        %v308 = vld [vmem:[%s2 + $0x170] sm:$0xff]
        %v309 = vld [vmem:[%s2 + $0x178] sm:$0xff]
        %v310 = vld [vmem:[%s2 + $0x180] sm:$0xff]
        %v311 = vld [vmem:[%s2 + $0x188] sm:$0xff]
        %v312 = vld [vmem:[%s2 + $0x190] sm:$0xff]
        %v313 = vld [vmem:[%s2 + $0x198] sm:$0xff]
        %v314 = vld [vmem:[%s2 + $0x1a0] sm:$0xff]
        %v315 = vld [vmem:[%s2 + $0x1a8] sm:$0xff]
        %v316 = vld [vmem:[%s2 + $0x1b0] sm:$0xff]
        %v317 = vld [vmem:[%s2 + $0x1b8] sm:$0xff]
        %v318 = vld [vmem:[%s2 + $0x1c0] sm:$0xff]
        %v319 = vld [vmem:[%s2 + $0x1c8] sm:$0xff]
        %v320 = vld [vmem:[%s2 + $0x1d0] sm:$0xff]
        %v321 = vld [vmem:[%s2 + $0x1d8] sm:$0xff]
        %v322 = vld [vmem:[%s2 + $0x1e0] sm:$0xff]
        %v323 = vld [vmem:[%s2 + $0x1e8] sm:$0xff]
        %v324 = vld [vmem:[%s2 + $0x1f0] sm:$0xff]
        %v325 = vld [vmem:[%s2 + $0x1f8] sm:$0xff]
        %v326 = vld [vmem:[%s2 + $0x200] sm:$0xff]
        %v327 = vld [vmem:[%s2 + $0x208] sm:$0xff]
        %v328 = vld [vmem:[%s2 + $0x210] sm:$0xff]
        %v329 = vld [vmem:[%s2 + $0x218] sm:$0xff]
        %v394 = vunpack.c.l.b16 %v198
        %v395 = vunpack.c.h.b16 %v198
        %v396 = vunpack.c.l.b16 %v199
        %v397 = vunpack.c.h.b16 %v199
        %v398 = vunpack.c.l.b16 %v200
        %v399 = vunpack.c.h.b16 %v200
        %v400 = vunpack.c.l.b16 %v201
        %v401 = vunpack.c.h.b16 %v201
        %v402 = vunpack.c.l.b16 %v202
        %v403 = vunpack.c.h.b16 %v202
        %v404 = vunpack.c.l.b16 %v203
        %v405 = vunpack.c.h.b16 %v203
        %v406 = vunpack.c.l.b16 %v204
        %v407 = vunpack.c.h.b16 %v204
        %v408 = vunpack.c.l.b16 %v205
        %v409 = vunpack.c.h.b16 %v205
        %v410 = vunpack.c.l.b16 %v206
        %v411 = vunpack.c.h.b16 %v206
        %v412 = vunpack.c.l.b16 %v207
        %v413 = vunpack.c.h.b16 %v207
        %v414 = vunpack.c.l.b16 %v208
        %v415 = vunpack.c.h.b16 %v208
        %v416 = vunpack.c.l.b16 %v209
        %v417 = vunpack.c.h.b16 %v209
        %v418 = vunpack.c.l.b16 %v210
        %v419 = vunpack.c.h.b16 %v210
        %v420 = vunpack.c.l.b16 %v211
        %v421 = vunpack.c.h.b16 %v211
        %v422 = vunpack.c.l.b16 %v212
        %v423 = vunpack.c.h.b16 %v212
        %v424 = vunpack.c.l.b16 %v213
        %v425 = vunpack.c.h.b16 %v213
        %v426 = vunpack.c.l.b16 %v214
        %v427 = vunpack.c.h.b16 %v214
        %v428 = vunpack.c.l.b16 %v215
        %v429 = vunpack.c.h.b16 %v215
        %v430 = vunpack.c.l.b16 %v216
        %v431 = vunpack.c.h.b16 %v216
        %v432 = vunpack.c.l.b16 %v217
        %v433 = vunpack.c.h.b16 %v217
        %v434 = vunpack.c.l.b16 %v218
        %v435 = vunpack.c.h.b16 %v218
        %v436 = vunpack.c.l.b16 %v219
        %v437 = vunpack.c.h.b16 %v219
        %v438 = vunpack.c.l.b16 %v220
        %v439 = vunpack.c.h.b16 %v220
        %v440 = vunpack.c.l.b16 %v221
        %v441 = vunpack.c.h.b16 %v221
        %v442 = vunpack.c.l.b16 %v222
        %v443 = vunpack.c.h.b16 %v222
        %v444 = vunpack.c.l.b16 %v223
        %v445 = vunpack.c.h.b16 %v223
        %v446 = vunpack.c.l.b16 %v224
        %v447 = vunpack.c.h.b16 %v224
        %v448 = vunpack.c.l.b16 %v225
        %v449 = vunpack.c.h.b16 %v225
        %v450 = vunpack.c.l.b16 %v226
        %v451 = vunpack.c.h.b16 %v226
        %v452 = vunpack.c.l.b16 %v227
        %v453 = vunpack.c.h.b16 %v227
        %v454 = vunpack.c.l.b16 %v228
        %v455 = vunpack.c.h.b16 %v228
        %v456 = vunpack.c.l.b16 %v229
        %v457 = vunpack.c.h.b16 %v229
        %v458 = vunpack.c.l.b16 %v230
        %v459 = vunpack.c.h.b16 %v230
        %v460 = vunpack.c.l.b16 %v231
        %v461 = vunpack.c.h.b16 %v231
        %v462 = vunpack.c.l.b16 %v232
        %v463 = vunpack.c.h.b16 %v232
        %v464 = vunpack.c.l.b16 %v233
        %v465 = vunpack.c.h.b16 %v233
        %v466 = vunpack.c.l.b16 %v234
        %v467 = vunpack.c.h.b16 %v234
        %v468 = vunpack.c.l.b16 %v235
        %v469 = vunpack.c.h.b16 %v235
        %v470 = vunpack.c.l.b16 %v236
        %v471 = vunpack.c.h.b16 %v236
        %v472 = vunpack.c.l.b16 %v237
        %v473 = vunpack.c.h.b16 %v237
        %v474 = vunpack.c.l.b16 %v238
        %v475 = vunpack.c.h.b16 %v238
        %v476 = vunpack.c.l.b16 %v239
        %v477 = vunpack.c.h.b16 %v239
        %v478 = vunpack.c.l.b16 %v240
        %v479 = vunpack.c.h.b16 %v240
        %v480 = vunpack.c.l.b16 %v241
        %v481 = vunpack.c.h.b16 %v241
        %v482 = vunpack.c.l.b16 %v242
        %v483 = vunpack.c.h.b16 %v242
        %v484 = vunpack.c.l.b16 %v243
        %v485 = vunpack.c.h.b16 %v243
        %v486 = vunpack.c.l.b16 %v244
        %v487 = vunpack.c.h.b16 %v244
        %v488 = vunpack.c.l.b16 %v245
        %v489 = vunpack.c.h.b16 %v245
        %v490 = vunpack.c.l.b16 %v246
        %v491 = vunpack.c.h.b16 %v246
        %v492 = vunpack.c.l.b16 %v247
        %v493 = vunpack.c.h.b16 %v247
        %v494 = vunpack.c.l.b16 %v248
        %v495 = vunpack.c.h.b16 %v248
        %v496 = vunpack.c.l.b16 %v249
        %v497 = vunpack.c.h.b16 %v249
        %v498 = vunpack.c.l.b16 %v250
        %v499 = vunpack.c.h.b16 %v250
        %v500 = vunpack.c.l.b16 %v251
        %v501 = vunpack.c.h.b16 %v251
        %v502 = vunpack.c.l.b16 %v252
        %v503 = vunpack.c.h.b16 %v252
        %v504 = vunpack.c.l.b16 %v253
        %v505 = vunpack.c.h.b16 %v253
        %v506 = vunpack.c.l.b16 %v254
        %v507 = vunpack.c.h.b16 %v254
        %v508 = vunpack.c.l.b16 %v255
        %v509 = vunpack.c.h.b16 %v255
        %v510 = vunpack.c.l.b16 %v256
        %v511 = vunpack.c.h.b16 %v256
        %v512 = vunpack.c.l.b16 %v257
        %v513 = vunpack.c.h.b16 %v257
        %v514 = vunpack.c.l.b16 %v258
        %v515 = vunpack.c.h.b16 %v258
        %v516 = vunpack.c.l.b16 %v259
        %v517 = vunpack.c.h.b16 %v259
        %v518 = vunpack.c.l.b16 %v260
        %v519 = vunpack.c.h.b16 %v260
        %v520 = vunpack.c.l.b16 %v261
        %v521 = vunpack.c.h.b16 %v261
        %v522 = vpack.c.b16 %v396, %v394
        %v523 = vpack.c.b16 %v397, %v395
        %v524 = vpack.c.b16 %v400, %v398
        %v525 = vpack.c.b16 %v401, %v399
        %v526 = vpack.c.b16 %v404, %v402
        %v527 = vpack.c.b16 %v405, %v403
        %v528 = vpack.c.b16 %v408, %v406
        %v529 = vpack.c.b16 %v409, %v407
        %v530 = vpack.c.b16 %v412, %v410
        %v531 = vpack.c.b16 %v413, %v411
        %v532 = vpack.c.b16 %v416, %v414
        %v533 = vpack.c.b16 %v417, %v415
        %v534 = vpack.c.b16 %v420, %v418
        %v535 = vpack.c.b16 %v421, %v419
        %v536 = vpack.c.b16 %v424, %v422
        %v537 = vpack.c.b16 %v425, %v423
        %v538 = vpack.c.b16 %v428, %v426
        %v539 = vpack.c.b16 %v429, %v427
        %v540 = vpack.c.b16 %v432, %v430
        %v541 = vpack.c.b16 %v433, %v431
        %v542 = vpack.c.b16 %v436, %v434
        %v543 = vpack.c.b16 %v437, %v435
        %v544 = vpack.c.b16 %v440, %v438
        %v545 = vpack.c.b16 %v441, %v439
        %v546 = vpack.c.b16 %v444, %v442
        %v547 = vpack.c.b16 %v445, %v443
        %v548 = vpack.c.b16 %v448, %v446
        %v549 = vpack.c.b16 %v449, %v447
        %v550 = vpack.c.b16 %v452, %v450
        %v551 = vpack.c.b16 %v453, %v451
        %v552 = vpack.c.b16 %v456, %v454
        %v553 = vpack.c.b16 %v457, %v455
        %v554 = vpack.c.b16 %v460, %v458
        %v555 = vpack.c.b16 %v461, %v459
        %v556 = vpack.c.b16 %v464, %v462
        %v557 = vpack.c.b16 %v465, %v463
        %v558 = vpack.c.b16 %v468, %v466
        %v559 = vpack.c.b16 %v469, %v467
        %v560 = vpack.c.b16 %v472, %v470
        %v561 = vpack.c.b16 %v473, %v471
        %v562 = vpack.c.b16 %v476, %v474
        %v563 = vpack.c.b16 %v477, %v475
        %v564 = vpack.c.b16 %v480, %v478
        %v565 = vpack.c.b16 %v481, %v479
        %v566 = vpack.c.b16 %v484, %v482
        %v567 = vpack.c.b16 %v485, %v483
        %v568 = vpack.c.b16 %v488, %v486
        %v569 = vpack.c.b16 %v489, %v487
        %v570 = vpack.c.b16 %v492, %v490
        %v571 = vpack.c.b16 %v493, %v491
        %v572 = vpack.c.b16 %v496, %v494
        %v573 = vpack.c.b16 %v497, %v495
        %v574 = vpack.c.b16 %v500, %v498
        %v575 = vpack.c.b16 %v501, %v499
        %v576 = vpack.c.b16 %v504, %v502
        %v577 = vpack.c.b16 %v505, %v503
        %v578 = vpack.c.b16 %v508, %v506
        %v579 = vpack.c.b16 %v509, %v507
        %v580 = vpack.c.b16 %v512, %v510
        %v581 = vpack.c.b16 %v513, %v511
        %v582 = vpack.c.b16 %v516, %v514
        %v583 = vpack.c.b16 %v517, %v515
        %v584 = vpack.c.b16 %v520, %v518
        %v585 = vpack.c.b16 %v521, %v519
        %v686 = vunpack.c.l.b16 %v262
        %v687 = vunpack.c.h.b16 %v262
        %v688 = vunpack.c.l.b16 %v263
        %v689 = vunpack.c.h.b16 %v263
        %v690 = vunpack.c.l.b16 %v264
        %v691 = vunpack.c.h.b16 %v264
        %v692 = vunpack.c.l.b16 %v265
        %v693 = vunpack.c.h.b16 %v265
        %v694 = vunpack.c.l.b16 %v266
        %v695 = vunpack.c.h.b16 %v266
        %v696 = vunpack.c.l.b16 %v267
        %v697 = vunpack.c.h.b16 %v267
        %v698 = vunpack.c.l.b16 %v268
        %v699 = vunpack.c.h.b16 %v268
        %v700 = vunpack.c.l.b16 %v269
        %v701 = vunpack.c.h.b16 %v269
        %v702 = vunpack.c.l.b16 %v270
        %v703 = vunpack.c.h.b16 %v270
        %v704 = vunpack.c.l.b16 %v271
        %v705 = vunpack.c.h.b16 %v271
        %v706 = vunpack.c.l.b16 %v272
        %v707 = vunpack.c.h.b16 %v272
        %v708 = vunpack.c.l.b16 %v273
        %v709 = vunpack.c.h.b16 %v273
        %v710 = vunpack.c.l.b16 %v274
        %v711 = vunpack.c.h.b16 %v274
        %v712 = vunpack.c.l.b16 %v275
        %v713 = vunpack.c.h.b16 %v275
        %v714 = vunpack.c.l.b16 %v276
        %v715 = vunpack.c.h.b16 %v276
        %v716 = vunpack.c.l.b16 %v277
        %v717 = vunpack.c.h.b16 %v277
        %v718 = vunpack.c.l.b16 %v278
        %v719 = vunpack.c.h.b16 %v278
        %v720 = vunpack.c.l.b16 %v279
        %v721 = vunpack.c.h.b16 %v279
        %v722 = vunpack.c.l.b16 %v280
        %v723 = vunpack.c.h.b16 %v280
        %v724 = vunpack.c.l.b16 %v281
        %v725 = vunpack.c.h.b16 %v281
        %v726 = vunpack.c.l.b16 %v282
        %v727 = vunpack.c.h.b16 %v282
        %v728 = vunpack.c.l.b16 %v283
        %v729 = vunpack.c.h.b16 %v283
        %v730 = vunpack.c.l.b16 %v284
        %v731 = vunpack.c.h.b16 %v284
        %v732 = vunpack.c.l.b16 %v285
        %v733 = vunpack.c.h.b16 %v285
        %v734 = vunpack.c.l.b16 %v286
        %v735 = vunpack.c.h.b16 %v286
        %v736 = vunpack.c.l.b16 %v287
        %v737 = vunpack.c.h.b16 %v287
        %v738 = vunpack.c.l.b16 %v288
        %v739 = vunpack.c.h.b16 %v288
        %v740 = vunpack.c.l.b16 %v289
        %v741 = vunpack.c.h.b16 %v289
        %v742 = vunpack.c.l.b16 %v290
        %v743 = vunpack.c.h.b16 %v290
        %v744 = vunpack.c.l.b16 %v291
        %v745 = vunpack.c.h.b16 %v291
        %v746 = vunpack.c.l.b16 %v292
        %v747 = vunpack.c.h.b16 %v292
        %v748 = vunpack.c.l.b16 %v293
        %v749 = vunpack.c.h.b16 %v293
        %v750 = vunpack.c.l.b16 %v294
        %v751 = vunpack.c.h.b16 %v294
        %v752 = vunpack.c.l.b16 %v295
        %v753 = vunpack.c.h.b16 %v295
        %v754 = vunpack.c.l.b16 %v296
        %v755 = vunpack.c.h.b16 %v296
        %v756 = vunpack.c.l.b16 %v297
        %v757 = vunpack.c.h.b16 %v297
        %v758 = vunpack.c.l.b16 %v298
        %v759 = vunpack.c.h.b16 %v298
        %v760 = vunpack.c.l.b16 %v299
        %v761 = vunpack.c.h.b16 %v299
        %v762 = vunpack.c.l.b16 %v300
        %v763 = vunpack.c.h.b16 %v300
        %v764 = vunpack.c.l.b16 %v301
        %v765 = vunpack.c.h.b16 %v301
        %v766 = vunpack.c.l.b16 %v302
        %v767 = vunpack.c.h.b16 %v302
        %v768 = vunpack.c.l.b16 %v303
        %v769 = vunpack.c.h.b16 %v303
        %v770 = vunpack.c.l.b16 %v304
        %v771 = vunpack.c.h.b16 %v304
        %v772 = vunpack.c.l.b16 %v305
        %v773 = vunpack.c.h.b16 %v305
        %v774 = vunpack.c.l.b16 %v306
        %v775 = vunpack.c.h.b16 %v306
        %v776 = vunpack.c.l.b16 %v307
        %v777 = vunpack.c.h.b16 %v307
        %v778 = vunpack.c.l.b16 %v308
        %v779 = vunpack.c.h.b16 %v308
        %v780 = vunpack.c.l.b16 %v309
        %v781 = vunpack.c.h.b16 %v309
        %v782 = vunpack.c.l.b16 %v310
        %v783 = vunpack.c.h.b16 %v310
        %v784 = vunpack.c.l.b16 %v311
        %v785 = vunpack.c.h.b16 %v311
        %v786 = vunpack.c.l.b16 %v312
        %v787 = vunpack.c.h.b16 %v312
        %v788 = vunpack.c.l.b16 %v313
        %v789 = vunpack.c.h.b16 %v313
        %v790 = vunpack.c.l.b16 %v314
        %v791 = vunpack.c.h.b16 %v314
        %v792 = vunpack.c.l.b16 %v315
        %v793 = vunpack.c.h.b16 %v315
        %v794 = vunpack.c.l.b16 %v316
        %v795 = vunpack.c.h.b16 %v316
        %v796 = vunpack.c.l.b16 %v317
        %v797 = vunpack.c.h.b16 %v317
        %v798 = vunpack.c.l.b16 %v318
        %v799 = vunpack.c.h.b16 %v318
        %v800 = vunpack.c.l.b16 %v319
        %v801 = vunpack.c.h.b16 %v319
        %v802 = vunpack.c.l.b16 %v320
        %v803 = vunpack.c.h.b16 %v320
        %v804 = vunpack.c.l.b16 %v321
        %v805 = vunpack.c.h.b16 %v321
        %v806 = vunpack.c.l.b16 %v322
        %v807 = vunpack.c.h.b16 %v322
        %v808 = vunpack.c.l.b16 %v323
        %v809 = vunpack.c.h.b16 %v323
        %v810 = vunpack.c.l.b16 %v324
        %v811 = vunpack.c.h.b16 %v324
        %v812 = vunpack.c.l.b16 %v325
        %v813 = vunpack.c.h.b16 %v325
        %v814 = vunpack.c.l.b16 %v326
        %v815 = vunpack.c.h.b16 %v326
        %v816 = vunpack.c.l.b16 %v327
        %v817 = vunpack.c.h.b16 %v327
        %v818 = vunpack.c.l.b16 %v328
        %v819 = vunpack.c.h.b16 %v328
        %v820 = vunpack.c.l.b16 %v329
        %v821 = vunpack.c.h.b16 %v329
        %v822 = vpack.c.b16 %v694, %v686
        %v823 = vpack.c.b16 %v695, %v687
        %v824 = vpack.c.b16 %v696, %v688
        %v825 = vpack.c.b16 %v697, %v689
        %v826 = vpack.c.b16 %v698, %v690
        %v827 = vpack.c.b16 %v699, %v691
        %v828 = vpack.c.b16 %v700, %v692
        %v829 = vpack.c.b16 %v701, %v693
        %v830 = vpack.c.b16 %v710, %v702
        %v831 = vpack.c.b16 %v711, %v703
        %v832 = vpack.c.b16 %v712, %v704
        %v833 = vpack.c.b16 %v713, %v705
        %v834 = vpack.c.b16 %v714, %v706
        %v835 = vpack.c.b16 %v715, %v707
        %v836 = vpack.c.b16 %v716, %v708
        %v837 = vpack.c.b16 %v717, %v709
        %v838 = vpack.c.b16 %v726, %v718
        %v839 = vpack.c.b16 %v727, %v719
        %v840 = vpack.c.b16 %v728, %v720
        %v841 = vpack.c.b16 %v729, %v721
        %v842 = vpack.c.b16 %v730, %v722
        %v843 = vpack.c.b16 %v731, %v723
        %v844 = vpack.c.b16 %v732, %v724
        %v845 = vpack.c.b16 %v733, %v725
        %v846 = vpack.c.b16 %v742, %v734
        %v847 = vpack.c.b16 %v743, %v735
        %v848 = vpack.c.b16 %v744, %v736
        %v849 = vpack.c.b16 %v745, %v737
        %v850 = vpack.c.b16 %v746, %v738
        %v851 = vpack.c.b16 %v747, %v739
        %v852 = vpack.c.b16 %v748, %v740
        %v853 = vpack.c.b16 %v749, %v741
        %v854 = vpack.c.b16 %v758, %v750
        %v855 = vpack.c.b16 %v759, %v751
        %v856 = vpack.c.b16 %v760, %v752
        %v857 = vpack.c.b16 %v761, %v753
        %v858 = vpack.c.b16 %v762, %v754
        %v859 = vpack.c.b16 %v763, %v755
        %v860 = vpack.c.b16 %v764, %v756
        %v861 = vpack.c.b16 %v765, %v757
        %v862 = vpack.c.b16 %v774, %v766
        %v863 = vpack.c.b16 %v775, %v767
        %v864 = vpack.c.b16 %v776, %v768
        %v865 = vpack.c.b16 %v777, %v769
        %v866 = vpack.c.b16 %v778, %v770
        %v867 = vpack.c.b16 %v779, %v771
        %v868 = vpack.c.b16 %v780, %v772
        %v869 = vpack.c.b16 %v781, %v773
        %v870 = vpack.c.b16 %v790, %v782
        %v871 = vpack.c.b16 %v791, %v783
        %v872 = vpack.c.b16 %v792, %v784
        %v873 = vpack.c.b16 %v793, %v785
        %v874 = vpack.c.b16 %v794, %v786
        %v875 = vpack.c.b16 %v795, %v787
        %v876 = vpack.c.b16 %v796, %v788
        %v877 = vpack.c.b16 %v797, %v789
        %v878 = vpack.c.b16 %v806, %v798
        %v879 = vpack.c.b16 %v807, %v799
        %v880 = vpack.c.b16 %v808, %v800
        %v881 = vpack.c.b16 %v809, %v801
        %v882 = vpack.c.b16 %v810, %v802
        %v883 = vpack.c.b16 %v811, %v803
        %v884 = vpack.c.b16 %v812, %v804
        %v885 = vpack.c.b16 %v813, %v805
        %v886 = vpack.c.b16 %v814, %v814
        %v887 = vpack.c.b16 %v815, %v815
        %v888 = vpack.c.b16 %v816, %v816
        %v889 = vpack.c.b16 %v817, %v817
        %v890 = vpack.c.b16 %v818, %v818
        %v891 = vpack.c.b16 %v819, %v819
        %v892 = vpack.c.b16 %v820, %v820
        %v893 = vpack.c.b16 %v821, %v821
        %vm958 = vcmask 64512
        %v960 = vsel %vm958, %v523, 0
        %v963 = vsel %vm958, %v525, 0
        %v966 = vsel %vm958, %v527, 0
        %v969 = vsel %vm958, %v529, 0
        %v972 = vsel %vm958, %v531, 0
        %v975 = vsel %vm958, %v533, 0
        %v978 = vsel %vm958, %v535, 0
        %v981 = vsel %vm958, %v537, 0
        %v984 = vsel %vm958, %v539, 0
        %v987 = vsel %vm958, %v541, 0
        %v990 = vsel %vm958, %v543, 0
        %v993 = vsel %vm958, %v545, 0
        %v996 = vsel %vm958, %v547, 0
        %v999 = vsel %vm958, %v549, 0
        %v1002 = vsel %vm958, %v551, 0
        %v1005 = vsel %vm958, %v553, 0
        %v1008 = vsel %vm958, %v555, 0
        %v1011 = vsel %vm958, %v557, 0
        %v1014 = vsel %vm958, %v559, 0
        %v1017 = vsel %vm958, %v561, 0
        %v1020 = vsel %vm958, %v563, 0
        %v1023 = vsel %vm958, %v565, 0
        %v1026 = vsel %vm958, %v567, 0
        %v1029 = vsel %vm958, %v569, 0
        %v1032 = vsel %vm958, %v571, 0
        %v1035 = vsel %vm958, %v573, 0
        %v1038 = vsel %vm958, %v575, 0
        %v1041 = vsel %vm958, %v577, 0
        %v1044 = vsel %vm958, %v579, 0
        %v1047 = vsel %vm958, %v581, 0
        %v1050 = vsel %vm958, %v583, 0
        %v1053 = vsel %vm958, %v585, 0
        %vm1055 = vcmask 1043456
        %v1057 = vsel %vm1055, %v886, 0
        %v1060 = vsel %vm1055, %v887, 0
        %v1063 = vsel %vm1055, %v888, 0
        %v1066 = vsel %vm1055, %v889, 0
        %v1069 = vsel %vm1055, %v890, 0
        %v1072 = vsel %vm1055, %v891, 0
        %v1075 = vsel %vm1055, %v892, 0
        %v1078 = vsel %vm1055, %v893, 0
        %1080 = vmatprep.subr.bf16.mxu0 %v823
        %1081 = vmatpush1.bf16.msra.mxu0 %v822
        %1082 = vmatprep.subr.bf16.mxu0 %v831
        %1083 = vmatpush1.bf16.msra.mxu0 %v830
        %1084 = vmatprep.subr.bf16.mxu0 %v839
        %1085 = vmatpush1.bf16.msra.mxu0 %v838
        %1086 = vmatprep.subr.bf16.mxu0 %v847
        %1087 = vmatpush1.bf16.msra.mxu0 %v846
        %1088 = vmatprep.subr.bf16.mxu0 %v855
        %1089 = vmatpush1.bf16.msra.mxu0 %v854
        %1090 = vmatprep.subr.bf16.mxu0 %v863
        %1091 = vmatpush1.bf16.msra.mxu0 %v862
        %1092 = vmatprep.subr.bf16.mxu0 %v871
        %1093 = vmatpush1.bf16.msra.mxu0 %v870
        %1094 = vmatprep.subr.bf16.mxu0 %v879
        %1095 = vmatpush1.bf16.msra.mxu0 %v878
        %1096 = vmatprep.subr.bf16.mxu0 %v1060
        %1097 = vmatpush1.bf16.msra.mxu0 %v1057
        %1098 = vmatprep.subr.bf16.mxu0 0
        %1099 = vmatpush1.bf16.msra.mxu0 0
        %1100 = vmatprep.subr.bf16.mxu0 0
        %1101 = vmatpush1.bf16.msra.mxu0 0
        %1102 = vmatprep.subr.bf16.mxu0 0
        %1103 = vmatpush1.bf16.msra.mxu0 0
        %1104 = vmatprep.subr.bf16.mxu0 0
        %1105 = vmatpush1.bf16.msra.mxu0 0
        %1106 = vmatprep.subr.bf16.mxu0 0
        %1107 = vmatpush1.bf16.msra.mxu0 0
        %1108 = vmatprep.subr.bf16.mxu0 0
        %1109 = vmatpush1.bf16.msra.mxu0 0
        %1110 = vmatprep.subr.bf16.mxu0 0
        %1111 = vmatpush1.bf16.msra.mxu0 0
        %1112 = vmatprep.mubr.bf16.mxu0 %v960
        %1113 = vmatmul.mubr.bf16.gmra.mrb[0].mxu0 %v522
        %v1114 = vpop.f32.mrb[0].mxu0
        %v1115 = vadd.f32 0.0, %v1114
        %v1116 = vpop.f32.mrb[0].mxu0
        %v1117 = vadd.f32 0.0, %v1116
        %v1118 = vpop.f32.mrb[0].mxu0
        %v1119 = vadd.f32 0.0, %v1118
        %v1120 = vpop.f32.mrb[0].mxu0
        %v1121 = vadd.f32 0.0, %v1120
        %1122 = vmatprep.mubr.bf16.mxu0 %v963
        %1123 = vmatmul.mubr.bf16.gmra.mrb[0].mxu0 %v524
        %v1124 = vpop.f32.mrb[0].mxu0
        %v1125 = vadd.f32 0.0, %v1124
        %v1126 = vpop.f32.mrb[0].mxu0
        %v1127 = vadd.f32 0.0, %v1126
        %v1128 = vpop.f32.mrb[0].mxu0
        %v1129 = vadd.f32 0.0, %v1128
        %v1130 = vpop.f32.mrb[0].mxu0
        %v1131 = vadd.f32 0.0, %v1130
        %1132 = vmatprep.mubr.bf16.mxu0 %v966
        %1133 = vmatmul.mubr.bf16.gmra.mrb[0].mxu0 %v526
        %v1134 = vpop.f32.mrb[0].mxu0
        %v1135 = vadd.f32 0.0, %v1134
        %v1136 = vpop.f32.mrb[0].mxu0
        %v1137 = vadd.f32 0.0, %v1136
        %v1138 = vpop.f32.mrb[0].mxu0
        %v1139 = vadd.f32 0.0, %v1138
        %v1140 = vpop.f32.mrb[0].mxu0
        %v1141 = vadd.f32 0.0, %v1140
        %1142 = vmatprep.mubr.bf16.mxu0 %v969
        %1143 = vmatmul.mubr.bf16.gmra.mrb[0].mxu0 %v528
        %v1144 = vpop.f32.mrb[0].mxu0
        %v1145 = vadd.f32 0.0, %v1144
        %v1146 = vpop.f32.mrb[0].mxu0
        %v1147 = vadd.f32 0.0, %v1146
        %v1148 = vpop.f32.mrb[0].mxu0
        %v1149 = vadd.f32 0.0, %v1148
        %v1150 = vpop.f32.mrb[0].mxu0
        %v1151 = vadd.f32 0.0, %v1150
        %1152 = vmatprep.mubr.bf16.mxu0 %v972
        %1153 = vmatmul.mubr.bf16.gmra.mrb[0].mxu0 %v530
        %v1154 = vpop.f32.mrb[0].mxu0
        %v1155 = vadd.f32 0.0, %v1154
        %v1156 = vpop.f32.mrb[0].mxu0
        %v1157 = vadd.f32 0.0, %v1156
        %v1158 = vpop.f32.mrb[0].mxu0
        %v1159 = vadd.f32 0.0, %v1158
        %v1160 = vpop.f32.mrb[0].mxu0
        %v1161 = vadd.f32 0.0, %v1160
        %1162 = vmatprep.mubr.bf16.mxu0 %v975
        %1163 = vmatmul.mubr.bf16.gmra.mrb[0].mxu0 %v532
        %v1164 = vpop.f32.mrb[0].mxu0
        %v1165 = vadd.f32 0.0, %v1164
        %v1166 = vpop.f32.mrb[0].mxu0
        %v1167 = vadd.f32 0.0, %v1166
        %v1168 = vpop.f32.mrb[0].mxu0
        %v1169 = vadd.f32 0.0, %v1168
        %v1170 = vpop.f32.mrb[0].mxu0
        %v1171 = vadd.f32 0.0, %v1170
        %1172 = vmatprep.mubr.bf16.mxu0 %v978
        %1173 = vmatmul.mubr.bf16.gmra.mrb[0].mxu0 %v534
        %v1174 = vpop.f32.mrb[0].mxu0
        %v1175 = vadd.f32 0.0, %v1174
        %v1176 = vpop.f32.mrb[0].mxu0
        %v1177 = vadd.f32 0.0, %v1176
        %v1178 = vpop.f32.mrb[0].mxu0
        %v1179 = vadd.f32 0.0, %v1178
        %v1180 = vpop.f32.mrb[0].mxu0
        %v1181 = vadd.f32 0.0, %v1180
        %1182 = vmatprep.mubr.bf16.mxu0 %v981
        %1183 = vmatmul.mubr.bf16.gmra.mrb[0].mxu0 %v536
        %v1184 = vpop.f32.mrb[0].mxu0
        %v1185 = vadd.f32 0.0, %v1184
        %v1186 = vpop.f32.mrb[0].mxu0
        %v1187 = vadd.f32 0.0, %v1186
        %v1188 = vpop.f32.mrb[0].mxu0
        %v1189 = vadd.f32 0.0, %v1188
        %v1190 = vpop.f32.mrb[0].mxu0
        %v1191 = vadd.f32 0.0, %v1190
        %1192 = vmatprep.mubr.bf16.mxu0 %v984
        %1193 = vmatmul.mubr.bf16.gmra.mrb[0].mxu0 %v538
        %v1194 = vpop.f32.mrb[0].mxu0
        %v1195 = vadd.f32 0.0, %v1194
        %v1196 = vpop.f32.mrb[0].mxu0
        %v1197 = vadd.f32 0.0, %v1196
        %v1198 = vpop.f32.mrb[0].mxu0
        %v1199 = vadd.f32 0.0, %v1198
        %v1200 = vpop.f32.mrb[0].mxu0
        %v1201 = vadd.f32 0.0, %v1200
        %1202 = vmatprep.mubr.bf16.mxu0 %v987
        %1203 = vmatmul.mubr.bf16.gmra.mrb[0].mxu0 %v540
        %v1204 = vpop.f32.mrb[0].mxu0
        %v1205 = vadd.f32 0.0, %v1204
        %v1206 = vpop.f32.mrb[0].mxu0
        %v1207 = vadd.f32 0.0, %v1206
        %v1208 = vpop.f32.mrb[0].mxu0
        %v1209 = vadd.f32 0.0, %v1208
        %v1210 = vpop.f32.mrb[0].mxu0
        %v1211 = vadd.f32 0.0, %v1210
        %1212 = vmatprep.mubr.bf16.mxu0 %v990
        %1213 = vmatmul.mubr.bf16.gmra.mrb[0].mxu0 %v542
        %v1214 = vpop.f32.mrb[0].mxu0
        %v1215 = vadd.f32 0.0, %v1214
        %v1216 = vpop.f32.mrb[0].mxu0
        %v1217 = vadd.f32 0.0, %v1216
        %v1218 = vpop.f32.mrb[0].mxu0
        %v1219 = vadd.f32 0.0, %v1218
        %v1220 = vpop.f32.mrb[0].mxu0
        %v1221 = vadd.f32 0.0, %v1220
        %1222 = vmatprep.mubr.bf16.mxu0 %v993
        %1223 = vmatmul.mubr.bf16.gmra.mrb[0].mxu0 %v544
        %v1224 = vpop.f32.mrb[0].mxu0
        %v1225 = vadd.f32 0.0, %v1224
        %v1226 = vpop.f32.mrb[0].mxu0
        %v1227 = vadd.f32 0.0, %v1226
        %v1228 = vpop.f32.mrb[0].mxu0
        %v1229 = vadd.f32 0.0, %v1228
        %v1230 = vpop.f32.mrb[0].mxu0
        %v1231 = vadd.f32 0.0, %v1230
        %1232 = vmatprep.mubr.bf16.mxu0 %v996
        %1233 = vmatmul.mubr.bf16.gmra.mrb[0].mxu0 %v546
        %v1234 = vpop.f32.mrb[0].mxu0
        %v1235 = vadd.f32 0.0, %v1234
        %v1236 = vpop.f32.mrb[0].mxu0
        %v1237 = vadd.f32 0.0, %v1236
        %v1238 = vpop.f32.mrb[0].mxu0
        %v1239 = vadd.f32 0.0, %v1238
        %v1240 = vpop.f32.mrb[0].mxu0
        %v1241 = vadd.f32 0.0, %v1240
        %1242 = vmatprep.mubr.bf16.mxu0 %v999
        %1243 = vmatmul.mubr.bf16.gmra.mrb[0].mxu0 %v548
        %v1244 = vpop.f32.mrb[0].mxu0
        %v1245 = vadd.f32 0.0, %v1244
        %v1246 = vpop.f32.mrb[0].mxu0
        %v1247 = vadd.f32 0.0, %v1246
        %v1248 = vpop.f32.mrb[0].mxu0
        %v1249 = vadd.f32 0.0, %v1248
        %v1250 = vpop.f32.mrb[0].mxu0
        %v1251 = vadd.f32 0.0, %v1250
        %1252 = vmatprep.mubr.bf16.mxu0 %v1002
        %1253 = vmatmul.mubr.bf16.gmra.mrb[0].mxu0 %v550
        %v1254 = vpop.f32.mrb[0].mxu0
        %v1255 = vadd.f32 0.0, %v1254
        %v1256 = vpop.f32.mrb[0].mxu0
        %v1257 = vadd.f32 0.0, %v1256
        %v1258 = vpop.f32.mrb[0].mxu0
        %v1259 = vadd.f32 0.0, %v1258
        %v1260 = vpop.f32.mrb[0].mxu0
        %v1261 = vadd.f32 0.0, %v1260
        %1262 = vmatprep.mubr.bf16.mxu0 %v1005
        %1263 = vmatmul.mubr.bf16.gmra.mrb[0].mxu0 %v552
        %v1264 = vpop.f32.mrb[0].mxu0
        %v1265 = vadd.f32 0.0, %v1264
        %v1266 = vpop.f32.mrb[0].mxu0
        %v1267 = vadd.f32 0.0, %v1266
        %v1268 = vpop.f32.mrb[0].mxu0
        %v1269 = vadd.f32 0.0, %v1268
        %v1270 = vpop.f32.mrb[0].mxu0
        %v1271 = vadd.f32 0.0, %v1270
        %1272 = vmatprep.mubr.bf16.mxu0 %v1008
        %1273 = vmatmul.mubr.bf16.gmra.mrb[0].mxu0 %v554
        %v1274 = vpop.f32.mrb[0].mxu0
        %v1275 = vadd.f32 0.0, %v1274
        %v1276 = vpop.f32.mrb[0].mxu0
        %v1277 = vadd.f32 0.0, %v1276
        %v1278 = vpop.f32.mrb[0].mxu0
        %v1279 = vadd.f32 0.0, %v1278
        %v1280 = vpop.f32.mrb[0].mxu0
        %v1281 = vadd.f32 0.0, %v1280
        %1282 = vmatprep.mubr.bf16.mxu0 %v1011
        %1283 = vmatmul.mubr.bf16.gmra.mrb[0].mxu0 %v556
        %v1284 = vpop.f32.mrb[0].mxu0
        %v1285 = vadd.f32 0.0, %v1284
        %v1286 = vpop.f32.mrb[0].mxu0
        %v1287 = vadd.f32 0.0, %v1286
        %v1288 = vpop.f32.mrb[0].mxu0
        %v1289 = vadd.f32 0.0, %v1288
        %v1290 = vpop.f32.mrb[0].mxu0
        %v1291 = vadd.f32 0.0, %v1290
        %1292 = vmatprep.mubr.bf16.mxu0 %v1014
        %1293 = vmatmul.mubr.bf16.gmra.mrb[0].mxu0 %v558
        %v1294 = vpop.f32.mrb[0].mxu0
        %v1295 = vadd.f32 0.0, %v1294
        %v1296 = vpop.f32.mrb[0].mxu0
        %v1297 = vadd.f32 0.0, %v1296
        %v1298 = vpop.f32.mrb[0].mxu0
        %v1299 = vadd.f32 0.0, %v1298
        %v1300 = vpop.f32.mrb[0].mxu0
        %v1301 = vadd.f32 0.0, %v1300
        %1302 = vmatprep.mubr.bf16.mxu0 %v1017
        %1303 = vmatmul.mubr.bf16.gmra.mrb[0].mxu0 %v560
        %v1304 = vpop.f32.mrb[0].mxu0
        %v1305 = vadd.f32 0.0, %v1304
        %v1306 = vpop.f32.mrb[0].mxu0
        %v1307 = vadd.f32 0.0, %v1306
        %v1308 = vpop.f32.mrb[0].mxu0
        %v1309 = vadd.f32 0.0, %v1308
        %v1310 = vpop.f32.mrb[0].mxu0
        %v1311 = vadd.f32 0.0, %v1310
        %1312 = vmatprep.mubr.bf16.mxu0 %v1020
        %1313 = vmatmul.mubr.bf16.gmra.mrb[0].mxu0 %v562
        %v1314 = vpop.f32.mrb[0].mxu0
        %v1315 = vadd.f32 0.0, %v1314
        %v1316 = vpop.f32.mrb[0].mxu0
        %v1317 = vadd.f32 0.0, %v1316
        %v1318 = vpop.f32.mrb[0].mxu0
        %v1319 = vadd.f32 0.0, %v1318
        %v1320 = vpop.f32.mrb[0].mxu0
        %v1321 = vadd.f32 0.0, %v1320
        %1322 = vmatprep.mubr.bf16.mxu0 %v1023
        %1323 = vmatmul.mubr.bf16.gmra.mrb[0].mxu0 %v564
        %v1324 = vpop.f32.mrb[0].mxu0
        %v1325 = vadd.f32 0.0, %v1324
        %v1326 = vpop.f32.mrb[0].mxu0
        %v1327 = vadd.f32 0.0, %v1326
        %v1328 = vpop.f32.mrb[0].mxu0
        %v1329 = vadd.f32 0.0, %v1328
        %v1330 = vpop.f32.mrb[0].mxu0
        %v1331 = vadd.f32 0.0, %v1330
        %1332 = vmatprep.mubr.bf16.mxu0 %v1026
        %1333 = vmatmul.mubr.bf16.gmra.mrb[0].mxu0 %v566
        %v1334 = vpop.f32.mrb[0].mxu0
        %v1335 = vadd.f32 0.0, %v1334
        %v1336 = vpop.f32.mrb[0].mxu0
        %v1337 = vadd.f32 0.0, %v1336
        %v1338 = vpop.f32.mrb[0].mxu0
        %v1339 = vadd.f32 0.0, %v1338
        %v1340 = vpop.f32.mrb[0].mxu0
        %v1341 = vadd.f32 0.0, %v1340
        %1342 = vmatprep.mubr.bf16.mxu0 %v1029
        %1343 = vmatmul.mubr.bf16.gmra.mrb[0].mxu0 %v568
        %v1344 = vpop.f32.mrb[0].mxu0
        %v1345 = vadd.f32 0.0, %v1344
        %v1346 = vpop.f32.mrb[0].mxu0
        %v1347 = vadd.f32 0.0, %v1346
        %v1348 = vpop.f32.mrb[0].mxu0
        %v1349 = vadd.f32 0.0, %v1348
        %v1350 = vpop.f32.mrb[0].mxu0
        %v1351 = vadd.f32 0.0, %v1350
        %1352 = vmatprep.mubr.bf16.mxu0 %v1032
        %1353 = vmatmul.mubr.bf16.gmra.mrb[0].mxu0 %v570
        %v1354 = vpop.f32.mrb[0].mxu0
        %v1355 = vadd.f32 0.0, %v1354
        %v1356 = vpop.f32.mrb[0].mxu0
        %v1357 = vadd.f32 0.0, %v1356
        %v1358 = vpop.f32.mrb[0].mxu0
        %v1359 = vadd.f32 0.0, %v1358
        %v1360 = vpop.f32.mrb[0].mxu0
        %v1361 = vadd.f32 0.0, %v1360
        %1362 = vmatprep.mubr.bf16.mxu0 %v1035
        %1363 = vmatmul.mubr.bf16.gmra.mrb[0].mxu0 %v572
        %v1364 = vpop.f32.mrb[0].mxu0
        %v1365 = vadd.f32 0.0, %v1364
        %v1366 = vpop.f32.mrb[0].mxu0
        %v1367 = vadd.f32 0.0, %v1366
        %v1368 = vpop.f32.mrb[0].mxu0
        %v1369 = vadd.f32 0.0, %v1368
        %v1370 = vpop.f32.mrb[0].mxu0
        %v1371 = vadd.f32 0.0, %v1370
        %1372 = vmatprep.mubr.bf16.mxu0 %v1038
        %1373 = vmatmul.mubr.bf16.gmra.mrb[0].mxu0 %v574
        %v1374 = vpop.f32.mrb[0].mxu0
        %v1375 = vadd.f32 0.0, %v1374
        %v1376 = vpop.f32.mrb[0].mxu0
        %v1377 = vadd.f32 0.0, %v1376
        %v1378 = vpop.f32.mrb[0].mxu0
        %v1379 = vadd.f32 0.0, %v1378
        %v1380 = vpop.f32.mrb[0].mxu0
        %v1381 = vadd.f32 0.0, %v1380
        %1382 = vmatprep.mubr.bf16.mxu0 %v1041
        %1383 = vmatmul.mubr.bf16.gmra.mrb[0].mxu0 %v576
        %v1384 = vpop.f32.mrb[0].mxu0
        %v1385 = vadd.f32 0.0, %v1384
        %v1386 = vpop.f32.mrb[0].mxu0
        %v1387 = vadd.f32 0.0, %v1386
        %v1388 = vpop.f32.mrb[0].mxu0
        %v1389 = vadd.f32 0.0, %v1388
        %v1390 = vpop.f32.mrb[0].mxu0
        %v1391 = vadd.f32 0.0, %v1390
        %1392 = vmatprep.mubr.bf16.mxu0 %v1044
        %1393 = vmatmul.mubr.bf16.gmra.mrb[0].mxu0 %v578
        %v1394 = vpop.f32.mrb[0].mxu0
        %v1395 = vadd.f32 0.0, %v1394
        %v1396 = vpop.f32.mrb[0].mxu0
        %v1397 = vadd.f32 0.0, %v1396
        %v1398 = vpop.f32.mrb[0].mxu0
        %v1399 = vadd.f32 0.0, %v1398
        %v1400 = vpop.f32.mrb[0].mxu0
        %v1401 = vadd.f32 0.0, %v1400
        %1402 = vmatprep.mubr.bf16.mxu0 %v1047
        %1403 = vmatmul.mubr.bf16.gmra.mrb[0].mxu0 %v580
        %v1404 = vpop.f32.mrb[0].mxu0
        %v1405 = vadd.f32 0.0, %v1404
        %v1406 = vpop.f32.mrb[0].mxu0
        %v1407 = vadd.f32 0.0, %v1406
        %v1408 = vpop.f32.mrb[0].mxu0
        %v1409 = vadd.f32 0.0, %v1408
        %v1410 = vpop.f32.mrb[0].mxu0
        %v1411 = vadd.f32 0.0, %v1410
        %1412 = vmatprep.mubr.bf16.mxu0 %v1050
        %1413 = vmatmul.mubr.bf16.gmra.mrb[0].mxu0 %v582
        %v1414 = vpop.f32.mrb[0].mxu0
        %v1415 = vadd.f32 0.0, %v1414
        %v1416 = vpop.f32.mrb[0].mxu0
        %v1417 = vadd.f32 0.0, %v1416
        %v1418 = vpop.f32.mrb[0].mxu0
        %v1419 = vadd.f32 0.0, %v1418
        %v1420 = vpop.f32.mrb[0].mxu0
        %v1421 = vadd.f32 0.0, %v1420
        %1422 = vmatprep.mubr.bf16.mxu0 %v1053
        %1423 = vmatmul.mubr.bf16.gmra.mrb[0].mxu0 %v584
        %v1424 = vpop.f32.mrb[0].mxu0
        %v1425 = vadd.f32 0.0, %v1424
        %v1426 = vpop.f32.mrb[0].mxu0
        %v1427 = vadd.f32 0.0, %v1426
        %v1428 = vpop.f32.mrb[0].mxu0
        %v1429 = vadd.f32 0.0, %v1428
        %v1430 = vpop.f32.mrb[0].mxu0
        %v1431 = vadd.f32 0.0, %v1430
        %1432 = vdwg.mxu0
        %1433 = vmatprep.subr.bf16.mxu0 %v825
        %1434 = vmatpush1.bf16.msra.mxu0 %v824
        %1435 = vmatprep.subr.bf16.mxu0 %v833
        %1436 = vmatpush1.bf16.msra.mxu0 %v832
        %1437 = vmatprep.subr.bf16.mxu0 %v841
        %1438 = vmatpush1.bf16.msra.mxu0 %v840
        %1439 = vmatprep.subr.bf16.mxu0 %v849
        %1440 = vmatpush1.bf16.msra.mxu0 %v848
        %1441 = vmatprep.subr.bf16.mxu0 %v857
        %1442 = vmatpush1.bf16.msra.mxu0 %v856
        %1443 = vmatprep.subr.bf16.mxu0 %v865
        %1444 = vmatpush1.bf16.msra.mxu0 %v864
        %1445 = vmatprep.subr.bf16.mxu0 %v873
        %1446 = vmatpush1.bf16.msra.mxu0 %v872
        %1447 = vmatprep.subr.bf16.mxu0 %v881
        %1448 = vmatpush1.bf16.msra.mxu0 %v880
        %1449 = vmatprep.subr.bf16.mxu0 %v1066
        %1450 = vmatpush1.bf16.msra.mxu0 %v1063
        %1451 = vmatprep.subr.bf16.mxu0 0
        %1452 = vmatpush1.bf16.msra.mxu0 0
        %1453 = vmatprep.subr.bf16.mxu0 0
        %1454 = vmatpush1.bf16.msra.mxu0 0
        %1455 = vmatprep.subr.bf16.mxu0 0
        %1456 = vmatpush1.bf16.msra.mxu0 0
        %1457 = vmatprep.subr.bf16.mxu0 0
        %1458 = vmatpush1.bf16.msra.mxu0 0
        %1459 = vmatprep.subr.bf16.mxu0 0
        %1460 = vmatpush1.bf16.msra.mxu0 0
        %1461 = vmatprep.subr.bf16.mxu0 0
        %1462 = vmatpush1.bf16.msra.mxu0 0
        %1463 = vmatprep.subr.bf16.mxu0 0
        %1464 = vmatpush1.bf16.msra.mxu0 0
        %1465 = vmatprep.mubr.bf16.mxu0 %v960
        %1466 = vmatmul.mubr.bf16.gmra.mrb[0].mxu0 %v522
        %v1467 = vpop.f32.mrb[0].mxu0
        %v1468 = vadd.f32 0.0, %v1467
        %v1469 = vpop.f32.mrb[0].mxu0
        %v1470 = vadd.f32 0.0, %v1469
        %v1471 = vpop.f32.mrb[0].mxu0
        %v1472 = vadd.f32 0.0, %v1471
        %v1473 = vpop.f32.mrb[0].mxu0
        %v1474 = vadd.f32 0.0, %v1473
        %1475 = vmatprep.mubr.bf16.mxu0 %v963
        %1476 = vmatmul.mubr.bf16.gmra.mrb[0].mxu0 %v524
        %v1477 = vpop.f32.mrb[0].mxu0
        %v1478 = vadd.f32 0.0, %v1477
        %v1479 = vpop.f32.mrb[0].mxu0
        %v1480 = vadd.f32 0.0, %v1479
        %v1481 = vpop.f32.mrb[0].mxu0
        %v1482 = vadd.f32 0.0, %v1481
        %v1483 = vpop.f32.mrb[0].mxu0
        %v1484 = vadd.f32 0.0, %v1483
        %1485 = vmatprep.mubr.bf16.mxu0 %v966
        %1486 = vmatmul.mubr.bf16.gmra.mrb[0].mxu0 %v526
        %v1487 = vpop.f32.mrb[0].mxu0
        %v1488 = vadd.f32 0.0, %v1487
        %v1489 = vpop.f32.mrb[0].mxu0
        %v1490 = vadd.f32 0.0, %v1489
        %v1491 = vpop.f32.mrb[0].mxu0
        %v1492 = vadd.f32 0.0, %v1491
        %v1493 = vpop.f32.mrb[0].mxu0
        %v1494 = vadd.f32 0.0, %v1493
        %1495 = vmatprep.mubr.bf16.mxu0 %v969
        %1496 = vmatmul.mubr.bf16.gmra.mrb[0].mxu0 %v528
        %v1497 = vpop.f32.mrb[0].mxu0
        %v1498 = vadd.f32 0.0, %v1497
        %v1499 = vpop.f32.mrb[0].mxu0
        %v1500 = vadd.f32 0.0, %v1499
        %v1501 = vpop.f32.mrb[0].mxu0
        %v1502 = vadd.f32 0.0, %v1501
        %v1503 = vpop.f32.mrb[0].mxu0
        %v1504 = vadd.f32 0.0, %v1503
        %1505 = vmatprep.mubr.bf16.mxu0 %v972
        %1506 = vmatmul.mubr.bf16.gmra.mrb[0].mxu0 %v530
        %v1507 = vpop.f32.mrb[0].mxu0
        %v1508 = vadd.f32 0.0, %v1507
        %v1509 = vpop.f32.mrb[0].mxu0
        %v1510 = vadd.f32 0.0, %v1509
        %v1511 = vpop.f32.mrb[0].mxu0
        %v1512 = vadd.f32 0.0, %v1511
        %v1513 = vpop.f32.mrb[0].mxu0
        %v1514 = vadd.f32 0.0, %v1513
        %1515 = vmatprep.mubr.bf16.mxu0 %v975
        %1516 = vmatmul.mubr.bf16.gmra.mrb[0].mxu0 %v532
        %v1517 = vpop.f32.mrb[0].mxu0
        %v1518 = vadd.f32 0.0, %v1517
        %v1519 = vpop.f32.mrb[0].mxu0
        %v1520 = vadd.f32 0.0, %v1519
        %v1521 = vpop.f32.mrb[0].mxu0
        %v1522 = vadd.f32 0.0, %v1521
        %v1523 = vpop.f32.mrb[0].mxu0
        %v1524 = vadd.f32 0.0, %v1523
        %1525 = vmatprep.mubr.bf16.mxu0 %v978
        %1526 = vmatmul.mubr.bf16.gmra.mrb[0].mxu0 %v534
        %v1527 = vpop.f32.mrb[0].mxu0
        %v1528 = vadd.f32 0.0, %v1527
        %v1529 = vpop.f32.mrb[0].mxu0
        %v1530 = vadd.f32 0.0, %v1529
        %v1531 = vpop.f32.mrb[0].mxu0
        %v1532 = vadd.f32 0.0, %v1531
        %v1533 = vpop.f32.mrb[0].mxu0
        %v1534 = vadd.f32 0.0, %v1533
        %1535 = vmatprep.mubr.bf16.mxu0 %v981
        %1536 = vmatmul.mubr.bf16.gmra.mrb[0].mxu0 %v536
        %v1537 = vpop.f32.mrb[0].mxu0
        %v1538 = vadd.f32 0.0, %v1537
        %v1539 = vpop.f32.mrb[0].mxu0
        %v1540 = vadd.f32 0.0, %v1539
        %v1541 = vpop.f32.mrb[0].mxu0
        %v1542 = vadd.f32 0.0, %v1541
        %v1543 = vpop.f32.mrb[0].mxu0
        %v1544 = vadd.f32 0.0, %v1543
        %1545 = vmatprep.mubr.bf16.mxu0 %v984
        %1546 = vmatmul.mubr.bf16.gmra.mrb[0].mxu0 %v538
        %v1547 = vpop.f32.mrb[0].mxu0
        %v1548 = vadd.f32 0.0, %v1547
        %v1549 = vpop.f32.mrb[0].mxu0
        %v1550 = vadd.f32 0.0, %v1549
        %v1551 = vpop.f32.mrb[0].mxu0
        %v1552 = vadd.f32 0.0, %v1551
        %v1553 = vpop.f32.mrb[0].mxu0
        %v1554 = vadd.f32 0.0, %v1553
        %1555 = vmatprep.mubr.bf16.mxu0 %v987
        %1556 = vmatmul.mubr.bf16.gmra.mrb[0].mxu0 %v540
        %v1557 = vpop.f32.mrb[0].mxu0
        %v1558 = vadd.f32 0.0, %v1557
        %v1559 = vpop.f32.mrb[0].mxu0
        %v1560 = vadd.f32 0.0, %v1559
        %v1561 = vpop.f32.mrb[0].mxu0
        %v1562 = vadd.f32 0.0, %v1561
        %v1563 = vpop.f32.mrb[0].mxu0
        %v1564 = vadd.f32 0.0, %v1563
        %1565 = vmatprep.mubr.bf16.mxu0 %v990
        %1566 = vmatmul.mubr.bf16.gmra.mrb[0].mxu0 %v542
        %v1567 = vpop.f32.mrb[0].mxu0
        %v1568 = vadd.f32 0.0, %v1567
        %v1569 = vpop.f32.mrb[0].mxu0
        %v1570 = vadd.f32 0.0, %v1569
        %v1571 = vpop.f32.mrb[0].mxu0
        %v1572 = vadd.f32 0.0, %v1571
        %v1573 = vpop.f32.mrb[0].mxu0
        %v1574 = vadd.f32 0.0, %v1573
        %1575 = vmatprep.mubr.bf16.mxu0 %v993
        %1576 = vmatmul.mubr.bf16.gmra.mrb[0].mxu0 %v544
        %v1577 = vpop.f32.mrb[0].mxu0
        %v1578 = vadd.f32 0.0, %v1577
        %v1579 = vpop.f32.mrb[0].mxu0
        %v1580 = vadd.f32 0.0, %v1579
        %v1581 = vpop.f32.mrb[0].mxu0
        %v1582 = vadd.f32 0.0, %v1581
        %v1583 = vpop.f32.mrb[0].mxu0
        %v1584 = vadd.f32 0.0, %v1583
        %1585 = vmatprep.mubr.bf16.mxu0 %v996
        %1586 = vmatmul.mubr.bf16.gmra.mrb[0].mxu0 %v546
        %v1587 = vpop.f32.mrb[0].mxu0
        %v1588 = vadd.f32 0.0, %v1587
        %v1589 = vpop.f32.mrb[0].mxu0
        %v1590 = vadd.f32 0.0, %v1589
        %v1591 = vpop.f32.mrb[0].mxu0
        %v1592 = vadd.f32 0.0, %v1591
        %v1593 = vpop.f32.mrb[0].mxu0
        %v1594 = vadd.f32 0.0, %v1593
        %1595 = vmatprep.mubr.bf16.mxu0 %v999
        %1596 = vmatmul.mubr.bf16.gmra.mrb[0].mxu0 %v548
        %v1597 = vpop.f32.mrb[0].mxu0
        %v1598 = vadd.f32 0.0, %v1597
        %v1599 = vpop.f32.mrb[0].mxu0
        %v1600 = vadd.f32 0.0, %v1599
        %v1601 = vpop.f32.mrb[0].mxu0
        %v1602 = vadd.f32 0.0, %v1601
        %v1603 = vpop.f32.mrb[0].mxu0
        %v1604 = vadd.f32 0.0, %v1603
        %1605 = vmatprep.mubr.bf16.mxu0 %v1002
        %1606 = vmatmul.mubr.bf16.gmra.mrb[0].mxu0 %v550
        %v1607 = vpop.f32.mrb[0].mxu0
        %v1608 = vadd.f32 0.0, %v1607
        %v1609 = vpop.f32.mrb[0].mxu0
        %v1610 = vadd.f32 0.0, %v1609
        %v1611 = vpop.f32.mrb[0].mxu0
        %v1612 = vadd.f32 0.0, %v1611
        %v1613 = vpop.f32.mrb[0].mxu0
        %v1614 = vadd.f32 0.0, %v1613
        %1615 = vmatprep.mubr.bf16.mxu0 %v1005
        %1616 = vmatmul.mubr.bf16.gmra.mrb[0].mxu0 %v552
        %v1617 = vpop.f32.mrb[0].mxu0
        %v1618 = vadd.f32 0.0, %v1617
        %v1619 = vpop.f32.mrb[0].mxu0
        %v1620 = vadd.f32 0.0, %v1619
        %v1621 = vpop.f32.mrb[0].mxu0
        %v1622 = vadd.f32 0.0, %v1621
        %v1623 = vpop.f32.mrb[0].mxu0
        %v1624 = vadd.f32 0.0, %v1623
        %1625 = vmatprep.mubr.bf16.mxu0 %v1008
        %1626 = vmatmul.mubr.bf16.gmra.mrb[0].mxu0 %v554
        %v1627 = vpop.f32.mrb[0].mxu0
        %v1628 = vadd.f32 0.0, %v1627
        %v1629 = vpop.f32.mrb[0].mxu0
        %v1630 = vadd.f32 0.0, %v1629
        %v1631 = vpop.f32.mrb[0].mxu0
        %v1632 = vadd.f32 0.0, %v1631
        %v1633 = vpop.f32.mrb[0].mxu0
        %v1634 = vadd.f32 0.0, %v1633
        %1635 = vmatprep.mubr.bf16.mxu0 %v1011
        %1636 = vmatmul.mubr.bf16.gmra.mrb[0].mxu0 %v556
        %v1637 = vpop.f32.mrb[0].mxu0
        %v1638 = vadd.f32 0.0, %v1637
        %v1639 = vpop.f32.mrb[0].mxu0
        %v1640 = vadd.f32 0.0, %v1639
        %v1641 = vpop.f32.mrb[0].mxu0
        %v1642 = vadd.f32 0.0, %v1641
        %v1643 = vpop.f32.mrb[0].mxu0
        %v1644 = vadd.f32 0.0, %v1643
        %1645 = vmatprep.mubr.bf16.mxu0 %v1014
        %1646 = vmatmul.mubr.bf16.gmra.mrb[0].mxu0 %v558
        %v1647 = vpop.f32.mrb[0].mxu0
        %v1648 = vadd.f32 0.0, %v1647
        %v1649 = vpop.f32.mrb[0].mxu0
        %v1650 = vadd.f32 0.0, %v1649
        %v1651 = vpop.f32.mrb[0].mxu0
        %v1652 = vadd.f32 0.0, %v1651
        %v1653 = vpop.f32.mrb[0].mxu0
        %v1654 = vadd.f32 0.0, %v1653
        %1655 = vmatprep.mubr.bf16.mxu0 %v1017
        %1656 = vmatmul.mubr.bf16.gmra.mrb[0].mxu0 %v560
        %v1657 = vpop.f32.mrb[0].mxu0
        %v1658 = vadd.f32 0.0, %v1657
        %v1659 = vpop.f32.mrb[0].mxu0
        %v1660 = vadd.f32 0.0, %v1659
        %v1661 = vpop.f32.mrb[0].mxu0
        %v1662 = vadd.f32 0.0, %v1661
        %v1663 = vpop.f32.mrb[0].mxu0
        %v1664 = vadd.f32 0.0, %v1663
        %1665 = vmatprep.mubr.bf16.mxu0 %v1020
        %1666 = vmatmul.mubr.bf16.gmra.mrb[0].mxu0 %v562
        %v1667 = vpop.f32.mrb[0].mxu0
        %v1668 = vadd.f32 0.0, %v1667
        %v1669 = vpop.f32.mrb[0].mxu0
        %v1670 = vadd.f32 0.0, %v1669
        %v1671 = vpop.f32.mrb[0].mxu0
        %v1672 = vadd.f32 0.0, %v1671
        %v1673 = vpop.f32.mrb[0].mxu0
        %v1674 = vadd.f32 0.0, %v1673
        %1675 = vmatprep.mubr.bf16.mxu0 %v1023
        %1676 = vmatmul.mubr.bf16.gmra.mrb[0].mxu0 %v564
        %v1677 = vpop.f32.mrb[0].mxu0
        %v1678 = vadd.f32 0.0, %v1677
        %v1679 = vpop.f32.mrb[0].mxu0
        %v1680 = vadd.f32 0.0, %v1679
        %v1681 = vpop.f32.mrb[0].mxu0
        %v1682 = vadd.f32 0.0, %v1681
        %v1683 = vpop.f32.mrb[0].mxu0
        %v1684 = vadd.f32 0.0, %v1683
        %1685 = vmatprep.mubr.bf16.mxu0 %v1026
        %1686 = vmatmul.mubr.bf16.gmra.mrb[0].mxu0 %v566
        %v1687 = vpop.f32.mrb[0].mxu0
        %v1688 = vadd.f32 0.0, %v1687
        %v1689 = vpop.f32.mrb[0].mxu0
        %v1690 = vadd.f32 0.0, %v1689
        %v1691 = vpop.f32.mrb[0].mxu0
        %v1692 = vadd.f32 0.0, %v1691
        %v1693 = vpop.f32.mrb[0].mxu0
        %v1694 = vadd.f32 0.0, %v1693
        %1695 = vmatprep.mubr.bf16.mxu0 %v1029
        %1696 = vmatmul.mubr.bf16.gmra.mrb[0].mxu0 %v568
        %v1697 = vpop.f32.mrb[0].mxu0
        %v1698 = vadd.f32 0.0, %v1697
        %v1699 = vpop.f32.mrb[0].mxu0
        %v1700 = vadd.f32 0.0, %v1699
        %v1701 = vpop.f32.mrb[0].mxu0
        %v1702 = vadd.f32 0.0, %v1701
        %v1703 = vpop.f32.mrb[0].mxu0
        %v1704 = vadd.f32 0.0, %v1703
        %1705 = vmatprep.mubr.bf16.mxu0 %v1032
        %1706 = vmatmul.mubr.bf16.gmra.mrb[0].mxu0 %v570
        %v1707 = vpop.f32.mrb[0].mxu0
        %v1708 = vadd.f32 0.0, %v1707
        %v1709 = vpop.f32.mrb[0].mxu0
        %v1710 = vadd.f32 0.0, %v1709
        %v1711 = vpop.f32.mrb[0].mxu0
        %v1712 = vadd.f32 0.0, %v1711
        %v1713 = vpop.f32.mrb[0].mxu0
        %v1714 = vadd.f32 0.0, %v1713
        %1715 = vmatprep.mubr.bf16.mxu0 %v1035
        %1716 = vmatmul.mubr.bf16.gmra.mrb[0].mxu0 %v572
        %v1717 = vpop.f32.mrb[0].mxu0
        %v1718 = vadd.f32 0.0, %v1717
        %v1719 = vpop.f32.mrb[0].mxu0
        %v1720 = vadd.f32 0.0, %v1719
        %v1721 = vpop.f32.mrb[0].mxu0
        %v1722 = vadd.f32 0.0, %v1721
        %v1723 = vpop.f32.mrb[0].mxu0
        %v1724 = vadd.f32 0.0, %v1723
        %1725 = vmatprep.mubr.bf16.mxu0 %v1038
        %1726 = vmatmul.mubr.bf16.gmra.mrb[0].mxu0 %v574
        %v1727 = vpop.f32.mrb[0].mxu0
        %v1728 = vadd.f32 0.0, %v1727
        %v1729 = vpop.f32.mrb[0].mxu0
        %v1730 = vadd.f32 0.0, %v1729
        %v1731 = vpop.f32.mrb[0].mxu0
        %v1732 = vadd.f32 0.0, %v1731
        %v1733 = vpop.f32.mrb[0].mxu0
        %v1734 = vadd.f32 0.0, %v1733
        %1735 = vmatprep.mubr.bf16.mxu0 %v1041
        %1736 = vmatmul.mubr.bf16.gmra.mrb[0].mxu0 %v576
        %v1737 = vpop.f32.mrb[0].mxu0
        %v1738 = vadd.f32 0.0, %v1737
        %v1739 = vpop.f32.mrb[0].mxu0
        %v1740 = vadd.f32 0.0, %v1739
        %v1741 = vpop.f32.mrb[0].mxu0
        %v1742 = vadd.f32 0.0, %v1741
        %v1743 = vpop.f32.mrb[0].mxu0
        %v1744 = vadd.f32 0.0, %v1743
        %1745 = vmatprep.mubr.bf16.mxu0 %v1044
        %1746 = vmatmul.mubr.bf16.gmra.mrb[0].mxu0 %v578
        %v1747 = vpop.f32.mrb[0].mxu0
        %v1748 = vadd.f32 0.0, %v1747
        %v1749 = vpop.f32.mrb[0].mxu0
        %v1750 = vadd.f32 0.0, %v1749
        %v1751 = vpop.f32.mrb[0].mxu0
        %v1752 = vadd.f32 0.0, %v1751
        %v1753 = vpop.f32.mrb[0].mxu0
        %v1754 = vadd.f32 0.0, %v1753
        %1755 = vmatprep.mubr.bf16.mxu0 %v1047
        %1756 = vmatmul.mubr.bf16.gmra.mrb[0].mxu0 %v580
        %v1757 = vpop.f32.mrb[0].mxu0
        %v1758 = vadd.f32 0.0, %v1757
        %v1759 = vpop.f32.mrb[0].mxu0
        %v1760 = vadd.f32 0.0, %v1759
        %v1761 = vpop.f32.mrb[0].mxu0
        %v1762 = vadd.f32 0.0, %v1761
        %v1763 = vpop.f32.mrb[0].mxu0
        %v1764 = vadd.f32 0.0, %v1763
        %1765 = vmatprep.mubr.bf16.mxu0 %v1050
        %1766 = vmatmul.mubr.bf16.gmra.mrb[0].mxu0 %v582
        %v1767 = vpop.f32.mrb[0].mxu0
        %v1768 = vadd.f32 0.0, %v1767
        %v1769 = vpop.f32.mrb[0].mxu0
        %v1770 = vadd.f32 0.0, %v1769
        %v1771 = vpop.f32.mrb[0].mxu0
        %v1772 = vadd.f32 0.0, %v1771
        %v1773 = vpop.f32.mrb[0].mxu0
        %v1774 = vadd.f32 0.0, %v1773
        %1775 = vmatprep.mubr.bf16.mxu0 %v1053
        %1776 = vmatmul.mubr.bf16.gmra.mrb[0].mxu0 %v584
        %v1777 = vpop.f32.mrb[0].mxu0
        %v1778 = vadd.f32 0.0, %v1777
        %v1779 = vpop.f32.mrb[0].mxu0
        %v1780 = vadd.f32 0.0, %v1779
        %v1781 = vpop.f32.mrb[0].mxu0
        %v1782 = vadd.f32 0.0, %v1781
        %v1783 = vpop.f32.mrb[0].mxu0
        %v1784 = vadd.f32 0.0, %v1783
        %1785 = vdwg.mxu0
        %1786 = vmatprep.subr.bf16.mxu0 %v827
        %1787 = vmatpush1.bf16.msra.mxu0 %v826
        %1788 = vmatprep.subr.bf16.mxu0 %v835
        %1789 = vmatpush1.bf16.msra.mxu0 %v834
        %1790 = vmatprep.subr.bf16.mxu0 %v843
        %1791 = vmatpush1.bf16.msra.mxu0 %v842
        %1792 = vmatprep.subr.bf16.mxu0 %v851
        %1793 = vmatpush1.bf16.msra.mxu0 %v850
        %1794 = vmatprep.subr.bf16.mxu0 %v859
        %1795 = vmatpush1.bf16.msra.mxu0 %v858
        %1796 = vmatprep.subr.bf16.mxu0 %v867
        %1797 = vmatpush1.bf16.msra.mxu0 %v866
        %1798 = vmatprep.subr.bf16.mxu0 %v875
        %1799 = vmatpush1.bf16.msra.mxu0 %v874
        %1800 = vmatprep.subr.bf16.mxu0 %v883
        %1801 = vmatpush1.bf16.msra.mxu0 %v882
        %1802 = vmatprep.subr.bf16.mxu0 %v1072
        %1803 = vmatpush1.bf16.msra.mxu0 %v1069
        %1804 = vmatprep.subr.bf16.mxu0 0
        %1805 = vmatpush1.bf16.msra.mxu0 0
        %1806 = vmatprep.subr.bf16.mxu0 0
        %1807 = vmatpush1.bf16.msra.mxu0 0
        %1808 = vmatprep.subr.bf16.mxu0 0
        %1809 = vmatpush1.bf16.msra.mxu0 0
        %1810 = vmatprep.subr.bf16.mxu0 0
        %1811 = vmatpush1.bf16.msra.mxu0 0
        %1812 = vmatprep.subr.bf16.mxu0 0
        %1813 = vmatpush1.bf16.msra.mxu0 0
        %1814 = vmatprep.subr.bf16.mxu0 0
        %1815 = vmatpush1.bf16.msra.mxu0 0
        %1816 = vmatprep.subr.bf16.mxu0 0
        %1817 = vmatpush1.bf16.msra.mxu0 0
        %1818 = vmatprep.mubr.bf16.mxu0 %v960
        %1819 = vmatmul.mubr.bf16.gmra.mrb[0].mxu0 %v522
        %v1820 = vpop.f32.mrb[0].mxu0
        %v1821 = vadd.f32 0.0, %v1820
        %v1822 = vpop.f32.mrb[0].mxu0
        %v1823 = vadd.f32 0.0, %v1822
        %v1824 = vpop.f32.mrb[0].mxu0
        %v1825 = vadd.f32 0.0, %v1824
        %v1826 = vpop.f32.mrb[0].mxu0
        %v1827 = vadd.f32 0.0, %v1826
        %1828 = vmatprep.mubr.bf16.mxu0 %v963
        %1829 = vmatmul.mubr.bf16.gmra.mrb[0].mxu0 %v524
        %v1830 = vpop.f32.mrb[0].mxu0
        %v1831 = vadd.f32 0.0, %v1830
        %v1832 = vpop.f32.mrb[0].mxu0
        %v1833 = vadd.f32 0.0, %v1832
        %v1834 = vpop.f32.mrb[0].mxu0
        %v1835 = vadd.f32 0.0, %v1834
        %v1836 = vpop.f32.mrb[0].mxu0
        %v1837 = vadd.f32 0.0, %v1836
        %1838 = vmatprep.mubr.bf16.mxu0 %v966
        %1839 = vmatmul.mubr.bf16.gmra.mrb[0].mxu0 %v526
        %v1840 = vpop.f32.mrb[0].mxu0
        %v1841 = vadd.f32 0.0, %v1840
        %v1842 = vpop.f32.mrb[0].mxu0
        %v1843 = vadd.f32 0.0, %v1842
        %v1844 = vpop.f32.mrb[0].mxu0
        %v1845 = vadd.f32 0.0, %v1844
        %v1846 = vpop.f32.mrb[0].mxu0
        %v1847 = vadd.f32 0.0, %v1846
        %1848 = vmatprep.mubr.bf16.mxu0 %v969
        %1849 = vmatmul.mubr.bf16.gmra.mrb[0].mxu0 %v528
        %v1850 = vpop.f32.mrb[0].mxu0
        %v1851 = vadd.f32 0.0, %v1850
        %v1852 = vpop.f32.mrb[0].mxu0
        %v1853 = vadd.f32 0.0, %v1852
        %v1854 = vpop.f32.mrb[0].mxu0
        %v1855 = vadd.f32 0.0, %v1854
        %v1856 = vpop.f32.mrb[0].mxu0
        %v1857 = vadd.f32 0.0, %v1856
        %1858 = vmatprep.mubr.bf16.mxu0 %v972
        %1859 = vmatmul.mubr.bf16.gmra.mrb[0].mxu0 %v530
        %v1860 = vpop.f32.mrb[0].mxu0
        %v1861 = vadd.f32 0.0, %v1860
        %v1862 = vpop.f32.mrb[0].mxu0
        %v1863 = vadd.f32 0.0, %v1862
        %v1864 = vpop.f32.mrb[0].mxu0
        %v1865 = vadd.f32 0.0, %v1864
        %v1866 = vpop.f32.mrb[0].mxu0
        %v1867 = vadd.f32 0.0, %v1866
        %1868 = vmatprep.mubr.bf16.mxu0 %v975
        %1869 = vmatmul.mubr.bf16.gmra.mrb[0].mxu0 %v532
        %v1870 = vpop.f32.mrb[0].mxu0
        %v1871 = vadd.f32 0.0, %v1870
        %v1872 = vpop.f32.mrb[0].mxu0
        %v1873 = vadd.f32 0.0, %v1872
        %v1874 = vpop.f32.mrb[0].mxu0
        %v1875 = vadd.f32 0.0, %v1874
        %v1876 = vpop.f32.mrb[0].mxu0
        %v1877 = vadd.f32 0.0, %v1876
        %1878 = vmatprep.mubr.bf16.mxu0 %v978
        %1879 = vmatmul.mubr.bf16.gmra.mrb[0].mxu0 %v534
        %v1880 = vpop.f32.mrb[0].mxu0
        %v1881 = vadd.f32 0.0, %v1880
        %v1882 = vpop.f32.mrb[0].mxu0
        %v1883 = vadd.f32 0.0, %v1882
        %v1884 = vpop.f32.mrb[0].mxu0
        %v1885 = vadd.f32 0.0, %v1884
        %v1886 = vpop.f32.mrb[0].mxu0
        %v1887 = vadd.f32 0.0, %v1886
        %1888 = vmatprep.mubr.bf16.mxu0 %v981
        %1889 = vmatmul.mubr.bf16.gmra.mrb[0].mxu0 %v536
        %v1890 = vpop.f32.mrb[0].mxu0
        %v1891 = vadd.f32 0.0, %v1890
        %v1892 = vpop.f32.mrb[0].mxu0
        %v1893 = vadd.f32 0.0, %v1892
        %v1894 = vpop.f32.mrb[0].mxu0
        %v1895 = vadd.f32 0.0, %v1894
        %v1896 = vpop.f32.mrb[0].mxu0
        %v1897 = vadd.f32 0.0, %v1896
        %1898 = vmatprep.mubr.bf16.mxu0 %v984
        %1899 = vmatmul.mubr.bf16.gmra.mrb[0].mxu0 %v538
        %v1900 = vpop.f32.mrb[0].mxu0
        %v1901 = vadd.f32 0.0, %v1900
        %v1902 = vpop.f32.mrb[0].mxu0
        %v1903 = vadd.f32 0.0, %v1902
        %v1904 = vpop.f32.mrb[0].mxu0
        %v1905 = vadd.f32 0.0, %v1904
        %v1906 = vpop.f32.mrb[0].mxu0
        %v1907 = vadd.f32 0.0, %v1906
        %1908 = vmatprep.mubr.bf16.mxu0 %v987
        %1909 = vmatmul.mubr.bf16.gmra.mrb[0].mxu0 %v540
        %v1910 = vpop.f32.mrb[0].mxu0
        %v1911 = vadd.f32 0.0, %v1910
        %v1912 = vpop.f32.mrb[0].mxu0
        %v1913 = vadd.f32 0.0, %v1912
        %v1914 = vpop.f32.mrb[0].mxu0
        %v1915 = vadd.f32 0.0, %v1914
        %v1916 = vpop.f32.mrb[0].mxu0
        %v1917 = vadd.f32 0.0, %v1916
        %1918 = vmatprep.mubr.bf16.mxu0 %v990
        %1919 = vmatmul.mubr.bf16.gmra.mrb[0].mxu0 %v542
        %v1920 = vpop.f32.mrb[0].mxu0
        %v1921 = vadd.f32 0.0, %v1920
        %v1922 = vpop.f32.mrb[0].mxu0
        %v1923 = vadd.f32 0.0, %v1922
        %v1924 = vpop.f32.mrb[0].mxu0
        %v1925 = vadd.f32 0.0, %v1924
        %v1926 = vpop.f32.mrb[0].mxu0
        %v1927 = vadd.f32 0.0, %v1926
        %1928 = vmatprep.mubr.bf16.mxu0 %v993
        %1929 = vmatmul.mubr.bf16.gmra.mrb[0].mxu0 %v544
        %v1930 = vpop.f32.mrb[0].mxu0
        %v1931 = vadd.f32 0.0, %v1930
        %v1932 = vpop.f32.mrb[0].mxu0
        %v1933 = vadd.f32 0.0, %v1932
        %v1934 = vpop.f32.mrb[0].mxu0
        %v1935 = vadd.f32 0.0, %v1934
        %v1936 = vpop.f32.mrb[0].mxu0
        %v1937 = vadd.f32 0.0, %v1936
        %1938 = vmatprep.mubr.bf16.mxu0 %v996
        %1939 = vmatmul.mubr.bf16.gmra.mrb[0].mxu0 %v546
        %v1940 = vpop.f32.mrb[0].mxu0
        %v1941 = vadd.f32 0.0, %v1940
        %v1942 = vpop.f32.mrb[0].mxu0
        %v1943 = vadd.f32 0.0, %v1942
        %v1944 = vpop.f32.mrb[0].mxu0
        %v1945 = vadd.f32 0.0, %v1944
        %v1946 = vpop.f32.mrb[0].mxu0
        %v1947 = vadd.f32 0.0, %v1946
        %1948 = vmatprep.mubr.bf16.mxu0 %v999
        %1949 = vmatmul.mubr.bf16.gmra.mrb[0].mxu0 %v548
        %v1950 = vpop.f32.mrb[0].mxu0
        %v1951 = vadd.f32 0.0, %v1950
        %v1952 = vpop.f32.mrb[0].mxu0
        %v1953 = vadd.f32 0.0, %v1952
        %v1954 = vpop.f32.mrb[0].mxu0
        %v1955 = vadd.f32 0.0, %v1954
        %v1956 = vpop.f32.mrb[0].mxu0
        %v1957 = vadd.f32 0.0, %v1956
        %1958 = vmatprep.mubr.bf16.mxu0 %v1002
        %1959 = vmatmul.mubr.bf16.gmra.mrb[0].mxu0 %v550
        %v1960 = vpop.f32.mrb[0].mxu0
        %v1961 = vadd.f32 0.0, %v1960
        %v1962 = vpop.f32.mrb[0].mxu0
        %v1963 = vadd.f32 0.0, %v1962
        %v1964 = vpop.f32.mrb[0].mxu0
        %v1965 = vadd.f32 0.0, %v1964
        %v1966 = vpop.f32.mrb[0].mxu0
        %v1967 = vadd.f32 0.0, %v1966
        %1968 = vmatprep.mubr.bf16.mxu0 %v1005
        %1969 = vmatmul.mubr.bf16.gmra.mrb[0].mxu0 %v552
        %v1970 = vpop.f32.mrb[0].mxu0
        %v1971 = vadd.f32 0.0, %v1970
        %v1972 = vpop.f32.mrb[0].mxu0
        %v1973 = vadd.f32 0.0, %v1972
        %v1974 = vpop.f32.mrb[0].mxu0
        %v1975 = vadd.f32 0.0, %v1974
        %v1976 = vpop.f32.mrb[0].mxu0
        %v1977 = vadd.f32 0.0, %v1976
        %1978 = vmatprep.mubr.bf16.mxu0 %v1008
        %1979 = vmatmul.mubr.bf16.gmra.mrb[0].mxu0 %v554
        %v1980 = vpop.f32.mrb[0].mxu0
        %v1981 = vadd.f32 0.0, %v1980
        %v1982 = vpop.f32.mrb[0].mxu0
        %v1983 = vadd.f32 0.0, %v1982
        %v1984 = vpop.f32.mrb[0].mxu0
        %v1985 = vadd.f32 0.0, %v1984
        %v1986 = vpop.f32.mrb[0].mxu0
        %v1987 = vadd.f32 0.0, %v1986
        %1988 = vmatprep.mubr.bf16.mxu0 %v1011
        %1989 = vmatmul.mubr.bf16.gmra.mrb[0].mxu0 %v556
        %v1990 = vpop.f32.mrb[0].mxu0
        %v1991 = vadd.f32 0.0, %v1990
        %v1992 = vpop.f32.mrb[0].mxu0
        %v1993 = vadd.f32 0.0, %v1992
        %v1994 = vpop.f32.mrb[0].mxu0
        %v1995 = vadd.f32 0.0, %v1994
        %v1996 = vpop.f32.mrb[0].mxu0
        %v1997 = vadd.f32 0.0, %v1996
        %1998 = vmatprep.mubr.bf16.mxu0 %v1014
        %1999 = vmatmul.mubr.bf16.gmra.mrb[0].mxu0 %v558
        %v2000 = vpop.f32.mrb[0].mxu0
        %v2001 = vadd.f32 0.0, %v2000
        %v2002 = vpop.f32.mrb[0].mxu0
        %v2003 = vadd.f32 0.0, %v2002
        %v2004 = vpop.f32.mrb[0].mxu0
        %v2005 = vadd.f32 0.0, %v2004
        %v2006 = vpop.f32.mrb[0].mxu0
        %v2007 = vadd.f32 0.0, %v2006
        %2008 = vmatprep.mubr.bf16.mxu0 %v1017
        %2009 = vmatmul.mubr.bf16.gmra.mrb[0].mxu0 %v560
        %v2010 = vpop.f32.mrb[0].mxu0
        %v2011 = vadd.f32 0.0, %v2010
        %v2012 = vpop.f32.mrb[0].mxu0
        %v2013 = vadd.f32 0.0, %v2012
        %v2014 = vpop.f32.mrb[0].mxu0
        %v2015 = vadd.f32 0.0, %v2014
        %v2016 = vpop.f32.mrb[0].mxu0
        %v2017 = vadd.f32 0.0, %v2016
        %2018 = vmatprep.mubr.bf16.mxu0 %v1020
        %2019 = vmatmul.mubr.bf16.gmra.mrb[0].mxu0 %v562
        %v2020 = vpop.f32.mrb[0].mxu0
        %v2021 = vadd.f32 0.0, %v2020
        %v2022 = vpop.f32.mrb[0].mxu0
        %v2023 = vadd.f32 0.0, %v2022
        %v2024 = vpop.f32.mrb[0].mxu0
        %v2025 = vadd.f32 0.0, %v2024
        %v2026 = vpop.f32.mrb[0].mxu0
        %v2027 = vadd.f32 0.0, %v2026
        %2028 = vmatprep.mubr.bf16.mxu0 %v1023
        %2029 = vmatmul.mubr.bf16.gmra.mrb[0].mxu0 %v564
        %v2030 = vpop.f32.mrb[0].mxu0
        %v2031 = vadd.f32 0.0, %v2030
        %v2032 = vpop.f32.mrb[0].mxu0
        %v2033 = vadd.f32 0.0, %v2032
        %v2034 = vpop.f32.mrb[0].mxu0
        %v2035 = vadd.f32 0.0, %v2034
        %v2036 = vpop.f32.mrb[0].mxu0
        %v2037 = vadd.f32 0.0, %v2036
        %2038 = vmatprep.mubr.bf16.mxu0 %v1026
        %2039 = vmatmul.mubr.bf16.gmra.mrb[0].mxu0 %v566
        %v2040 = vpop.f32.mrb[0].mxu0
        %v2041 = vadd.f32 0.0, %v2040
        %v2042 = vpop.f32.mrb[0].mxu0
        %v2043 = vadd.f32 0.0, %v2042
        %v2044 = vpop.f32.mrb[0].mxu0
        %v2045 = vadd.f32 0.0, %v2044
        %v2046 = vpop.f32.mrb[0].mxu0
        %v2047 = vadd.f32 0.0, %v2046
        %2048 = vmatprep.mubr.bf16.mxu0 %v1029
        %2049 = vmatmul.mubr.bf16.gmra.mrb[0].mxu0 %v568
        %v2050 = vpop.f32.mrb[0].mxu0
        %v2051 = vadd.f32 0.0, %v2050
        %v2052 = vpop.f32.mrb[0].mxu0
        %v2053 = vadd.f32 0.0, %v2052
        %v2054 = vpop.f32.mrb[0].mxu0
        %v2055 = vadd.f32 0.0, %v2054
        %v2056 = vpop.f32.mrb[0].mxu0
        %v2057 = vadd.f32 0.0, %v2056
        %2058 = vmatprep.mubr.bf16.mxu0 %v1032
        %2059 = vmatmul.mubr.bf16.gmra.mrb[0].mxu0 %v570
        %v2060 = vpop.f32.mrb[0].mxu0
        %v2061 = vadd.f32 0.0, %v2060
        %v2062 = vpop.f32.mrb[0].mxu0
        %v2063 = vadd.f32 0.0, %v2062
        %v2064 = vpop.f32.mrb[0].mxu0
        %v2065 = vadd.f32 0.0, %v2064
        %v2066 = vpop.f32.mrb[0].mxu0
        %v2067 = vadd.f32 0.0, %v2066
        %2068 = vmatprep.mubr.bf16.mxu0 %v1035
        %2069 = vmatmul.mubr.bf16.gmra.mrb[0].mxu0 %v572
        %v2070 = vpop.f32.mrb[0].mxu0
        %v2071 = vadd.f32 0.0, %v2070
        %v2072 = vpop.f32.mrb[0].mxu0
        %v2073 = vadd.f32 0.0, %v2072
        %v2074 = vpop.f32.mrb[0].mxu0
        %v2075 = vadd.f32 0.0, %v2074
        %v2076 = vpop.f32.mrb[0].mxu0
        %v2077 = vadd.f32 0.0, %v2076
        %2078 = vmatprep.mubr.bf16.mxu0 %v1038
        %2079 = vmatmul.mubr.bf16.gmra.mrb[0].mxu0 %v574
        %v2080 = vpop.f32.mrb[0].mxu0
        %v2081 = vadd.f32 0.0, %v2080
        %v2082 = vpop.f32.mrb[0].mxu0
        %v2083 = vadd.f32 0.0, %v2082
        %v2084 = vpop.f32.mrb[0].mxu0
        %v2085 = vadd.f32 0.0, %v2084
        %v2086 = vpop.f32.mrb[0].mxu0
        %v2087 = vadd.f32 0.0, %v2086
        %2088 = vmatprep.mubr.bf16.mxu0 %v1041
        %2089 = vmatmul.mubr.bf16.gmra.mrb[0].mxu0 %v576
        %v2090 = vpop.f32.mrb[0].mxu0
        %v2091 = vadd.f32 0.0, %v2090
        %v2092 = vpop.f32.mrb[0].mxu0
        %v2093 = vadd.f32 0.0, %v2092
        %v2094 = vpop.f32.mrb[0].mxu0
        %v2095 = vadd.f32 0.0, %v2094
        %v2096 = vpop.f32.mrb[0].mxu0
        %v2097 = vadd.f32 0.0, %v2096
        %2098 = vmatprep.mubr.bf16.mxu0 %v1044
        %2099 = vmatmul.mubr.bf16.gmra.mrb[0].mxu0 %v578
        %v2100 = vpop.f32.mrb[0].mxu0
        %v2101 = vadd.f32 0.0, %v2100
        %v2102 = vpop.f32.mrb[0].mxu0
        %v2103 = vadd.f32 0.0, %v2102
        %v2104 = vpop.f32.mrb[0].mxu0
        %v2105 = vadd.f32 0.0, %v2104
        %v2106 = vpop.f32.mrb[0].mxu0
        %v2107 = vadd.f32 0.0, %v2106
        %2108 = vmatprep.mubr.bf16.mxu0 %v1047
        %2109 = vmatmul.mubr.bf16.gmra.mrb[0].mxu0 %v580
        %v2110 = vpop.f32.mrb[0].mxu0
        %v2111 = vadd.f32 0.0, %v2110
        %v2112 = vpop.f32.mrb[0].mxu0
        %v2113 = vadd.f32 0.0, %v2112
        %v2114 = vpop.f32.mrb[0].mxu0
        %v2115 = vadd.f32 0.0, %v2114
        %v2116 = vpop.f32.mrb[0].mxu0
        %v2117 = vadd.f32 0.0, %v2116
        %2118 = vmatprep.mubr.bf16.mxu0 %v1050
        %2119 = vmatmul.mubr.bf16.gmra.mrb[0].mxu0 %v582
        %v2120 = vpop.f32.mrb[0].mxu0
        %v2121 = vadd.f32 0.0, %v2120
        %v2122 = vpop.f32.mrb[0].mxu0
        %v2123 = vadd.f32 0.0, %v2122
        %v2124 = vpop.f32.mrb[0].mxu0
        %v2125 = vadd.f32 0.0, %v2124
        %v2126 = vpop.f32.mrb[0].mxu0
        %v2127 = vadd.f32 0.0, %v2126
        %2128 = vmatprep.mubr.bf16.mxu0 %v1053
        %2129 = vmatmul.mubr.bf16.gmra.mrb[0].mxu0 %v584
        %v2130 = vpop.f32.mrb[0].mxu0
        %v2131 = vadd.f32 0.0, %v2130
        %v2132 = vpop.f32.mrb[0].mxu0
        %v2133 = vadd.f32 0.0, %v2132
        %v2134 = vpop.f32.mrb[0].mxu0
        %v2135 = vadd.f32 0.0, %v2134
        %v2136 = vpop.f32.mrb[0].mxu0
        %v2137 = vadd.f32 0.0, %v2136
        %2138 = vdwg.mxu0
        %2139 = vmatprep.subr.bf16.mxu0 %v829
        %2140 = vmatpush1.bf16.msra.mxu0 %v828
        %2141 = vmatprep.subr.bf16.mxu0 %v837
        %2142 = vmatpush1.bf16.msra.mxu0 %v836
        %2143 = vmatprep.subr.bf16.mxu0 %v845
        %2144 = vmatpush1.bf16.msra.mxu0 %v844
        %2145 = vmatprep.subr.bf16.mxu0 %v853
        %2146 = vmatpush1.bf16.msra.mxu0 %v852
        %2147 = vmatprep.subr.bf16.mxu0 %v861
        %2148 = vmatpush1.bf16.msra.mxu0 %v860
        %2149 = vmatprep.subr.bf16.mxu0 %v869
        %2150 = vmatpush1.bf16.msra.mxu0 %v868
        %2151 = vmatprep.subr.bf16.mxu0 %v877
        %2152 = vmatpush1.bf16.msra.mxu0 %v876
        %2153 = vmatprep.subr.bf16.mxu0 %v885
        %2154 = vmatpush1.bf16.msra.mxu0 %v884
        %2155 = vmatprep.subr.bf16.mxu0 %v1078
        %2156 = vmatpush1.bf16.msra.mxu0 %v1075
        %2157 = vmatprep.subr.bf16.mxu0 0
        %2158 = vmatpush1.bf16.msra.mxu0 0
        %2159 = vmatprep.subr.bf16.mxu0 0
        %2160 = vmatpush1.bf16.msra.mxu0 0
        %2161 = vmatprep.subr.bf16.mxu0 0
        %2162 = vmatpush1.bf16.msra.mxu0 0
        %2163 = vmatprep.subr.bf16.mxu0 0
        %2164 = vmatpush1.bf16.msra.mxu0 0
        %2165 = vmatprep.subr.bf16.mxu0 0
        %2166 = vmatpush1.bf16.msra.mxu0 0
        %2167 = vmatprep.subr.bf16.mxu0 0
        %2168 = vmatpush1.bf16.msra.mxu0 0
        %2169 = vmatprep.subr.bf16.mxu0 0
        %2170 = vmatpush1.bf16.msra.mxu0 0
        %2171 = vmatprep.mubr.bf16.mxu0 %v960
        %2172 = vmatmul.mubr.bf16.gmra.mrb[0].mxu0 %v522
        %v2173 = vpop.f32.mrb[0].mxu0
        %v2174 = vadd.f32 0.0, %v2173
        %v2175 = vpop.f32.mrb[0].mxu0
        %v2176 = vadd.f32 0.0, %v2175
        %v2177 = vpop.f32.mrb[0].mxu0
        %v2178 = vadd.f32 0.0, %v2177
        %v2179 = vpop.f32.mrb[0].mxu0
        %v2180 = vadd.f32 0.0, %v2179
        %2181 = vmatprep.mubr.bf16.mxu0 %v963
        %2182 = vmatmul.mubr.bf16.gmra.mrb[0].mxu0 %v524
        %v2183 = vpop.f32.mrb[0].mxu0
        %v2184 = vadd.f32 0.0, %v2183
        %v2185 = vpop.f32.mrb[0].mxu0
        %v2186 = vadd.f32 0.0, %v2185
        %v2187 = vpop.f32.mrb[0].mxu0
        %v2188 = vadd.f32 0.0, %v2187
        %v2189 = vpop.f32.mrb[0].mxu0
        %v2190 = vadd.f32 0.0, %v2189
        %2191 = vmatprep.mubr.bf16.mxu0 %v966
        %2192 = vmatmul.mubr.bf16.gmra.mrb[0].mxu0 %v526
        %v2193 = vpop.f32.mrb[0].mxu0
        %v2194 = vadd.f32 0.0, %v2193
        %v2195 = vpop.f32.mrb[0].mxu0
        %v2196 = vadd.f32 0.0, %v2195
        %v2197 = vpop.f32.mrb[0].mxu0
        %v2198 = vadd.f32 0.0, %v2197
        %v2199 = vpop.f32.mrb[0].mxu0
        %v2200 = vadd.f32 0.0, %v2199
        %2201 = vmatprep.mubr.bf16.mxu0 %v969
        %2202 = vmatmul.mubr.bf16.gmra.mrb[0].mxu0 %v528
        %v2203 = vpop.f32.mrb[0].mxu0
        %v2204 = vadd.f32 0.0, %v2203
        %v2205 = vpop.f32.mrb[0].mxu0
        %v2206 = vadd.f32 0.0, %v2205
        %v2207 = vpop.f32.mrb[0].mxu0
        %v2208 = vadd.f32 0.0, %v2207
        %v2209 = vpop.f32.mrb[0].mxu0
        %v2210 = vadd.f32 0.0, %v2209
        %2211 = vmatprep.mubr.bf16.mxu0 %v972
        %2212 = vmatmul.mubr.bf16.gmra.mrb[0].mxu0 %v530
        %v2213 = vpop.f32.mrb[0].mxu0
        %v2214 = vadd.f32 0.0, %v2213
        %v2215 = vpop.f32.mrb[0].mxu0
        %v2216 = vadd.f32 0.0, %v2215
        %v2217 = vpop.f32.mrb[0].mxu0
        %v2218 = vadd.f32 0.0, %v2217
        %v2219 = vpop.f32.mrb[0].mxu0
        %v2220 = vadd.f32 0.0, %v2219
        %2221 = vmatprep.mubr.bf16.mxu0 %v975
        %2222 = vmatmul.mubr.bf16.gmra.mrb[0].mxu0 %v532
        %v2223 = vpop.f32.mrb[0].mxu0
        %v2224 = vadd.f32 0.0, %v2223
        %v2225 = vpop.f32.mrb[0].mxu0
        %v2226 = vadd.f32 0.0, %v2225
        %v2227 = vpop.f32.mrb[0].mxu0
        %v2228 = vadd.f32 0.0, %v2227
        %v2229 = vpop.f32.mrb[0].mxu0
        %v2230 = vadd.f32 0.0, %v2229
        %2231 = vmatprep.mubr.bf16.mxu0 %v978
        %2232 = vmatmul.mubr.bf16.gmra.mrb[0].mxu0 %v534
        %v2233 = vpop.f32.mrb[0].mxu0
        %v2234 = vadd.f32 0.0, %v2233
        %v2235 = vpop.f32.mrb[0].mxu0
        %v2236 = vadd.f32 0.0, %v2235
        %v2237 = vpop.f32.mrb[0].mxu0
        %v2238 = vadd.f32 0.0, %v2237
        %v2239 = vpop.f32.mrb[0].mxu0
        %v2240 = vadd.f32 0.0, %v2239
        %2241 = vmatprep.mubr.bf16.mxu0 %v981
        %2242 = vmatmul.mubr.bf16.gmra.mrb[0].mxu0 %v536
        %v2243 = vpop.f32.mrb[0].mxu0
        %v2244 = vadd.f32 0.0, %v2243
        %v2245 = vpop.f32.mrb[0].mxu0
        %v2246 = vadd.f32 0.0, %v2245
        %v2247 = vpop.f32.mrb[0].mxu0
        %v2248 = vadd.f32 0.0, %v2247
        %v2249 = vpop.f32.mrb[0].mxu0
        %v2250 = vadd.f32 0.0, %v2249
        %2251 = vmatprep.mubr.bf16.mxu0 %v984
        %2252 = vmatmul.mubr.bf16.gmra.mrb[0].mxu0 %v538
        %v2253 = vpop.f32.mrb[0].mxu0
        %v2254 = vadd.f32 0.0, %v2253
        %v2255 = vpop.f32.mrb[0].mxu0
        %v2256 = vadd.f32 0.0, %v2255
        %v2257 = vpop.f32.mrb[0].mxu0
        %v2258 = vadd.f32 0.0, %v2257
        %v2259 = vpop.f32.mrb[0].mxu0
        %v2260 = vadd.f32 0.0, %v2259
        %2261 = vmatprep.mubr.bf16.mxu0 %v987
        %2262 = vmatmul.mubr.bf16.gmra.mrb[0].mxu0 %v540
        %v2263 = vpop.f32.mrb[0].mxu0
        %v2264 = vadd.f32 0.0, %v2263
        %v2265 = vpop.f32.mrb[0].mxu0
        %v2266 = vadd.f32 0.0, %v2265
        %v2267 = vpop.f32.mrb[0].mxu0
        %v2268 = vadd.f32 0.0, %v2267
        %v2269 = vpop.f32.mrb[0].mxu0
        %v2270 = vadd.f32 0.0, %v2269
        %2271 = vmatprep.mubr.bf16.mxu0 %v990
        %2272 = vmatmul.mubr.bf16.gmra.mrb[0].mxu0 %v542
        %v2273 = vpop.f32.mrb[0].mxu0
        %v2274 = vadd.f32 0.0, %v2273
        %v2275 = vpop.f32.mrb[0].mxu0
        %v2276 = vadd.f32 0.0, %v2275
        %v2277 = vpop.f32.mrb[0].mxu0
        %v2278 = vadd.f32 0.0, %v2277
        %v2279 = vpop.f32.mrb[0].mxu0
        %v2280 = vadd.f32 0.0, %v2279
        %2281 = vmatprep.mubr.bf16.mxu0 %v993
        %2282 = vmatmul.mubr.bf16.gmra.mrb[0].mxu0 %v544
        %v2283 = vpop.f32.mrb[0].mxu0
        %v2284 = vadd.f32 0.0, %v2283
        %v2285 = vpop.f32.mrb[0].mxu0
        %v2286 = vadd.f32 0.0, %v2285
        %v2287 = vpop.f32.mrb[0].mxu0
        %v2288 = vadd.f32 0.0, %v2287
        %v2289 = vpop.f32.mrb[0].mxu0
        %v2290 = vadd.f32 0.0, %v2289
        %2291 = vmatprep.mubr.bf16.mxu0 %v996
        %2292 = vmatmul.mubr.bf16.gmra.mrb[0].mxu0 %v546
        %v2293 = vpop.f32.mrb[0].mxu0
        %v2294 = vadd.f32 0.0, %v2293
        %v2295 = vpop.f32.mrb[0].mxu0
        %v2296 = vadd.f32 0.0, %v2295
        %v2297 = vpop.f32.mrb[0].mxu0
        %v2298 = vadd.f32 0.0, %v2297
        %v2299 = vpop.f32.mrb[0].mxu0
        %v2300 = vadd.f32 0.0, %v2299
        %2301 = vmatprep.mubr.bf16.mxu0 %v999
        %2302 = vmatmul.mubr.bf16.gmra.mrb[0].mxu0 %v548
        %v2303 = vpop.f32.mrb[0].mxu0
        %v2304 = vadd.f32 0.0, %v2303
        %v2305 = vpop.f32.mrb[0].mxu0
        %v2306 = vadd.f32 0.0, %v2305
        %v2307 = vpop.f32.mrb[0].mxu0
        %v2308 = vadd.f32 0.0, %v2307
        %v2309 = vpop.f32.mrb[0].mxu0
        %v2310 = vadd.f32 0.0, %v2309
        %2311 = vmatprep.mubr.bf16.mxu0 %v1002
        %2312 = vmatmul.mubr.bf16.gmra.mrb[0].mxu0 %v550
        %v2313 = vpop.f32.mrb[0].mxu0
        %v2314 = vadd.f32 0.0, %v2313
        %v2315 = vpop.f32.mrb[0].mxu0
        %v2316 = vadd.f32 0.0, %v2315
        %v2317 = vpop.f32.mrb[0].mxu0
        %v2318 = vadd.f32 0.0, %v2317
        %v2319 = vpop.f32.mrb[0].mxu0
        %v2320 = vadd.f32 0.0, %v2319
        %2321 = vmatprep.mubr.bf16.mxu0 %v1005
        %2322 = vmatmul.mubr.bf16.gmra.mrb[0].mxu0 %v552
        %v2323 = vpop.f32.mrb[0].mxu0
        %v2324 = vadd.f32 0.0, %v2323
        %v2325 = vpop.f32.mrb[0].mxu0
        %v2326 = vadd.f32 0.0, %v2325
        %v2327 = vpop.f32.mrb[0].mxu0
        %v2328 = vadd.f32 0.0, %v2327
        %v2329 = vpop.f32.mrb[0].mxu0
        %v2330 = vadd.f32 0.0, %v2329
        %2331 = vmatprep.mubr.bf16.mxu0 %v1008
        %2332 = vmatmul.mubr.bf16.gmra.mrb[0].mxu0 %v554
        %v2333 = vpop.f32.mrb[0].mxu0
        %v2334 = vadd.f32 0.0, %v2333
        %v2335 = vpop.f32.mrb[0].mxu0
        %v2336 = vadd.f32 0.0, %v2335
        %v2337 = vpop.f32.mrb[0].mxu0
        %v2338 = vadd.f32 0.0, %v2337
        %v2339 = vpop.f32.mrb[0].mxu0
        %v2340 = vadd.f32 0.0, %v2339
        %2341 = vmatprep.mubr.bf16.mxu0 %v1011
        %2342 = vmatmul.mubr.bf16.gmra.mrb[0].mxu0 %v556
        %v2343 = vpop.f32.mrb[0].mxu0
        %v2344 = vadd.f32 0.0, %v2343
        %v2345 = vpop.f32.mrb[0].mxu0
        %v2346 = vadd.f32 0.0, %v2345
        %v2347 = vpop.f32.mrb[0].mxu0
        %v2348 = vadd.f32 0.0, %v2347
        %v2349 = vpop.f32.mrb[0].mxu0
        %v2350 = vadd.f32 0.0, %v2349
        %2351 = vmatprep.mubr.bf16.mxu0 %v1014
        %2352 = vmatmul.mubr.bf16.gmra.mrb[0].mxu0 %v558
        %v2353 = vpop.f32.mrb[0].mxu0
        %v2354 = vadd.f32 0.0, %v2353
        %v2355 = vpop.f32.mrb[0].mxu0
        %v2356 = vadd.f32 0.0, %v2355
        %v2357 = vpop.f32.mrb[0].mxu0
        %v2358 = vadd.f32 0.0, %v2357
        %v2359 = vpop.f32.mrb[0].mxu0
        %v2360 = vadd.f32 0.0, %v2359
        %2361 = vmatprep.mubr.bf16.mxu0 %v1017
        %2362 = vmatmul.mubr.bf16.gmra.mrb[0].mxu0 %v560
        %v2363 = vpop.f32.mrb[0].mxu0
        %v2364 = vadd.f32 0.0, %v2363
        %v2365 = vpop.f32.mrb[0].mxu0
        %v2366 = vadd.f32 0.0, %v2365
        %v2367 = vpop.f32.mrb[0].mxu0
        %v2368 = vadd.f32 0.0, %v2367
        %v2369 = vpop.f32.mrb[0].mxu0
        %v2370 = vadd.f32 0.0, %v2369
        %2371 = vmatprep.mubr.bf16.mxu0 %v1020
        %2372 = vmatmul.mubr.bf16.gmra.mrb[0].mxu0 %v562
        %v2373 = vpop.f32.mrb[0].mxu0
        %v2374 = vadd.f32 0.0, %v2373
        %v2375 = vpop.f32.mrb[0].mxu0
        %v2376 = vadd.f32 0.0, %v2375
        %v2377 = vpop.f32.mrb[0].mxu0
        %v2378 = vadd.f32 0.0, %v2377
        %v2379 = vpop.f32.mrb[0].mxu0
        %v2380 = vadd.f32 0.0, %v2379
        %2381 = vmatprep.mubr.bf16.mxu0 %v1023
        %2382 = vmatmul.mubr.bf16.gmra.mrb[0].mxu0 %v564
        %v2383 = vpop.f32.mrb[0].mxu0
        %v2384 = vadd.f32 0.0, %v2383
        %v2385 = vpop.f32.mrb[0].mxu0
        %v2386 = vadd.f32 0.0, %v2385
        %v2387 = vpop.f32.mrb[0].mxu0
        %v2388 = vadd.f32 0.0, %v2387
        %v2389 = vpop.f32.mrb[0].mxu0
        %v2390 = vadd.f32 0.0, %v2389
        %2391 = vmatprep.mubr.bf16.mxu0 %v1026
        %2392 = vmatmul.mubr.bf16.gmra.mrb[0].mxu0 %v566
        %v2393 = vpop.f32.mrb[0].mxu0
        %v2394 = vadd.f32 0.0, %v2393
        %v2395 = vpop.f32.mrb[0].mxu0
        %v2396 = vadd.f32 0.0, %v2395
        %v2397 = vpop.f32.mrb[0].mxu0
        %v2398 = vadd.f32 0.0, %v2397
        %v2399 = vpop.f32.mrb[0].mxu0
        %v2400 = vadd.f32 0.0, %v2399
        %2401 = vmatprep.mubr.bf16.mxu0 %v1029
        %2402 = vmatmul.mubr.bf16.gmra.mrb[0].mxu0 %v568
        %v2403 = vpop.f32.mrb[0].mxu0
        %v2404 = vadd.f32 0.0, %v2403
        %v2405 = vpop.f32.mrb[0].mxu0
        %v2406 = vadd.f32 0.0, %v2405
        %v2407 = vpop.f32.mrb[0].mxu0
        %v2408 = vadd.f32 0.0, %v2407
        %v2409 = vpop.f32.mrb[0].mxu0
        %v2410 = vadd.f32 0.0, %v2409
        %2411 = vmatprep.mubr.bf16.mxu0 %v1032
        %2412 = vmatmul.mubr.bf16.gmra.mrb[0].mxu0 %v570
        %v2413 = vpop.f32.mrb[0].mxu0
        %v2414 = vadd.f32 0.0, %v2413
        %v2415 = vpop.f32.mrb[0].mxu0
        %v2416 = vadd.f32 0.0, %v2415
        %v2417 = vpop.f32.mrb[0].mxu0
        %v2418 = vadd.f32 0.0, %v2417
        %v2419 = vpop.f32.mrb[0].mxu0
        %v2420 = vadd.f32 0.0, %v2419
        %2421 = vmatprep.mubr.bf16.mxu0 %v1035
        %2422 = vmatmul.mubr.bf16.gmra.mrb[0].mxu0 %v572
        %v2423 = vpop.f32.mrb[0].mxu0
        %v2424 = vadd.f32 0.0, %v2423
        %v2425 = vpop.f32.mrb[0].mxu0
        %v2426 = vadd.f32 0.0, %v2425
        %v2427 = vpop.f32.mrb[0].mxu0
        %v2428 = vadd.f32 0.0, %v2427
        %v2429 = vpop.f32.mrb[0].mxu0
        %v2430 = vadd.f32 0.0, %v2429
        %2431 = vmatprep.mubr.bf16.mxu0 %v1038
        %2432 = vmatmul.mubr.bf16.gmra.mrb[0].mxu0 %v574
        %v2433 = vpop.f32.mrb[0].mxu0
        %v2434 = vadd.f32 0.0, %v2433
        %v2435 = vpop.f32.mrb[0].mxu0
        %v2436 = vadd.f32 0.0, %v2435
        %v2437 = vpop.f32.mrb[0].mxu0
        %v2438 = vadd.f32 0.0, %v2437
        %v2439 = vpop.f32.mrb[0].mxu0
        %v2440 = vadd.f32 0.0, %v2439
        %2441 = vmatprep.mubr.bf16.mxu0 %v1041
        %2442 = vmatmul.mubr.bf16.gmra.mrb[0].mxu0 %v576
        %v2443 = vpop.f32.mrb[0].mxu0
        %v2444 = vadd.f32 0.0, %v2443
        %v2445 = vpop.f32.mrb[0].mxu0
        %v2446 = vadd.f32 0.0, %v2445
        %v2447 = vpop.f32.mrb[0].mxu0
        %v2448 = vadd.f32 0.0, %v2447
        %v2449 = vpop.f32.mrb[0].mxu0
        %v2450 = vadd.f32 0.0, %v2449
        %2451 = vmatprep.mubr.bf16.mxu0 %v1044
        %2452 = vmatmul.mubr.bf16.gmra.mrb[0].mxu0 %v578
        %v2453 = vpop.f32.mrb[0].mxu0
        %v2454 = vadd.f32 0.0, %v2453
        %v2455 = vpop.f32.mrb[0].mxu0
        %v2456 = vadd.f32 0.0, %v2455
        %v2457 = vpop.f32.mrb[0].mxu0
        %v2458 = vadd.f32 0.0, %v2457
        %v2459 = vpop.f32.mrb[0].mxu0
        %v2460 = vadd.f32 0.0, %v2459
        %2461 = vmatprep.mubr.bf16.mxu0 %v1047
        %2462 = vmatmul.mubr.bf16.gmra.mrb[0].mxu0 %v580
        %v2463 = vpop.f32.mrb[0].mxu0
        %v2464 = vadd.f32 0.0, %v2463
        %v2465 = vpop.f32.mrb[0].mxu0
        %v2466 = vadd.f32 0.0, %v2465
        %v2467 = vpop.f32.mrb[0].mxu0
        %v2468 = vadd.f32 0.0, %v2467
        %v2469 = vpop.f32.mrb[0].mxu0
        %v2470 = vadd.f32 0.0, %v2469
        %2471 = vmatprep.mubr.bf16.mxu0 %v1050
        %2472 = vmatmul.mubr.bf16.gmra.mrb[0].mxu0 %v582
        %v2473 = vpop.f32.mrb[0].mxu0
        %v2474 = vadd.f32 0.0, %v2473
        %v2475 = vpop.f32.mrb[0].mxu0
        %v2476 = vadd.f32 0.0, %v2475
        %v2477 = vpop.f32.mrb[0].mxu0
        %v2478 = vadd.f32 0.0, %v2477
        %v2479 = vpop.f32.mrb[0].mxu0
        %v2480 = vadd.f32 0.0, %v2479
        %2481 = vmatprep.mubr.bf16.mxu0 %v1053
        %2482 = vmatmul.mubr.bf16.gmra.mrb[0].mxu0 %v584
        %v2483 = vpop.f32.mrb[0].mxu0
        %v2484 = vadd.f32 0.0, %v2483
        %v2485 = vpop.f32.mrb[0].mxu0
        %v2486 = vadd.f32 0.0, %v2485
        %v2487 = vpop.f32.mrb[0].mxu0
        %v2488 = vadd.f32 0.0, %v2487
        %v2489 = vpop.f32.mrb[0].mxu0
        %v2490 = vadd.f32 0.0, %v2489
        %2491 = vdwg.mxu0
        %v2492 = vld [vmem:[%s194] sm:$0xff]
        %v2493 = vld [vmem:[%s194 + $0x8] sm:$0xff]
        %v2494 = vld [vmem:[%s194 + $0x10] sm:$0xff]
        %v2495 = vld [vmem:[%s194 + $0x18] sm:$0xff]
        %v2496 = vld [vmem:[%s194 + $0x20] sm:$0xff]
        %v2497 = vld [vmem:[%s194 + $0x28] sm:$0xff]
        %v2498 = vld [vmem:[%s194 + $0x30] sm:$0xff]
        %v2499 = vld [vmem:[%s194 + $0x38] sm:$0xff]
        %v2500 = vld [vmem:[%s194 + $0x40] sm:$0xff]
        %v2501 = vld [vmem:[%s194 + $0x48] sm:$0xff]
        %v2502 = vld [vmem:[%s194 + $0x50] sm:$0xff]
        %v2503 = vld [vmem:[%s194 + $0x58] sm:$0xff]
        %v2504 = vld [vmem:[%s194 + $0x60] sm:$0xff]
        %v2505 = vld [vmem:[%s194 + $0x68] sm:$0xff]
        %v2506 = vld [vmem:[%s194 + $0x70] sm:$0xff]
        %v2507 = vld [vmem:[%s194 + $0x78] sm:$0xff]
        %v2508 = vld [vmem:[%s194 + $0x80] sm:$0xff]
        %v2509 = vld [vmem:[%s194 + $0x88] sm:$0xff]
        %v2510 = vld [vmem:[%s194 + $0x90] sm:$0xff]
        %v2511 = vld [vmem:[%s194 + $0x98] sm:$0xff]
        %v2512 = vld [vmem:[%s194 + $0xa0] sm:$0xff]
        %v2513 = vld [vmem:[%s194 + $0xa8] sm:$0xff]
        %v2514 = vld [vmem:[%s194 + $0xb0] sm:$0xff]
        %v2515 = vld [vmem:[%s194 + $0xb8] sm:$0xff]
        %v2516 = vld [vmem:[%s194 + $0xc0] sm:$0xff]
        %v2517 = vld [vmem:[%s194 + $0xc8] sm:$0xff]
        %v2518 = vld [vmem:[%s194 + $0xd0] sm:$0xff]
        %v2519 = vld [vmem:[%s194 + $0xd8] sm:$0xff]
        %v2520 = vld [vmem:[%s194 + $0xe0] sm:$0xff]
        %v2521 = vld [vmem:[%s194 + $0xe8] sm:$0xff]
        %v2522 = vld [vmem:[%s194 + $0xf0] sm:$0xff]
        %v2523 = vld [vmem:[%s194 + $0xf8] sm:$0xff]
        %v2524 = vld [vmem:[%s194 + $0x100] sm:$0xff]
        %v2525 = vld [vmem:[%s194 + $0x108] sm:$0xff]
        %v2526 = vld [vmem:[%s194 + $0x110] sm:$0xff]
        %v2527 = vld [vmem:[%s194 + $0x118] sm:$0xff]
        %v2528 = vld [vmem:[%s194 + $0x120] sm:$0xff]
        %v2529 = vld [vmem:[%s194 + $0x128] sm:$0xff]
        %v2530 = vld [vmem:[%s194 + $0x130] sm:$0xff]
        %v2531 = vld [vmem:[%s194 + $0x138] sm:$0xff]
        %v2532 = vld [vmem:[%s194 + $0x140] sm:$0xff]
        %v2533 = vld [vmem:[%s194 + $0x148] sm:$0xff]
        %v2534 = vld [vmem:[%s194 + $0x150] sm:$0xff]
        %v2535 = vld [vmem:[%s194 + $0x158] sm:$0xff]
        %v2536 = vld [vmem:[%s194 + $0x160] sm:$0xff]
        %v2537 = vld [vmem:[%s194 + $0x168] sm:$0xff]
        %v2538 = vld [vmem:[%s194 + $0x170] sm:$0xff]
        %v2539 = vld [vmem:[%s194 + $0x178] sm:$0xff]
        %v2540 = vld [vmem:[%s194 + $0x180] sm:$0xff]
        %v2541 = vld [vmem:[%s194 + $0x188] sm:$0xff]
        %v2542 = vld [vmem:[%s194 + $0x190] sm:$0xff]
        %v2543 = vld [vmem:[%s194 + $0x198] sm:$0xff]
        %v2544 = vld [vmem:[%s194 + $0x1a0] sm:$0xff]
        %v2545 = vld [vmem:[%s194 + $0x1a8] sm:$0xff]
        %v2546 = vld [vmem:[%s194 + $0x1b0] sm:$0xff]
        %v2547 = vld [vmem:[%s194 + $0x1b8] sm:$0xff]
        %v2548 = vld [vmem:[%s194 + $0x1c0] sm:$0xff]
        %v2549 = vld [vmem:[%s194 + $0x1c8] sm:$0xff]
        %v2550 = vld [vmem:[%s194 + $0x1d0] sm:$0xff]
        %v2551 = vld [vmem:[%s194 + $0x1d8] sm:$0xff]
        %v2552 = vld [vmem:[%s194 + $0x1e0] sm:$0xff]
        %v2553 = vld [vmem:[%s194 + $0x1e8] sm:$0xff]
        %v2554 = vld [vmem:[%s194 + $0x1f0] sm:$0xff]
        %v2555 = vld [vmem:[%s194 + $0x1f8] sm:$0xff]
        %2557 = vset.pattern.permute.xlu0 0
        %2558 = vperm.xlu0 %2557, %v2492
        %v2559 = vpop.permute.xlu0 %2558
        %2562 = vset.pattern.permute.xlu0 0
        %2563 = vperm.xlu0 %2562, %v2493
        %v2564 = vpop.permute.xlu0 %2563
        %2567 = vset.pattern.permute.xlu0 0
        %2568 = vperm.xlu0 %2567, %v2494
        %v2569 = vpop.permute.xlu0 %2568
        %2572 = vset.pattern.permute.xlu0 0
        %2573 = vperm.xlu0 %2572, %v2495
        %v2574 = vpop.permute.xlu0 %2573
        %2577 = vset.pattern.permute.xlu0 0
        %2578 = vperm.xlu0 %2577, %v2496
        %v2579 = vpop.permute.xlu0 %2578
        %2582 = vset.pattern.permute.xlu0 0
        %2583 = vperm.xlu0 %2582, %v2497
        %v2584 = vpop.permute.xlu0 %2583
        %2587 = vset.pattern.permute.xlu0 0
        %2588 = vperm.xlu0 %2587, %v2498
        %v2589 = vpop.permute.xlu0 %2588
        %2592 = vset.pattern.permute.xlu0 0
        %2593 = vperm.xlu0 %2592, %v2499
        %v2594 = vpop.permute.xlu0 %2593
        %2597 = vset.pattern.permute.xlu0 0
        %2598 = vperm.xlu0 %2597, %v2500
        %v2599 = vpop.permute.xlu0 %2598
        %2602 = vset.pattern.permute.xlu0 0
        %2603 = vperm.xlu0 %2602, %v2501
        %v2604 = vpop.permute.xlu0 %2603
        %2607 = vset.pattern.permute.xlu0 0
        %2608 = vperm.xlu0 %2607, %v2502
        %v2609 = vpop.permute.xlu0 %2608
        %2612 = vset.pattern.permute.xlu0 0
        %2613 = vperm.xlu0 %2612, %v2503
        %v2614 = vpop.permute.xlu0 %2613
        %2617 = vset.pattern.permute.xlu0 0
        %2618 = vperm.xlu0 %2617, %v2504
        %v2619 = vpop.permute.xlu0 %2618
        %2622 = vset.pattern.permute.xlu0 0
        %2623 = vperm.xlu0 %2622, %v2505
        %v2624 = vpop.permute.xlu0 %2623
        %2627 = vset.pattern.permute.xlu0 0
        %2628 = vperm.xlu0 %2627, %v2506
        %v2629 = vpop.permute.xlu0 %2628
        %2632 = vset.pattern.permute.xlu0 0
        %2633 = vperm.xlu0 %2632, %v2507
        %v2634 = vpop.permute.xlu0 %2633
        %2637 = vset.pattern.permute.xlu0 0
        %2638 = vperm.xlu0 %2637, %v2508
        %v2639 = vpop.permute.xlu0 %2638
        %2642 = vset.pattern.permute.xlu0 0
        %2643 = vperm.xlu0 %2642, %v2509
        %v2644 = vpop.permute.xlu0 %2643
        %2647 = vset.pattern.permute.xlu0 0
        %2648 = vperm.xlu0 %2647, %v2510
        %v2649 = vpop.permute.xlu0 %2648
        %2652 = vset.pattern.permute.xlu0 0
        %2653 = vperm.xlu0 %2652, %v2511
        %v2654 = vpop.permute.xlu0 %2653
        %2657 = vset.pattern.permute.xlu0 0
        %2658 = vperm.xlu0 %2657, %v2512
        %v2659 = vpop.permute.xlu0 %2658
        %2662 = vset.pattern.permute.xlu0 0
        %2663 = vperm.xlu0 %2662, %v2513
        %v2664 = vpop.permute.xlu0 %2663
        %2667 = vset.pattern.permute.xlu0 0
        %2668 = vperm.xlu0 %2667, %v2514
        %v2669 = vpop.permute.xlu0 %2668
        %2672 = vset.pattern.permute.xlu0 0
        %2673 = vperm.xlu0 %2672, %v2515
        %v2674 = vpop.permute.xlu0 %2673
        %2677 = vset.pattern.permute.xlu0 0
        %2678 = vperm.xlu0 %2677, %v2516
        %v2679 = vpop.permute.xlu0 %2678
        %2682 = vset.pattern.permute.xlu0 0
        %2683 = vperm.xlu0 %2682, %v2517
        %v2684 = vpop.permute.xlu0 %2683
        %2687 = vset.pattern.permute.xlu0 0
        %2688 = vperm.xlu0 %2687, %v2518
        %v2689 = vpop.permute.xlu0 %2688
        %2692 = vset.pattern.permute.xlu0 0
        %2693 = vperm.xlu0 %2692, %v2519
        %v2694 = vpop.permute.xlu0 %2693
        %2697 = vset.pattern.permute.xlu0 0
        %2698 = vperm.xlu0 %2697, %v2520
        %v2699 = vpop.permute.xlu0 %2698
        %2702 = vset.pattern.permute.xlu0 0
        %2703 = vperm.xlu0 %2702, %v2521
        %v2704 = vpop.permute.xlu0 %2703
        %2707 = vset.pattern.permute.xlu0 0
        %2708 = vperm.xlu0 %2707, %v2522
        %v2709 = vpop.permute.xlu0 %2708
        %2712 = vset.pattern.permute.xlu0 0
        %2713 = vperm.xlu0 %2712, %v2523
        %v2714 = vpop.permute.xlu0 %2713
        %2717 = vset.pattern.permute.xlu0 0
        %2718 = vperm.xlu0 %2717, %v2524
        %v2719 = vpop.permute.xlu0 %2718
        %2722 = vset.pattern.permute.xlu0 0
        %2723 = vperm.xlu0 %2722, %v2525
        %v2724 = vpop.permute.xlu0 %2723
        %2727 = vset.pattern.permute.xlu0 0
        %2728 = vperm.xlu0 %2727, %v2526
        %v2729 = vpop.permute.xlu0 %2728
        %2732 = vset.pattern.permute.xlu0 0
        %2733 = vperm.xlu0 %2732, %v2527
        %v2734 = vpop.permute.xlu0 %2733
        %2737 = vset.pattern.permute.xlu0 0
        %2738 = vperm.xlu0 %2737, %v2528
        %v2739 = vpop.permute.xlu0 %2738
        %2742 = vset.pattern.permute.xlu0 0
        %2743 = vperm.xlu0 %2742, %v2529
        %v2744 = vpop.permute.xlu0 %2743
        %2747 = vset.pattern.permute.xlu0 0
        %2748 = vperm.xlu0 %2747, %v2530
        %v2749 = vpop.permute.xlu0 %2748
        %2752 = vset.pattern.permute.xlu0 0
        %2753 = vperm.xlu0 %2752, %v2531
        %v2754 = vpop.permute.xlu0 %2753
        %2757 = vset.pattern.permute.xlu0 0
        %2758 = vperm.xlu0 %2757, %v2532
        %v2759 = vpop.permute.xlu0 %2758
        %2762 = vset.pattern.permute.xlu0 0
        %2763 = vperm.xlu0 %2762, %v2533
        %v2764 = vpop.permute.xlu0 %2763
        %2767 = vset.pattern.permute.xlu0 0
        %2768 = vperm.xlu0 %2767, %v2534
        %v2769 = vpop.permute.xlu0 %2768
        %2772 = vset.pattern.permute.xlu0 0
        %2773 = vperm.xlu0 %2772, %v2535
        %v2774 = vpop.permute.xlu0 %2773
        %2777 = vset.pattern.permute.xlu0 0
        %2778 = vperm.xlu0 %2777, %v2536
        %v2779 = vpop.permute.xlu0 %2778
        %2782 = vset.pattern.permute.xlu0 0
        %2783 = vperm.xlu0 %2782, %v2537
        %v2784 = vpop.permute.xlu0 %2783
        %2787 = vset.pattern.permute.xlu0 0
        %2788 = vperm.xlu0 %2787, %v2538
        %v2789 = vpop.permute.xlu0 %2788
        %2792 = vset.pattern.permute.xlu0 0
        %2793 = vperm.xlu0 %2792, %v2539
        %v2794 = vpop.permute.xlu0 %2793
        %2797 = vset.pattern.permute.xlu0 0
        %2798 = vperm.xlu0 %2797, %v2540
        %v2799 = vpop.permute.xlu0 %2798
        %2802 = vset.pattern.permute.xlu0 0
        %2803 = vperm.xlu0 %2802, %v2541
        %v2804 = vpop.permute.xlu0 %2803
        %2807 = vset.pattern.permute.xlu0 0
        %2808 = vperm.xlu0 %2807, %v2542
        %v2809 = vpop.permute.xlu0 %2808
        %2812 = vset.pattern.permute.xlu0 0
        %2813 = vperm.xlu0 %2812, %v2543
        %v2814 = vpop.permute.xlu0 %2813
        %2817 = vset.pattern.permute.xlu0 0
        %2818 = vperm.xlu0 %2817, %v2544
        %v2819 = vpop.permute.xlu0 %2818
        %2822 = vset.pattern.permute.xlu0 0
        %2823 = vperm.xlu0 %2822, %v2545
        %v2824 = vpop.permute.xlu0 %2823
        %2827 = vset.pattern.permute.xlu0 0
        %2828 = vperm.xlu0 %2827, %v2546
        %v2829 = vpop.permute.xlu0 %2828
        %2832 = vset.pattern.permute.xlu0 0
        %2833 = vperm.xlu0 %2832, %v2547
        %v2834 = vpop.permute.xlu0 %2833
        %2837 = vset.pattern.permute.xlu0 0
        %2838 = vperm.xlu0 %2837, %v2548
        %v2839 = vpop.permute.xlu0 %2838
        %2842 = vset.pattern.permute.xlu0 0
        %2843 = vperm.xlu0 %2842, %v2549
        %v2844 = vpop.permute.xlu0 %2843
        %2847 = vset.pattern.permute.xlu0 0
        %2848 = vperm.xlu0 %2847, %v2550
        %v2849 = vpop.permute.xlu0 %2848
        %2852 = vset.pattern.permute.xlu0 0
        %2853 = vperm.xlu0 %2852, %v2551
        %v2854 = vpop.permute.xlu0 %2853
        %2857 = vset.pattern.permute.xlu0 0
        %2858 = vperm.xlu0 %2857, %v2552
        %v2859 = vpop.permute.xlu0 %2858
        %2862 = vset.pattern.permute.xlu0 0
        %2863 = vperm.xlu0 %2862, %v2553
        %v2864 = vpop.permute.xlu0 %2863
        %2867 = vset.pattern.permute.xlu0 0
        %2868 = vperm.xlu0 %2867, %v2554
        %v2869 = vpop.permute.xlu0 %2868
        %2872 = vset.pattern.permute.xlu0 0
        %2873 = vperm.xlu0 %2872, %v2555
        %v2874 = vpop.permute.xlu0 %2873
        %v2876 = vmul.f32 %v2559, %v1115
        %v2877 = vmul.f32 %v2564, %v1119
        %v2878 = vmul.f32 %v2569, %v1125
        %v2879 = vmul.f32 %v2574, %v1129
        %v2880 = vmul.f32 %v2579, %v1135
        %v2881 = vmul.f32 %v2584, %v1139
        %v2882 = vmul.f32 %v2589, %v1145
        %v2883 = vmul.f32 %v2594, %v1149
        %v2884 = vmul.f32 %v2599, %v1155
        %v2885 = vmul.f32 %v2604, %v1159
        %v2886 = vmul.f32 %v2609, %v1165
        %v2887 = vmul.f32 %v2614, %v1169
        %v2888 = vmul.f32 %v2619, %v1175
        %v2889 = vmul.f32 %v2624, %v1179
        %v2890 = vmul.f32 %v2629, %v1185
        %v2891 = vmul.f32 %v2634, %v1189
        %v2892 = vmul.f32 %v2639, %v1195
        %v2893 = vmul.f32 %v2644, %v1199
        %v2894 = vmul.f32 %v2649, %v1205
        %v2895 = vmul.f32 %v2654, %v1209
        %v2896 = vmul.f32 %v2659, %v1215
        %v2897 = vmul.f32 %v2664, %v1219
        %v2898 = vmul.f32 %v2669, %v1225
        %v2899 = vmul.f32 %v2674, %v1229
        %v2900 = vmul.f32 %v2679, %v1235
        %v2901 = vmul.f32 %v2684, %v1239
        %v2902 = vmul.f32 %v2689, %v1245
        %v2903 = vmul.f32 %v2694, %v1249
        %v2904 = vmul.f32 %v2699, %v1255
        %v2905 = vmul.f32 %v2704, %v1259
        %v2906 = vmul.f32 %v2709, %v1265
        %v2907 = vmul.f32 %v2714, %v1269
        %v2908 = vmul.f32 %v2719, %v1275
        %v2909 = vmul.f32 %v2724, %v1279
        %v2910 = vmul.f32 %v2729, %v1285
        %v2911 = vmul.f32 %v2734, %v1289
        %v2912 = vmul.f32 %v2739, %v1295
        %v2913 = vmul.f32 %v2744, %v1299
        %v2914 = vmul.f32 %v2749, %v1305
        %v2915 = vmul.f32 %v2754, %v1309
        %v2916 = vmul.f32 %v2759, %v1315
        %v2917 = vmul.f32 %v2764, %v1319
        %v2918 = vmul.f32 %v2769, %v1325
        %v2919 = vmul.f32 %v2774, %v1329
        %v2920 = vmul.f32 %v2779, %v1335
        %v2921 = vmul.f32 %v2784, %v1339
        %v2922 = vmul.f32 %v2789, %v1345
        %v2923 = vmul.f32 %v2794, %v1349
        %v2924 = vmul.f32 %v2799, %v1355
        %v2925 = vmul.f32 %v2804, %v1359
        %v2926 = vmul.f32 %v2809, %v1365
        %v2927 = vmul.f32 %v2814, %v1369
        %v2928 = vmul.f32 %v2819, %v1375
        %v2929 = vmul.f32 %v2824, %v1379
        %v2930 = vmul.f32 %v2829, %v1385
        %v2931 = vmul.f32 %v2834, %v1389
        %v2932 = vmul.f32 %v2839, %v1395
        %v2933 = vmul.f32 %v2844, %v1399
        %v2934 = vmul.f32 %v2849, %v1405
        %v2935 = vmul.f32 %v2854, %v1409
        %v2936 = vmul.f32 %v2859, %v1415
        %v2937 = vmul.f32 %v2864, %v1419
        %v2938 = vmul.f32 %v2869, %v1425
        %v2939 = vmul.f32 %v2874, %v1429
        %2940 = vset.pattern.permute.xlu0 1
        %2941 = vperm.xlu0 %2940, %v2492
        %v2942 = vpop.permute.xlu0 %2941
        %2944 = vset.pattern.permute.xlu0 1
        %2945 = vperm.xlu0 %2944, %v2493
        %v2946 = vpop.permute.xlu0 %2945
        %2948 = vset.pattern.permute.xlu0 1
        %2949 = vperm.xlu0 %2948, %v2494
        %v2950 = vpop.permute.xlu0 %2949
        %2952 = vset.pattern.permute.xlu0 1
        %2953 = vperm.xlu0 %2952, %v2495
        %v2954 = vpop.permute.xlu0 %2953
        %2956 = vset.pattern.permute.xlu0 1
        %2957 = vperm.xlu0 %2956, %v2496
        %v2958 = vpop.permute.xlu0 %2957
        %2960 = vset.pattern.permute.xlu0 1
        %2961 = vperm.xlu0 %2960, %v2497
        %v2962 = vpop.permute.xlu0 %2961
        %2964 = vset.pattern.permute.xlu0 1
        %2965 = vperm.xlu0 %2964, %v2498
        %v2966 = vpop.permute.xlu0 %2965
        %2968 = vset.pattern.permute.xlu0 1
        %2969 = vperm.xlu0 %2968, %v2499
        %v2970 = vpop.permute.xlu0 %2969
        %2972 = vset.pattern.permute.xlu0 1
        %2973 = vperm.xlu0 %2972, %v2500
        %v2974 = vpop.permute.xlu0 %2973
        %2976 = vset.pattern.permute.xlu0 1
        %2977 = vperm.xlu0 %2976, %v2501
        %v2978 = vpop.permute.xlu0 %2977
        %2980 = vset.pattern.permute.xlu0 1
        %2981 = vperm.xlu0 %2980, %v2502
        %v2982 = vpop.permute.xlu0 %2981
        %2984 = vset.pattern.permute.xlu0 1
        %2985 = vperm.xlu0 %2984, %v2503
        %v2986 = vpop.permute.xlu0 %2985
        %2988 = vset.pattern.permute.xlu0 1
        %2989 = vperm.xlu0 %2988, %v2504
        %v2990 = vpop.permute.xlu0 %2989
        %2992 = vset.pattern.permute.xlu0 1
        %2993 = vperm.xlu0 %2992, %v2505
        %v2994 = vpop.permute.xlu0 %2993
        %2996 = vset.pattern.permute.xlu0 1
        %2997 = vperm.xlu0 %2996, %v2506
        %v2998 = vpop.permute.xlu0 %2997
        %3000 = vset.pattern.permute.xlu0 1
        %3001 = vperm.xlu0 %3000, %v2507
        %v3002 = vpop.permute.xlu0 %3001
        %3004 = vset.pattern.permute.xlu0 1
        %3005 = vperm.xlu0 %3004, %v2508
        %v3006 = vpop.permute.xlu0 %3005
        %3008 = vset.pattern.permute.xlu0 1
        %3009 = vperm.xlu0 %3008, %v2509
        %v3010 = vpop.permute.xlu0 %3009
        %3012 = vset.pattern.permute.xlu0 1
        %3013 = vperm.xlu0 %3012, %v2510
        %v3014 = vpop.permute.xlu0 %3013
        %3016 = vset.pattern.permute.xlu0 1
        %3017 = vperm.xlu0 %3016, %v2511
        %v3018 = vpop.permute.xlu0 %3017
        %3020 = vset.pattern.permute.xlu0 1
        %3021 = vperm.xlu0 %3020, %v2512
        %v3022 = vpop.permute.xlu0 %3021
        %3024 = vset.pattern.permute.xlu0 1
        %3025 = vperm.xlu0 %3024, %v2513
        %v3026 = vpop.permute.xlu0 %3025
        %3028 = vset.pattern.permute.xlu0 1
        %3029 = vperm.xlu0 %3028, %v2514
        %v3030 = vpop.permute.xlu0 %3029
        %3032 = vset.pattern.permute.xlu0 1
        %3033 = vperm.xlu0 %3032, %v2515
        %v3034 = vpop.permute.xlu0 %3033
        %3036 = vset.pattern.permute.xlu0 1
        %3037 = vperm.xlu0 %3036, %v2516
        %v3038 = vpop.permute.xlu0 %3037
        %3040 = vset.pattern.permute.xlu0 1
        %3041 = vperm.xlu0 %3040, %v2517
        %v3042 = vpop.permute.xlu0 %3041
        %3044 = vset.pattern.permute.xlu0 1
        %3045 = vperm.xlu0 %3044, %v2518
        %v3046 = vpop.permute.xlu0 %3045
        %3048 = vset.pattern.permute.xlu0 1
        %3049 = vperm.xlu0 %3048, %v2519
        %v3050 = vpop.permute.xlu0 %3049
        %3052 = vset.pattern.permute.xlu0 1
        %3053 = vperm.xlu0 %3052, %v2520
        %v3054 = vpop.permute.xlu0 %3053
        %3056 = vset.pattern.permute.xlu0 1
        %3057 = vperm.xlu0 %3056, %v2521
        %v3058 = vpop.permute.xlu0 %3057
        %3060 = vset.pattern.permute.xlu0 1
        %3061 = vperm.xlu0 %3060, %v2522
        %v3062 = vpop.permute.xlu0 %3061
        %3064 = vset.pattern.permute.xlu0 1
        %3065 = vperm.xlu0 %3064, %v2523
        %v3066 = vpop.permute.xlu0 %3065
        %3068 = vset.pattern.permute.xlu0 1
        %3069 = vperm.xlu0 %3068, %v2524
        %v3070 = vpop.permute.xlu0 %3069
        %3072 = vset.pattern.permute.xlu0 1
        %3073 = vperm.xlu0 %3072, %v2525
        %v3074 = vpop.permute.xlu0 %3073
        %3076 = vset.pattern.permute.xlu0 1
        %3077 = vperm.xlu0 %3076, %v2526
        %v3078 = vpop.permute.xlu0 %3077
        %3080 = vset.pattern.permute.xlu0 1
        %3081 = vperm.xlu0 %3080, %v2527
        %v3082 = vpop.permute.xlu0 %3081
        %3084 = vset.pattern.permute.xlu0 1
        %3085 = vperm.xlu0 %3084, %v2528
        %v3086 = vpop.permute.xlu0 %3085
        %3088 = vset.pattern.permute.xlu0 1
        %3089 = vperm.xlu0 %3088, %v2529
        %v3090 = vpop.permute.xlu0 %3089
        %3092 = vset.pattern.permute.xlu0 1
        %3093 = vperm.xlu0 %3092, %v2530
        %v3094 = vpop.permute.xlu0 %3093
        %3096 = vset.pattern.permute.xlu0 1
        %3097 = vperm.xlu0 %3096, %v2531
        %v3098 = vpop.permute.xlu0 %3097
        %3100 = vset.pattern.permute.xlu0 1
        %3101 = vperm.xlu0 %3100, %v2532
        %v3102 = vpop.permute.xlu0 %3101
        %3104 = vset.pattern.permute.xlu0 1
        %3105 = vperm.xlu0 %3104, %v2533
        %v3106 = vpop.permute.xlu0 %3105
        %3108 = vset.pattern.permute.xlu0 1
        %3109 = vperm.xlu0 %3108, %v2534
        %v3110 = vpop.permute.xlu0 %3109
        %3112 = vset.pattern.permute.xlu0 1
        %3113 = vperm.xlu0 %3112, %v2535
        %v3114 = vpop.permute.xlu0 %3113
        %3116 = vset.pattern.permute.xlu0 1
        %3117 = vperm.xlu0 %3116, %v2536
        %v3118 = vpop.permute.xlu0 %3117
        %3120 = vset.pattern.permute.xlu0 1
        %3121 = vperm.xlu0 %3120, %v2537
        %v3122 = vpop.permute.xlu0 %3121
        %3124 = vset.pattern.permute.xlu0 1
        %3125 = vperm.xlu0 %3124, %v2538
        %v3126 = vpop.permute.xlu0 %3125
        %3128 = vset.pattern.permute.xlu0 1
        %3129 = vperm.xlu0 %3128, %v2539
        %v3130 = vpop.permute.xlu0 %3129
        %3132 = vset.pattern.permute.xlu0 1
        %3133 = vperm.xlu0 %3132, %v2540
        %v3134 = vpop.permute.xlu0 %3133
        %3136 = vset.pattern.permute.xlu0 1
        %3137 = vperm.xlu0 %3136, %v2541
        %v3138 = vpop.permute.xlu0 %3137
        %3140 = vset.pattern.permute.xlu0 1
        %3141 = vperm.xlu0 %3140, %v2542
        %v3142 = vpop.permute.xlu0 %3141
        %3144 = vset.pattern.permute.xlu0 1
        %3145 = vperm.xlu0 %3144, %v2543
        %v3146 = vpop.permute.xlu0 %3145
        %3148 = vset.pattern.permute.xlu0 1
        %3149 = vperm.xlu0 %3148, %v2544
        %v3150 = vpop.permute.xlu0 %3149
        %3152 = vset.pattern.permute.xlu0 1
        %3153 = vperm.xlu0 %3152, %v2545
        %v3154 = vpop.permute.xlu0 %3153
        %3156 = vset.pattern.permute.xlu0 1
        %3157 = vperm.xlu0 %3156, %v2546
        %v3158 = vpop.permute.xlu0 %3157
        %3160 = vset.pattern.permute.xlu0 1
        %3161 = vperm.xlu0 %3160, %v2547
        %v3162 = vpop.permute.xlu0 %3161
        %3164 = vset.pattern.permute.xlu0 1
        %3165 = vperm.xlu0 %3164, %v2548
        %v3166 = vpop.permute.xlu0 %3165
        %3168 = vset.pattern.permute.xlu0 1
        %3169 = vperm.xlu0 %3168, %v2549
        %v3170 = vpop.permute.xlu0 %3169
        %3172 = vset.pattern.permute.xlu0 1
        %3173 = vperm.xlu0 %3172, %v2550
        %v3174 = vpop.permute.xlu0 %3173
        %3176 = vset.pattern.permute.xlu0 1
        %3177 = vperm.xlu0 %3176, %v2551
        %v3178 = vpop.permute.xlu0 %3177
        %3180 = vset.pattern.permute.xlu0 1
        %3181 = vperm.xlu0 %3180, %v2552
        %v3182 = vpop.permute.xlu0 %3181
        %3184 = vset.pattern.permute.xlu0 1
        %3185 = vperm.xlu0 %3184, %v2553
        %v3186 = vpop.permute.xlu0 %3185
        %3188 = vset.pattern.permute.xlu0 1
        %3189 = vperm.xlu0 %3188, %v2554
        %v3190 = vpop.permute.xlu0 %3189
        %3192 = vset.pattern.permute.xlu0 1
        %3193 = vperm.xlu0 %3192, %v2555
        %v3194 = vpop.permute.xlu0 %3193
        %v3196 = vmul.f32 %v2942, %v1117
        %v3197 = vmul.f32 %v2946, %v1121
        %v3198 = vmul.f32 %v2950, %v1127
        %v3199 = vmul.f32 %v2954, %v1131
        %v3200 = vmul.f32 %v2958, %v1137
        %v3201 = vmul.f32 %v2962, %v1141
        %v3202 = vmul.f32 %v2966, %v1147
        %v3203 = vmul.f32 %v2970, %v1151
        %v3204 = vmul.f32 %v2974, %v1157
        %v3205 = vmul.f32 %v2978, %v1161
        %v3206 = vmul.f32 %v2982, %v1167
        %v3207 = vmul.f32 %v2986, %v1171
        %v3208 = vmul.f32 %v2990, %v1177
        %v3209 = vmul.f32 %v2994, %v1181
        %v3210 = vmul.f32 %v2998, %v1187
        %v3211 = vmul.f32 %v3002, %v1191
        %v3212 = vmul.f32 %v3006, %v1197
        %v3213 = vmul.f32 %v3010, %v1201
        %v3214 = vmul.f32 %v3014, %v1207
        %v3215 = vmul.f32 %v3018, %v1211
        %v3216 = vmul.f32 %v3022, %v1217
        %v3217 = vmul.f32 %v3026, %v1221
        %v3218 = vmul.f32 %v3030, %v1227
        %v3219 = vmul.f32 %v3034, %v1231
        %v3220 = vmul.f32 %v3038, %v1237
        %v3221 = vmul.f32 %v3042, %v1241
        %v3222 = vmul.f32 %v3046, %v1247
        %v3223 = vmul.f32 %v3050, %v1251
        %v3224 = vmul.f32 %v3054, %v1257
        %v3225 = vmul.f32 %v3058, %v1261
        %v3226 = vmul.f32 %v3062, %v1267
        %v3227 = vmul.f32 %v3066, %v1271
        %v3228 = vmul.f32 %v3070, %v1277
        %v3229 = vmul.f32 %v3074, %v1281
        %v3230 = vmul.f32 %v3078, %v1287
        %v3231 = vmul.f32 %v3082, %v1291
        %v3232 = vmul.f32 %v3086, %v1297
        %v3233 = vmul.f32 %v3090, %v1301
        %v3234 = vmul.f32 %v3094, %v1307
        %v3235 = vmul.f32 %v3098, %v1311
        %v3236 = vmul.f32 %v3102, %v1317
        %v3237 = vmul.f32 %v3106, %v1321
        %v3238 = vmul.f32 %v3110, %v1327
        %v3239 = vmul.f32 %v3114, %v1331
        %v3240 = vmul.f32 %v3118, %v1337
        %v3241 = vmul.f32 %v3122, %v1341
        %v3242 = vmul.f32 %v3126, %v1347
        %v3243 = vmul.f32 %v3130, %v1351
        %v3244 = vmul.f32 %v3134, %v1357
        %v3245 = vmul.f32 %v3138, %v1361
        %v3246 = vmul.f32 %v3142, %v1367
        %v3247 = vmul.f32 %v3146, %v1371
        %v3248 = vmul.f32 %v3150, %v1377
        %v3249 = vmul.f32 %v3154, %v1381
        %v3250 = vmul.f32 %v3158, %v1387
        %v3251 = vmul.f32 %v3162, %v1391
        %v3252 = vmul.f32 %v3166, %v1397
        %v3253 = vmul.f32 %v3170, %v1401
        %v3254 = vmul.f32 %v3174, %v1407
        %v3255 = vmul.f32 %v3178, %v1411
        %v3256 = vmul.f32 %v3182, %v1417
        %v3257 = vmul.f32 %v3186, %v1421
        %v3258 = vmul.f32 %v3190, %v1427
        %v3259 = vmul.f32 %v3194, %v1431
        %v3260 = vadd.f32 %v2876, %v3196
        %v3261 = vadd.f32 %v2877, %v3197
        %v3262 = vadd.f32 %v2878, %v3198
        %v3263 = vadd.f32 %v2879, %v3199
        %v3264 = vadd.f32 %v2880, %v3200
        %v3265 = vadd.f32 %v2881, %v3201
        %v3266 = vadd.f32 %v2882, %v3202
        %v3267 = vadd.f32 %v2883, %v3203
        %v3268 = vadd.f32 %v2884, %v3204
        %v3269 = vadd.f32 %v2885, %v3205
        %v3270 = vadd.f32 %v2886, %v3206
        %v3271 = vadd.f32 %v2887, %v3207
        %v3272 = vadd.f32 %v2888, %v3208
        %v3273 = vadd.f32 %v2889, %v3209
        %v3274 = vadd.f32 %v2890, %v3210
        %v3275 = vadd.f32 %v2891, %v3211
        %v3276 = vadd.f32 %v2892, %v3212
        %v3277 = vadd.f32 %v2893, %v3213
        %v3278 = vadd.f32 %v2894, %v3214
        %v3279 = vadd.f32 %v2895, %v3215
        %v3280 = vadd.f32 %v2896, %v3216
        %v3281 = vadd.f32 %v2897, %v3217
        %v3282 = vadd.f32 %v2898, %v3218
        %v3283 = vadd.f32 %v2899, %v3219
        %v3284 = vadd.f32 %v2900, %v3220
        %v3285 = vadd.f32 %v2901, %v3221
        %v3286 = vadd.f32 %v2902, %v3222
        %v3287 = vadd.f32 %v2903, %v3223
        %v3288 = vadd.f32 %v2904, %v3224
        %v3289 = vadd.f32 %v2905, %v3225
        %v3290 = vadd.f32 %v2906, %v3226
        %v3291 = vadd.f32 %v2907, %v3227
        %v3292 = vadd.f32 %v2908, %v3228
        %v3293 = vadd.f32 %v2909, %v3229
        %v3294 = vadd.f32 %v2910, %v3230
        %v3295 = vadd.f32 %v2911, %v3231
        %v3296 = vadd.f32 %v2912, %v3232
        %v3297 = vadd.f32 %v2913, %v3233
        %v3298 = vadd.f32 %v2914, %v3234
        %v3299 = vadd.f32 %v2915, %v3235
        %v3300 = vadd.f32 %v2916, %v3236
        %v3301 = vadd.f32 %v2917, %v3237
        %v3302 = vadd.f32 %v2918, %v3238
        %v3303 = vadd.f32 %v2919, %v3239
        %v3304 = vadd.f32 %v2920, %v3240
        %v3305 = vadd.f32 %v2921, %v3241
        %v3306 = vadd.f32 %v2922, %v3242
        %v3307 = vadd.f32 %v2923, %v3243
        %v3308 = vadd.f32 %v2924, %v3244
        %v3309 = vadd.f32 %v2925, %v3245
        %v3310 = vadd.f32 %v2926, %v3246
        %v3311 = vadd.f32 %v2927, %v3247
        %v3312 = vadd.f32 %v2928, %v3248
        %v3313 = vadd.f32 %v2929, %v3249
        %v3314 = vadd.f32 %v2930, %v3250
        %v3315 = vadd.f32 %v2931, %v3251
        %v3316 = vadd.f32 %v2932, %v3252
        %v3317 = vadd.f32 %v2933, %v3253
        %v3318 = vadd.f32 %v2934, %v3254
        %v3319 = vadd.f32 %v2935, %v3255
        %v3320 = vadd.f32 %v2936, %v3256
        %v3321 = vadd.f32 %v2937, %v3257
        %v3322 = vadd.f32 %v2938, %v3258
        %v3323 = vadd.f32 %v2939, %v3259
        %3324 = vset.pattern.permute.xlu0 2
        %3325 = vperm.xlu0 %3324, %v2492
        %v3326 = vpop.permute.xlu0 %3325
        %3328 = vset.pattern.permute.xlu0 2
        %3329 = vperm.xlu0 %3328, %v2493
        %v3330 = vpop.permute.xlu0 %3329
        %3332 = vset.pattern.permute.xlu0 2
        %3333 = vperm.xlu0 %3332, %v2494
        %v3334 = vpop.permute.xlu0 %3333
        %3336 = vset.pattern.permute.xlu0 2
        %3337 = vperm.xlu0 %3336, %v2495
        %v3338 = vpop.permute.xlu0 %3337
        %3340 = vset.pattern.permute.xlu0 2
        %3341 = vperm.xlu0 %3340, %v2496
        %v3342 = vpop.permute.xlu0 %3341
        %3344 = vset.pattern.permute.xlu0 2
        %3345 = vperm.xlu0 %3344, %v2497
        %v3346 = vpop.permute.xlu0 %3345
        %3348 = vset.pattern.permute.xlu0 2
        %3349 = vperm.xlu0 %3348, %v2498
        %v3350 = vpop.permute.xlu0 %3349
        %3352 = vset.pattern.permute.xlu0 2
        %3353 = vperm.xlu0 %3352, %v2499
        %v3354 = vpop.permute.xlu0 %3353
        %3356 = vset.pattern.permute.xlu0 2
        %3357 = vperm.xlu0 %3356, %v2500
        %v3358 = vpop.permute.xlu0 %3357
        %3360 = vset.pattern.permute.xlu0 2
        %3361 = vperm.xlu0 %3360, %v2501
        %v3362 = vpop.permute.xlu0 %3361
        %3364 = vset.pattern.permute.xlu0 2
        %3365 = vperm.xlu0 %3364, %v2502
        %v3366 = vpop.permute.xlu0 %3365
        %3368 = vset.pattern.permute.xlu0 2
        %3369 = vperm.xlu0 %3368, %v2503
        %v3370 = vpop.permute.xlu0 %3369
        %3372 = vset.pattern.permute.xlu0 2
        %3373 = vperm.xlu0 %3372, %v2504
        %v3374 = vpop.permute.xlu0 %3373
        %3376 = vset.pattern.permute.xlu0 2
        %3377 = vperm.xlu0 %3376, %v2505
        %v3378 = vpop.permute.xlu0 %3377
        %3380 = vset.pattern.permute.xlu0 2
        %3381 = vperm.xlu0 %3380, %v2506
        %v3382 = vpop.permute.xlu0 %3381
        %3384 = vset.pattern.permute.xlu0 2
        %3385 = vperm.xlu0 %3384, %v2507
        %v3386 = vpop.permute.xlu0 %3385
        %3388 = vset.pattern.permute.xlu0 2
        %3389 = vperm.xlu0 %3388, %v2508
        %v3390 = vpop.permute.xlu0 %3389
        %3392 = vset.pattern.permute.xlu0 2
        %3393 = vperm.xlu0 %3392, %v2509
        %v3394 = vpop.permute.xlu0 %3393
        %3396 = vset.pattern.permute.xlu0 2
        %3397 = vperm.xlu0 %3396, %v2510
        %v3398 = vpop.permute.xlu0 %3397
        %3400 = vset.pattern.permute.xlu0 2
        %3401 = vperm.xlu0 %3400, %v2511
        %v3402 = vpop.permute.xlu0 %3401
        %3404 = vset.pattern.permute.xlu0 2
        %3405 = vperm.xlu0 %3404, %v2512
        %v3406 = vpop.permute.xlu0 %3405
        %3408 = vset.pattern.permute.xlu0 2
        %3409 = vperm.xlu0 %3408, %v2513
        %v3410 = vpop.permute.xlu0 %3409
        %3412 = vset.pattern.permute.xlu0 2
        %3413 = vperm.xlu0 %3412, %v2514
        %v3414 = vpop.permute.xlu0 %3413
        %3416 = vset.pattern.permute.xlu0 2
        %3417 = vperm.xlu0 %3416, %v2515
        %v3418 = vpop.permute.xlu0 %3417
        %3420 = vset.pattern.permute.xlu0 2
        %3421 = vperm.xlu0 %3420, %v2516
        %v3422 = vpop.permute.xlu0 %3421
        %3424 = vset.pattern.permute.xlu0 2
        %3425 = vperm.xlu0 %3424, %v2517
        %v3426 = vpop.permute.xlu0 %3425
        %3428 = vset.pattern.permute.xlu0 2
        %3429 = vperm.xlu0 %3428, %v2518
        %v3430 = vpop.permute.xlu0 %3429
        %3432 = vset.pattern.permute.xlu0 2
        %3433 = vperm.xlu0 %3432, %v2519
        %v3434 = vpop.permute.xlu0 %3433
        %3436 = vset.pattern.permute.xlu0 2
        %3437 = vperm.xlu0 %3436, %v2520
        %v3438 = vpop.permute.xlu0 %3437
        %3440 = vset.pattern.permute.xlu0 2
        %3441 = vperm.xlu0 %3440, %v2521
        %v3442 = vpop.permute.xlu0 %3441
        %3444 = vset.pattern.permute.xlu0 2
        %3445 = vperm.xlu0 %3444, %v2522
        %v3446 = vpop.permute.xlu0 %3445
        %3448 = vset.pattern.permute.xlu0 2
        %3449 = vperm.xlu0 %3448, %v2523
        %v3450 = vpop.permute.xlu0 %3449
        %3452 = vset.pattern.permute.xlu0 2
        %3453 = vperm.xlu0 %3452, %v2524
        %v3454 = vpop.permute.xlu0 %3453
        %3456 = vset.pattern.permute.xlu0 2
        %3457 = vperm.xlu0 %3456, %v2525
        %v3458 = vpop.permute.xlu0 %3457
        %3460 = vset.pattern.permute.xlu0 2
        %3461 = vperm.xlu0 %3460, %v2526
        %v3462 = vpop.permute.xlu0 %3461
        %3464 = vset.pattern.permute.xlu0 2
        %3465 = vperm.xlu0 %3464, %v2527
        %v3466 = vpop.permute.xlu0 %3465
        %3468 = vset.pattern.permute.xlu0 2
        %3469 = vperm.xlu0 %3468, %v2528
        %v3470 = vpop.permute.xlu0 %3469
        %3472 = vset.pattern.permute.xlu0 2
        %3473 = vperm.xlu0 %3472, %v2529
        %v3474 = vpop.permute.xlu0 %3473
        %3476 = vset.pattern.permute.xlu0 2
        %3477 = vperm.xlu0 %3476, %v2530
        %v3478 = vpop.permute.xlu0 %3477
        %3480 = vset.pattern.permute.xlu0 2
        %3481 = vperm.xlu0 %3480, %v2531
        %v3482 = vpop.permute.xlu0 %3481
        %3484 = vset.pattern.permute.xlu0 2
        %3485 = vperm.xlu0 %3484, %v2532
        %v3486 = vpop.permute.xlu0 %3485
        %3488 = vset.pattern.permute.xlu0 2
        %3489 = vperm.xlu0 %3488, %v2533
        %v3490 = vpop.permute.xlu0 %3489
        %3492 = vset.pattern.permute.xlu0 2
        %3493 = vperm.xlu0 %3492, %v2534
        %v3494 = vpop.permute.xlu0 %3493
        %3496 = vset.pattern.permute.xlu0 2
        %3497 = vperm.xlu0 %3496, %v2535
        %v3498 = vpop.permute.xlu0 %3497
        %3500 = vset.pattern.permute.xlu0 2
        %3501 = vperm.xlu0 %3500, %v2536
        %v3502 = vpop.permute.xlu0 %3501
        %3504 = vset.pattern.permute.xlu0 2
        %3505 = vperm.xlu0 %3504, %v2537
        %v3506 = vpop.permute.xlu0 %3505
        %3508 = vset.pattern.permute.xlu0 2
        %3509 = vperm.xlu0 %3508, %v2538
        %v3510 = vpop.permute.xlu0 %3509
        %3512 = vset.pattern.permute.xlu0 2
        %3513 = vperm.xlu0 %3512, %v2539
        %v3514 = vpop.permute.xlu0 %3513
        %3516 = vset.pattern.permute.xlu0 2
        %3517 = vperm.xlu0 %3516, %v2540
        %v3518 = vpop.permute.xlu0 %3517
        %3520 = vset.pattern.permute.xlu0 2
        %3521 = vperm.xlu0 %3520, %v2541
        %v3522 = vpop.permute.xlu0 %3521
        %3524 = vset.pattern.permute.xlu0 2
        %3525 = vperm.xlu0 %3524, %v2542
        %v3526 = vpop.permute.xlu0 %3525
        %3528 = vset.pattern.permute.xlu0 2
        %3529 = vperm.xlu0 %3528, %v2543
        %v3530 = vpop.permute.xlu0 %3529
        %3532 = vset.pattern.permute.xlu0 2
        %3533 = vperm.xlu0 %3532, %v2544
        %v3534 = vpop.permute.xlu0 %3533
        %3536 = vset.pattern.permute.xlu0 2
        %3537 = vperm.xlu0 %3536, %v2545
        %v3538 = vpop.permute.xlu0 %3537
        %3540 = vset.pattern.permute.xlu0 2
        %3541 = vperm.xlu0 %3540, %v2546
        %v3542 = vpop.permute.xlu0 %3541
        %3544 = vset.pattern.permute.xlu0 2
        %3545 = vperm.xlu0 %3544, %v2547
        %v3546 = vpop.permute.xlu0 %3545
        %3548 = vset.pattern.permute.xlu0 2
        %3549 = vperm.xlu0 %3548, %v2548
        %v3550 = vpop.permute.xlu0 %3549
        %3552 = vset.pattern.permute.xlu0 2
        %3553 = vperm.xlu0 %3552, %v2549
        %v3554 = vpop.permute.xlu0 %3553
        %3556 = vset.pattern.permute.xlu0 2
        %3557 = vperm.xlu0 %3556, %v2550
        %v3558 = vpop.permute.xlu0 %3557
        %3560 = vset.pattern.permute.xlu0 2
        %3561 = vperm.xlu0 %3560, %v2551
        %v3562 = vpop.permute.xlu0 %3561
        %3564 = vset.pattern.permute.xlu0 2
        %3565 = vperm.xlu0 %3564, %v2552
        %v3566 = vpop.permute.xlu0 %3565
        %3568 = vset.pattern.permute.xlu0 2
        %3569 = vperm.xlu0 %3568, %v2553
        %v3570 = vpop.permute.xlu0 %3569
        %3572 = vset.pattern.permute.xlu0 2
        %3573 = vperm.xlu0 %3572, %v2554
        %v3574 = vpop.permute.xlu0 %3573
        %3576 = vset.pattern.permute.xlu0 2
        %3577 = vperm.xlu0 %3576, %v2555
        %v3578 = vpop.permute.xlu0 %3577
        %v3580 = vmul.f32 %v3326, %v1468
        %v3581 = vmul.f32 %v3330, %v1472
        %v3582 = vmul.f32 %v3334, %v1478
        %v3583 = vmul.f32 %v3338, %v1482
        %v3584 = vmul.f32 %v3342, %v1488
        %v3585 = vmul.f32 %v3346, %v1492
        %v3586 = vmul.f32 %v3350, %v1498
        %v3587 = vmul.f32 %v3354, %v1502
        %v3588 = vmul.f32 %v3358, %v1508
        %v3589 = vmul.f32 %v3362, %v1512
        %v3590 = vmul.f32 %v3366, %v1518
        %v3591 = vmul.f32 %v3370, %v1522
        %v3592 = vmul.f32 %v3374, %v1528
        %v3593 = vmul.f32 %v3378, %v1532
        %v3594 = vmul.f32 %v3382, %v1538
        %v3595 = vmul.f32 %v3386, %v1542
        %v3596 = vmul.f32 %v3390, %v1548
        %v3597 = vmul.f32 %v3394, %v1552
        %v3598 = vmul.f32 %v3398, %v1558
        %v3599 = vmul.f32 %v3402, %v1562
        %v3600 = vmul.f32 %v3406, %v1568
        %v3601 = vmul.f32 %v3410, %v1572
        %v3602 = vmul.f32 %v3414, %v1578
        %v3603 = vmul.f32 %v3418, %v1582
        %v3604 = vmul.f32 %v3422, %v1588
        %v3605 = vmul.f32 %v3426, %v1592
        %v3606 = vmul.f32 %v3430, %v1598
        %v3607 = vmul.f32 %v3434, %v1602
        %v3608 = vmul.f32 %v3438, %v1608
        %v3609 = vmul.f32 %v3442, %v1612
        %v3610 = vmul.f32 %v3446, %v1618
        %v3611 = vmul.f32 %v3450, %v1622
        %v3612 = vmul.f32 %v3454, %v1628
        %v3613 = vmul.f32 %v3458, %v1632
        %v3614 = vmul.f32 %v3462, %v1638
        %v3615 = vmul.f32 %v3466, %v1642
        %v3616 = vmul.f32 %v3470, %v1648
        %v3617 = vmul.f32 %v3474, %v1652
        %v3618 = vmul.f32 %v3478, %v1658
        %v3619 = vmul.f32 %v3482, %v1662
        %v3620 = vmul.f32 %v3486, %v1668
        %v3621 = vmul.f32 %v3490, %v1672
        %v3622 = vmul.f32 %v3494, %v1678
        %v3623 = vmul.f32 %v3498, %v1682
        %v3624 = vmul.f32 %v3502, %v1688
        %v3625 = vmul.f32 %v3506, %v1692
        %v3626 = vmul.f32 %v3510, %v1698
        %v3627 = vmul.f32 %v3514, %v1702
        %v3628 = vmul.f32 %v3518, %v1708
        %v3629 = vmul.f32 %v3522, %v1712
        %v3630 = vmul.f32 %v3526, %v1718
        %v3631 = vmul.f32 %v3530, %v1722
        %v3632 = vmul.f32 %v3534, %v1728
        %v3633 = vmul.f32 %v3538, %v1732
        %v3634 = vmul.f32 %v3542, %v1738
        %v3635 = vmul.f32 %v3546, %v1742
        %v3636 = vmul.f32 %v3550, %v1748
        %v3637 = vmul.f32 %v3554, %v1752
        %v3638 = vmul.f32 %v3558, %v1758
        %v3639 = vmul.f32 %v3562, %v1762
        %v3640 = vmul.f32 %v3566, %v1768
        %v3641 = vmul.f32 %v3570, %v1772
        %v3642 = vmul.f32 %v3574, %v1778
        %v3643 = vmul.f32 %v3578, %v1782
        %v3644 = vadd.f32 %v3260, %v3580
        %v3645 = vadd.f32 %v3261, %v3581
        %v3646 = vadd.f32 %v3262, %v3582
        %v3647 = vadd.f32 %v3263, %v3583
        %v3648 = vadd.f32 %v3264, %v3584
        %v3649 = vadd.f32 %v3265, %v3585
        %v3650 = vadd.f32 %v3266, %v3586
        %v3651 = vadd.f32 %v3267, %v3587
        %v3652 = vadd.f32 %v3268, %v3588
        %v3653 = vadd.f32 %v3269, %v3589
        %v3654 = vadd.f32 %v3270, %v3590
        %v3655 = vadd.f32 %v3271, %v3591
        %v3656 = vadd.f32 %v3272, %v3592
        %v3657 = vadd.f32 %v3273, %v3593
        %v3658 = vadd.f32 %v3274, %v3594
        %v3659 = vadd.f32 %v3275, %v3595
        %v3660 = vadd.f32 %v3276, %v3596
        %v3661 = vadd.f32 %v3277, %v3597
        %v3662 = vadd.f32 %v3278, %v3598
        %v3663 = vadd.f32 %v3279, %v3599
        %v3664 = vadd.f32 %v3280, %v3600
        %v3665 = vadd.f32 %v3281, %v3601
        %v3666 = vadd.f32 %v3282, %v3602
        %v3667 = vadd.f32 %v3283, %v3603
        %v3668 = vadd.f32 %v3284, %v3604
        %v3669 = vadd.f32 %v3285, %v3605
        %v3670 = vadd.f32 %v3286, %v3606
        %v3671 = vadd.f32 %v3287, %v3607
        %v3672 = vadd.f32 %v3288, %v3608
        %v3673 = vadd.f32 %v3289, %v3609
        %v3674 = vadd.f32 %v3290, %v3610
        %v3675 = vadd.f32 %v3291, %v3611
        %v3676 = vadd.f32 %v3292, %v3612
        %v3677 = vadd.f32 %v3293, %v3613
        %v3678 = vadd.f32 %v3294, %v3614
        %v3679 = vadd.f32 %v3295, %v3615
        %v3680 = vadd.f32 %v3296, %v3616
        %v3681 = vadd.f32 %v3297, %v3617
        %v3682 = vadd.f32 %v3298, %v3618
        %v3683 = vadd.f32 %v3299, %v3619
        %v3684 = vadd.f32 %v3300, %v3620
        %v3685 = vadd.f32 %v3301, %v3621
        %v3686 = vadd.f32 %v3302, %v3622
        %v3687 = vadd.f32 %v3303, %v3623
        %v3688 = vadd.f32 %v3304, %v3624
        %v3689 = vadd.f32 %v3305, %v3625
        %v3690 = vadd.f32 %v3306, %v3626
        %v3691 = vadd.f32 %v3307, %v3627
        %v3692 = vadd.f32 %v3308, %v3628
        %v3693 = vadd.f32 %v3309, %v3629
        %v3694 = vadd.f32 %v3310, %v3630
        %v3695 = vadd.f32 %v3311, %v3631
        %v3696 = vadd.f32 %v3312, %v3632
        %v3697 = vadd.f32 %v3313, %v3633
        %v3698 = vadd.f32 %v3314, %v3634
        %v3699 = vadd.f32 %v3315, %v3635
        %v3700 = vadd.f32 %v3316, %v3636
        %v3701 = vadd.f32 %v3317, %v3637
        %v3702 = vadd.f32 %v3318, %v3638
        %v3703 = vadd.f32 %v3319, %v3639
        %v3704 = vadd.f32 %v3320, %v3640
        %v3705 = vadd.f32 %v3321, %v3641
        %v3706 = vadd.f32 %v3322, %v3642
        %v3707 = vadd.f32 %v3323, %v3643
        %3708 = vset.pattern.permute.xlu0 3
        %3709 = vperm.xlu0 %3708, %v2492
        %v3710 = vpop.permute.xlu0 %3709
        %3712 = vset.pattern.permute.xlu0 3
        %3713 = vperm.xlu0 %3712, %v2493
        %v3714 = vpop.permute.xlu0 %3713
        %3716 = vset.pattern.permute.xlu0 3
        %3717 = vperm.xlu0 %3716, %v2494
        %v3718 = vpop.permute.xlu0 %3717
        %3720 = vset.pattern.permute.xlu0 3
        %3721 = vperm.xlu0 %3720, %v2495
        %v3722 = vpop.permute.xlu0 %3721
        %3724 = vset.pattern.permute.xlu0 3
        %3725 = vperm.xlu0 %3724, %v2496
        %v3726 = vpop.permute.xlu0 %3725
        %3728 = vset.pattern.permute.xlu0 3
        %3729 = vperm.xlu0 %3728, %v2497
        %v3730 = vpop.permute.xlu0 %3729
        %3732 = vset.pattern.permute.xlu0 3
        %3733 = vperm.xlu0 %3732, %v2498
        %v3734 = vpop.permute.xlu0 %3733
        %3736 = vset.pattern.permute.xlu0 3
        %3737 = vperm.xlu0 %3736, %v2499
        %v3738 = vpop.permute.xlu0 %3737
        %3740 = vset.pattern.permute.xlu0 3
        %3741 = vperm.xlu0 %3740, %v2500
        %v3742 = vpop.permute.xlu0 %3741
        %3744 = vset.pattern.permute.xlu0 3
        %3745 = vperm.xlu0 %3744, %v2501
        %v3746 = vpop.permute.xlu0 %3745
        %3748 = vset.pattern.permute.xlu0 3
        %3749 = vperm.xlu0 %3748, %v2502
        %v3750 = vpop.permute.xlu0 %3749
        %3752 = vset.pattern.permute.xlu0 3
        %3753 = vperm.xlu0 %3752, %v2503
        %v3754 = vpop.permute.xlu0 %3753
        %3756 = vset.pattern.permute.xlu0 3
        %3757 = vperm.xlu0 %3756, %v2504
        %v3758 = vpop.permute.xlu0 %3757
        %3760 = vset.pattern.permute.xlu0 3
        %3761 = vperm.xlu0 %3760, %v2505
        %v3762 = vpop.permute.xlu0 %3761
        %3764 = vset.pattern.permute.xlu0 3
        %3765 = vperm.xlu0 %3764, %v2506
        %v3766 = vpop.permute.xlu0 %3765
        %3768 = vset.pattern.permute.xlu0 3
        %3769 = vperm.xlu0 %3768, %v2507
        %v3770 = vpop.permute.xlu0 %3769
        %3772 = vset.pattern.permute.xlu0 3
        %3773 = vperm.xlu0 %3772, %v2508
        %v3774 = vpop.permute.xlu0 %3773
        %3776 = vset.pattern.permute.xlu0 3
        %3777 = vperm.xlu0 %3776, %v2509
        %v3778 = vpop.permute.xlu0 %3777
        %3780 = vset.pattern.permute.xlu0 3
        %3781 = vperm.xlu0 %3780, %v2510
        %v3782 = vpop.permute.xlu0 %3781
        %3784 = vset.pattern.permute.xlu0 3
        %3785 = vperm.xlu0 %3784, %v2511
        %v3786 = vpop.permute.xlu0 %3785
        %3788 = vset.pattern.permute.xlu0 3
        %3789 = vperm.xlu0 %3788, %v2512
        %v3790 = vpop.permute.xlu0 %3789
        %3792 = vset.pattern.permute.xlu0 3
        %3793 = vperm.xlu0 %3792, %v2513
        %v3794 = vpop.permute.xlu0 %3793
        %3796 = vset.pattern.permute.xlu0 3
        %3797 = vperm.xlu0 %3796, %v2514
        %v3798 = vpop.permute.xlu0 %3797
        %3800 = vset.pattern.permute.xlu0 3
        %3801 = vperm.xlu0 %3800, %v2515
        %v3802 = vpop.permute.xlu0 %3801
        %3804 = vset.pattern.permute.xlu0 3
        %3805 = vperm.xlu0 %3804, %v2516
        %v3806 = vpop.permute.xlu0 %3805
        %3808 = vset.pattern.permute.xlu0 3
        %3809 = vperm.xlu0 %3808, %v2517
        %v3810 = vpop.permute.xlu0 %3809
        %3812 = vset.pattern.permute.xlu0 3
        %3813 = vperm.xlu0 %3812, %v2518
        %v3814 = vpop.permute.xlu0 %3813
        %3816 = vset.pattern.permute.xlu0 3
        %3817 = vperm.xlu0 %3816, %v2519
        %v3818 = vpop.permute.xlu0 %3817
        %3820 = vset.pattern.permute.xlu0 3
        %3821 = vperm.xlu0 %3820, %v2520
        %v3822 = vpop.permute.xlu0 %3821
        %3824 = vset.pattern.permute.xlu0 3
        %3825 = vperm.xlu0 %3824, %v2521
        %v3826 = vpop.permute.xlu0 %3825
        %3828 = vset.pattern.permute.xlu0 3
        %3829 = vperm.xlu0 %3828, %v2522
        %v3830 = vpop.permute.xlu0 %3829
        %3832 = vset.pattern.permute.xlu0 3
        %3833 = vperm.xlu0 %3832, %v2523
        %v3834 = vpop.permute.xlu0 %3833
        %3836 = vset.pattern.permute.xlu0 3
        %3837 = vperm.xlu0 %3836, %v2524
        %v3838 = vpop.permute.xlu0 %3837
        %3840 = vset.pattern.permute.xlu0 3
        %3841 = vperm.xlu0 %3840, %v2525
        %v3842 = vpop.permute.xlu0 %3841
        %3844 = vset.pattern.permute.xlu0 3
        %3845 = vperm.xlu0 %3844, %v2526
        %v3846 = vpop.permute.xlu0 %3845
        %3848 = vset.pattern.permute.xlu0 3
        %3849 = vperm.xlu0 %3848, %v2527
        %v3850 = vpop.permute.xlu0 %3849
        %3852 = vset.pattern.permute.xlu0 3
        %3853 = vperm.xlu0 %3852, %v2528
        %v3854 = vpop.permute.xlu0 %3853
        %3856 = vset.pattern.permute.xlu0 3
        %3857 = vperm.xlu0 %3856, %v2529
        %v3858 = vpop.permute.xlu0 %3857
        %3860 = vset.pattern.permute.xlu0 3
        %3861 = vperm.xlu0 %3860, %v2530
        %v3862 = vpop.permute.xlu0 %3861
        %3864 = vset.pattern.permute.xlu0 3
        %3865 = vperm.xlu0 %3864, %v2531
        %v3866 = vpop.permute.xlu0 %3865
        %3868 = vset.pattern.permute.xlu0 3
        %3869 = vperm.xlu0 %3868, %v2532
        %v3870 = vpop.permute.xlu0 %3869
        %3872 = vset.pattern.permute.xlu0 3
        %3873 = vperm.xlu0 %3872, %v2533
        %v3874 = vpop.permute.xlu0 %3873
        %3876 = vset.pattern.permute.xlu0 3
        %3877 = vperm.xlu0 %3876, %v2534
        %v3878 = vpop.permute.xlu0 %3877
        %3880 = vset.pattern.permute.xlu0 3
        %3881 = vperm.xlu0 %3880, %v2535
        %v3882 = vpop.permute.xlu0 %3881
        %3884 = vset.pattern.permute.xlu0 3
        %3885 = vperm.xlu0 %3884, %v2536
        %v3886 = vpop.permute.xlu0 %3885
        %3888 = vset.pattern.permute.xlu0 3
        %3889 = vperm.xlu0 %3888, %v2537
        %v3890 = vpop.permute.xlu0 %3889
        %3892 = vset.pattern.permute.xlu0 3
        %3893 = vperm.xlu0 %3892, %v2538
        %v3894 = vpop.permute.xlu0 %3893
        %3896 = vset.pattern.permute.xlu0 3
        %3897 = vperm.xlu0 %3896, %v2539
        %v3898 = vpop.permute.xlu0 %3897
        %3900 = vset.pattern.permute.xlu0 3
        %3901 = vperm.xlu0 %3900, %v2540
        %v3902 = vpop.permute.xlu0 %3901
        %3904 = vset.pattern.permute.xlu0 3
        %3905 = vperm.xlu0 %3904, %v2541
        %v3906 = vpop.permute.xlu0 %3905
        %3908 = vset.pattern.permute.xlu0 3
        %3909 = vperm.xlu0 %3908, %v2542
        %v3910 = vpop.permute.xlu0 %3909
        %3912 = vset.pattern.permute.xlu0 3
        %3913 = vperm.xlu0 %3912, %v2543
        %v3914 = vpop.permute.xlu0 %3913
        %3916 = vset.pattern.permute.xlu0 3
        %3917 = vperm.xlu0 %3916, %v2544
        %v3918 = vpop.permute.xlu0 %3917
        %3920 = vset.pattern.permute.xlu0 3
        %3921 = vperm.xlu0 %3920, %v2545
        %v3922 = vpop.permute.xlu0 %3921
        %3924 = vset.pattern.permute.xlu0 3
        %3925 = vperm.xlu0 %3924, %v2546
        %v3926 = vpop.permute.xlu0 %3925
        %3928 = vset.pattern.permute.xlu0 3
        %3929 = vperm.xlu0 %3928, %v2547
        %v3930 = vpop.permute.xlu0 %3929
        %3932 = vset.pattern.permute.xlu0 3
        %3933 = vperm.xlu0 %3932, %v2548
        %v3934 = vpop.permute.xlu0 %3933
        %3936 = vset.pattern.permute.xlu0 3
        %3937 = vperm.xlu0 %3936, %v2549
        %v3938 = vpop.permute.xlu0 %3937
        %3940 = vset.pattern.permute.xlu0 3
        %3941 = vperm.xlu0 %3940, %v2550
        %v3942 = vpop.permute.xlu0 %3941
        %3944 = vset.pattern.permute.xlu0 3
        %3945 = vperm.xlu0 %3944, %v2551
        %v3946 = vpop.permute.xlu0 %3945
        %3948 = vset.pattern.permute.xlu0 3
        %3949 = vperm.xlu0 %3948, %v2552
        %v3950 = vpop.permute.xlu0 %3949
        %3952 = vset.pattern.permute.xlu0 3
        %3953 = vperm.xlu0 %3952, %v2553
        %v3954 = vpop.permute.xlu0 %3953
        %3956 = vset.pattern.permute.xlu0 3
        %3957 = vperm.xlu0 %3956, %v2554
        %v3958 = vpop.permute.xlu0 %3957
        %3960 = vset.pattern.permute.xlu0 3
        %3961 = vperm.xlu0 %3960, %v2555
        %v3962 = vpop.permute.xlu0 %3961
        %v3964 = vmul.f32 %v3710, %v1470
        %v3965 = vmul.f32 %v3714, %v1474
        %v3966 = vmul.f32 %v3718, %v1480
        %v3967 = vmul.f32 %v3722, %v1484
        %v3968 = vmul.f32 %v3726, %v1490
        %v3969 = vmul.f32 %v3730, %v1494
        %v3970 = vmul.f32 %v3734, %v1500
        %v3971 = vmul.f32 %v3738, %v1504
        %v3972 = vmul.f32 %v3742, %v1510
        %v3973 = vmul.f32 %v3746, %v1514
        %v3974 = vmul.f32 %v3750, %v1520
        %v3975 = vmul.f32 %v3754, %v1524
        %v3976 = vmul.f32 %v3758, %v1530
        %v3977 = vmul.f32 %v3762, %v1534
        %v3978 = vmul.f32 %v3766, %v1540
        %v3979 = vmul.f32 %v3770, %v1544
        %v3980 = vmul.f32 %v3774, %v1550
        %v3981 = vmul.f32 %v3778, %v1554
        %v3982 = vmul.f32 %v3782, %v1560
        %v3983 = vmul.f32 %v3786, %v1564
        %v3984 = vmul.f32 %v3790, %v1570
        %v3985 = vmul.f32 %v3794, %v1574
        %v3986 = vmul.f32 %v3798, %v1580
        %v3987 = vmul.f32 %v3802, %v1584
        %v3988 = vmul.f32 %v3806, %v1590
        %v3989 = vmul.f32 %v3810, %v1594
        %v3990 = vmul.f32 %v3814, %v1600
        %v3991 = vmul.f32 %v3818, %v1604
        %v3992 = vmul.f32 %v3822, %v1610
        %v3993 = vmul.f32 %v3826, %v1614
        %v3994 = vmul.f32 %v3830, %v1620
        %v3995 = vmul.f32 %v3834, %v1624
        %v3996 = vmul.f32 %v3838, %v1630
        %v3997 = vmul.f32 %v3842, %v1634
        %v3998 = vmul.f32 %v3846, %v1640
        %v3999 = vmul.f32 %v3850, %v1644
        %v4000 = vmul.f32 %v3854, %v1650
        %v4001 = vmul.f32 %v3858, %v1654
        %v4002 = vmul.f32 %v3862, %v1660
        %v4003 = vmul.f32 %v3866, %v1664
        %v4004 = vmul.f32 %v3870, %v1670
        %v4005 = vmul.f32 %v3874, %v1674
        %v4006 = vmul.f32 %v3878, %v1680
        %v4007 = vmul.f32 %v3882, %v1684
        %v4008 = vmul.f32 %v3886, %v1690
        %v4009 = vmul.f32 %v3890, %v1694
        %v4010 = vmul.f32 %v3894, %v1700
        %v4011 = vmul.f32 %v3898, %v1704
        %v4012 = vmul.f32 %v3902, %v1710
        %v4013 = vmul.f32 %v3906, %v1714
        %v4014 = vmul.f32 %v3910, %v1720
        %v4015 = vmul.f32 %v3914, %v1724
        %v4016 = vmul.f32 %v3918, %v1730
        %v4017 = vmul.f32 %v3922, %v1734
        %v4018 = vmul.f32 %v3926, %v1740
        %v4019 = vmul.f32 %v3930, %v1744
        %v4020 = vmul.f32 %v3934, %v1750
        %v4021 = vmul.f32 %v3938, %v1754
        %v4022 = vmul.f32 %v3942, %v1760
        %v4023 = vmul.f32 %v3946, %v1764
        %v4024 = vmul.f32 %v3950, %v1770
        %v4025 = vmul.f32 %v3954, %v1774
        %v4026 = vmul.f32 %v3958, %v1780
        %v4027 = vmul.f32 %v3962, %v1784
        %v4028 = vadd.f32 %v3644, %v3964
        %v4029 = vadd.f32 %v3645, %v3965
        %v4030 = vadd.f32 %v3646, %v3966
        %v4031 = vadd.f32 %v3647, %v3967
        %v4032 = vadd.f32 %v3648, %v3968
        %v4033 = vadd.f32 %v3649, %v3969
        %v4034 = vadd.f32 %v3650, %v3970
        %v4035 = vadd.f32 %v3651, %v3971
        %v4036 = vadd.f32 %v3652, %v3972
        %v4037 = vadd.f32 %v3653, %v3973
        %v4038 = vadd.f32 %v3654, %v3974
        %v4039 = vadd.f32 %v3655, %v3975
        %v4040 = vadd.f32 %v3656, %v3976
        %v4041 = vadd.f32 %v3657, %v3977
        %v4042 = vadd.f32 %v3658, %v3978
        %v4043 = vadd.f32 %v3659, %v3979
        %v4044 = vadd.f32 %v3660, %v3980
        %v4045 = vadd.f32 %v3661, %v3981
        %v4046 = vadd.f32 %v3662, %v3982
        %v4047 = vadd.f32 %v3663, %v3983
        %v4048 = vadd.f32 %v3664, %v3984
        %v4049 = vadd.f32 %v3665, %v3985
        %v4050 = vadd.f32 %v3666, %v3986
        %v4051 = vadd.f32 %v3667, %v3987
        %v4052 = vadd.f32 %v3668, %v3988
        %v4053 = vadd.f32 %v3669, %v3989
        %v4054 = vadd.f32 %v3670, %v3990
        %v4055 = vadd.f32 %v3671, %v3991
        %v4056 = vadd.f32 %v3672, %v3992
        %v4057 = vadd.f32 %v3673, %v3993
        %v4058 = vadd.f32 %v3674, %v3994
        %v4059 = vadd.f32 %v3675, %v3995
        %v4060 = vadd.f32 %v3676, %v3996
        %v4061 = vadd.f32 %v3677, %v3997
        %v4062 = vadd.f32 %v3678, %v3998
        %v4063 = vadd.f32 %v3679, %v3999
        %v4064 = vadd.f32 %v3680, %v4000
        %v4065 = vadd.f32 %v3681, %v4001
        %v4066 = vadd.f32 %v3682, %v4002
        %v4067 = vadd.f32 %v3683, %v4003
        %v4068 = vadd.f32 %v3684, %v4004
        %v4069 = vadd.f32 %v3685, %v4005
        %v4070 = vadd.f32 %v3686, %v4006
        %v4071 = vadd.f32 %v3687, %v4007
        %v4072 = vadd.f32 %v3688, %v4008
        %v4073 = vadd.f32 %v3689, %v4009
        %v4074 = vadd.f32 %v3690, %v4010
        %v4075 = vadd.f32 %v3691, %v4011
        %v4076 = vadd.f32 %v3692, %v4012
        %v4077 = vadd.f32 %v3693, %v4013
        %v4078 = vadd.f32 %v3694, %v4014
        %v4079 = vadd.f32 %v3695, %v4015
        %v4080 = vadd.f32 %v3696, %v4016
        %v4081 = vadd.f32 %v3697, %v4017
        %v4082 = vadd.f32 %v3698, %v4018
        %v4083 = vadd.f32 %v3699, %v4019
        %v4084 = vadd.f32 %v3700, %v4020
        %v4085 = vadd.f32 %v3701, %v4021
        %v4086 = vadd.f32 %v3702, %v4022
        %v4087 = vadd.f32 %v3703, %v4023
        %v4088 = vadd.f32 %v3704, %v4024
        %v4089 = vadd.f32 %v3705, %v4025
        %v4090 = vadd.f32 %v3706, %v4026
        %v4091 = vadd.f32 %v3707, %v4027
        %4092 = vset.pattern.permute.xlu0 4
        %4093 = vperm.xlu0 %4092, %v2492
        %v4094 = vpop.permute.xlu0 %4093
        %4096 = vset.pattern.permute.xlu0 4
        %4097 = vperm.xlu0 %4096, %v2493
        %v4098 = vpop.permute.xlu0 %4097
        %4100 = vset.pattern.permute.xlu0 4
        %4101 = vperm.xlu0 %4100, %v2494
        %v4102 = vpop.permute.xlu0 %4101
        %4104 = vset.pattern.permute.xlu0 4
        %4105 = vperm.xlu0 %4104, %v2495
        %v4106 = vpop.permute.xlu0 %4105
        %4108 = vset.pattern.permute.xlu0 4
        %4109 = vperm.xlu0 %4108, %v2496
        %v4110 = vpop.permute.xlu0 %4109
        %4112 = vset.pattern.permute.xlu0 4
        %4113 = vperm.xlu0 %4112, %v2497
        %v4114 = vpop.permute.xlu0 %4113
        %4116 = vset.pattern.permute.xlu0 4
        %4117 = vperm.xlu0 %4116, %v2498
        %v4118 = vpop.permute.xlu0 %4117
        %4120 = vset.pattern.permute.xlu0 4
        %4121 = vperm.xlu0 %4120, %v2499
        %v4122 = vpop.permute.xlu0 %4121
        %4124 = vset.pattern.permute.xlu0 4
        %4125 = vperm.xlu0 %4124, %v2500
        %v4126 = vpop.permute.xlu0 %4125
        %4128 = vset.pattern.permute.xlu0 4
        %4129 = vperm.xlu0 %4128, %v2501
        %v4130 = vpop.permute.xlu0 %4129
        %4132 = vset.pattern.permute.xlu0 4
        %4133 = vperm.xlu0 %4132, %v2502
        %v4134 = vpop.permute.xlu0 %4133
        %4136 = vset.pattern.permute.xlu0 4
        %4137 = vperm.xlu0 %4136, %v2503
        %v4138 = vpop.permute.xlu0 %4137
        %4140 = vset.pattern.permute.xlu0 4
        %4141 = vperm.xlu0 %4140, %v2504
        %v4142 = vpop.permute.xlu0 %4141
        %4144 = vset.pattern.permute.xlu0 4
        %4145 = vperm.xlu0 %4144, %v2505
        %v4146 = vpop.permute.xlu0 %4145
        %4148 = vset.pattern.permute.xlu0 4
        %4149 = vperm.xlu0 %4148, %v2506
        %v4150 = vpop.permute.xlu0 %4149
        %4152 = vset.pattern.permute.xlu0 4
        %4153 = vperm.xlu0 %4152, %v2507
        %v4154 = vpop.permute.xlu0 %4153
        %4156 = vset.pattern.permute.xlu0 4
        %4157 = vperm.xlu0 %4156, %v2508
        %v4158 = vpop.permute.xlu0 %4157
        %4160 = vset.pattern.permute.xlu0 4
        %4161 = vperm.xlu0 %4160, %v2509
        %v4162 = vpop.permute.xlu0 %4161
        %4164 = vset.pattern.permute.xlu0 4
        %4165 = vperm.xlu0 %4164, %v2510
        %v4166 = vpop.permute.xlu0 %4165
        %4168 = vset.pattern.permute.xlu0 4
        %4169 = vperm.xlu0 %4168, %v2511
        %v4170 = vpop.permute.xlu0 %4169
        %4172 = vset.pattern.permute.xlu0 4
        %4173 = vperm.xlu0 %4172, %v2512
        %v4174 = vpop.permute.xlu0 %4173
        %4176 = vset.pattern.permute.xlu0 4
        %4177 = vperm.xlu0 %4176, %v2513
        %v4178 = vpop.permute.xlu0 %4177
        %4180 = vset.pattern.permute.xlu0 4
        %4181 = vperm.xlu0 %4180, %v2514
        %v4182 = vpop.permute.xlu0 %4181
        %4184 = vset.pattern.permute.xlu0 4
        %4185 = vperm.xlu0 %4184, %v2515
        %v4186 = vpop.permute.xlu0 %4185
        %4188 = vset.pattern.permute.xlu0 4
        %4189 = vperm.xlu0 %4188, %v2516
        %v4190 = vpop.permute.xlu0 %4189
        %4192 = vset.pattern.permute.xlu0 4
        %4193 = vperm.xlu0 %4192, %v2517
        %v4194 = vpop.permute.xlu0 %4193
        %4196 = vset.pattern.permute.xlu0 4
        %4197 = vperm.xlu0 %4196, %v2518
        %v4198 = vpop.permute.xlu0 %4197
        %4200 = vset.pattern.permute.xlu0 4
        %4201 = vperm.xlu0 %4200, %v2519
        %v4202 = vpop.permute.xlu0 %4201
        %4204 = vset.pattern.permute.xlu0 4
        %4205 = vperm.xlu0 %4204, %v2520
        %v4206 = vpop.permute.xlu0 %4205
        %4208 = vset.pattern.permute.xlu0 4
        %4209 = vperm.xlu0 %4208, %v2521
        %v4210 = vpop.permute.xlu0 %4209
        %4212 = vset.pattern.permute.xlu0 4
        %4213 = vperm.xlu0 %4212, %v2522
        %v4214 = vpop.permute.xlu0 %4213
        %4216 = vset.pattern.permute.xlu0 4
        %4217 = vperm.xlu0 %4216, %v2523
        %v4218 = vpop.permute.xlu0 %4217
        %4220 = vset.pattern.permute.xlu0 4
        %4221 = vperm.xlu0 %4220, %v2524
        %v4222 = vpop.permute.xlu0 %4221
        %4224 = vset.pattern.permute.xlu0 4
        %4225 = vperm.xlu0 %4224, %v2525
        %v4226 = vpop.permute.xlu0 %4225
        %4228 = vset.pattern.permute.xlu0 4
        %4229 = vperm.xlu0 %4228, %v2526
        %v4230 = vpop.permute.xlu0 %4229
        %4232 = vset.pattern.permute.xlu0 4
        %4233 = vperm.xlu0 %4232, %v2527
        %v4234 = vpop.permute.xlu0 %4233
        %4236 = vset.pattern.permute.xlu0 4
        %4237 = vperm.xlu0 %4236, %v2528
        %v4238 = vpop.permute.xlu0 %4237
        %4240 = vset.pattern.permute.xlu0 4
        %4241 = vperm.xlu0 %4240, %v2529
        %v4242 = vpop.permute.xlu0 %4241
        %4244 = vset.pattern.permute.xlu0 4
        %4245 = vperm.xlu0 %4244, %v2530
        %v4246 = vpop.permute.xlu0 %4245
        %4248 = vset.pattern.permute.xlu0 4
        %4249 = vperm.xlu0 %4248, %v2531
        %v4250 = vpop.permute.xlu0 %4249
        %4252 = vset.pattern.permute.xlu0 4
        %4253 = vperm.xlu0 %4252, %v2532
        %v4254 = vpop.permute.xlu0 %4253
        %4256 = vset.pattern.permute.xlu0 4
        %4257 = vperm.xlu0 %4256, %v2533
        %v4258 = vpop.permute.xlu0 %4257
        %4260 = vset.pattern.permute.xlu0 4
        %4261 = vperm.xlu0 %4260, %v2534
        %v4262 = vpop.permute.xlu0 %4261
        %4264 = vset.pattern.permute.xlu0 4
        %4265 = vperm.xlu0 %4264, %v2535
        %v4266 = vpop.permute.xlu0 %4265
        %4268 = vset.pattern.permute.xlu0 4
        %4269 = vperm.xlu0 %4268, %v2536
        %v4270 = vpop.permute.xlu0 %4269
        %4272 = vset.pattern.permute.xlu0 4
        %4273 = vperm.xlu0 %4272, %v2537
        %v4274 = vpop.permute.xlu0 %4273
        %4276 = vset.pattern.permute.xlu0 4
        %4277 = vperm.xlu0 %4276, %v2538
        %v4278 = vpop.permute.xlu0 %4277
        %4280 = vset.pattern.permute.xlu0 4
        %4281 = vperm.xlu0 %4280, %v2539
        %v4282 = vpop.permute.xlu0 %4281
        %4284 = vset.pattern.permute.xlu0 4
        %4285 = vperm.xlu0 %4284, %v2540
        %v4286 = vpop.permute.xlu0 %4285
        %4288 = vset.pattern.permute.xlu0 4
        %4289 = vperm.xlu0 %4288, %v2541
        %v4290 = vpop.permute.xlu0 %4289
        %4292 = vset.pattern.permute.xlu0 4
        %4293 = vperm.xlu0 %4292, %v2542
        %v4294 = vpop.permute.xlu0 %4293
        %4296 = vset.pattern.permute.xlu0 4
        %4297 = vperm.xlu0 %4296, %v2543
        %v4298 = vpop.permute.xlu0 %4297
        %4300 = vset.pattern.permute.xlu0 4
        %4301 = vperm.xlu0 %4300, %v2544
        %v4302 = vpop.permute.xlu0 %4301
        %4304 = vset.pattern.permute.xlu0 4
        %4305 = vperm.xlu0 %4304, %v2545
        %v4306 = vpop.permute.xlu0 %4305
        %4308 = vset.pattern.permute.xlu0 4
        %4309 = vperm.xlu0 %4308, %v2546
        %v4310 = vpop.permute.xlu0 %4309
        %4312 = vset.pattern.permute.xlu0 4
        %4313 = vperm.xlu0 %4312, %v2547
        %v4314 = vpop.permute.xlu0 %4313
        %4316 = vset.pattern.permute.xlu0 4
        %4317 = vperm.xlu0 %4316, %v2548
        %v4318 = vpop.permute.xlu0 %4317
        %4320 = vset.pattern.permute.xlu0 4
        %4321 = vperm.xlu0 %4320, %v2549
        %v4322 = vpop.permute.xlu0 %4321
        %4324 = vset.pattern.permute.xlu0 4
        %4325 = vperm.xlu0 %4324, %v2550
        %v4326 = vpop.permute.xlu0 %4325
        %4328 = vset.pattern.permute.xlu0 4
        %4329 = vperm.xlu0 %4328, %v2551
        %v4330 = vpop.permute.xlu0 %4329
        %4332 = vset.pattern.permute.xlu0 4
        %4333 = vperm.xlu0 %4332, %v2552
        %v4334 = vpop.permute.xlu0 %4333
        %4336 = vset.pattern.permute.xlu0 4
        %4337 = vperm.xlu0 %4336, %v2553
        %v4338 = vpop.permute.xlu0 %4337
        %4340 = vset.pattern.permute.xlu0 4
        %4341 = vperm.xlu0 %4340, %v2554
        %v4342 = vpop.permute.xlu0 %4341
        %4344 = vset.pattern.permute.xlu0 4
        %4345 = vperm.xlu0 %4344, %v2555
        %v4346 = vpop.permute.xlu0 %4345
        %v4348 = vmul.f32 %v4094, %v1821
        %v4349 = vmul.f32 %v4098, %v1825
        %v4350 = vmul.f32 %v4102, %v1831
        %v4351 = vmul.f32 %v4106, %v1835
        %v4352 = vmul.f32 %v4110, %v1841
        %v4353 = vmul.f32 %v4114, %v1845
        %v4354 = vmul.f32 %v4118, %v1851
        %v4355 = vmul.f32 %v4122, %v1855
        %v4356 = vmul.f32 %v4126, %v1861
        %v4357 = vmul.f32 %v4130, %v1865
        %v4358 = vmul.f32 %v4134, %v1871
        %v4359 = vmul.f32 %v4138, %v1875
        %v4360 = vmul.f32 %v4142, %v1881
        %v4361 = vmul.f32 %v4146, %v1885
        %v4362 = vmul.f32 %v4150, %v1891
        %v4363 = vmul.f32 %v4154, %v1895
        %v4364 = vmul.f32 %v4158, %v1901
        %v4365 = vmul.f32 %v4162, %v1905
        %v4366 = vmul.f32 %v4166, %v1911
        %v4367 = vmul.f32 %v4170, %v1915
        %v4368 = vmul.f32 %v4174, %v1921
        %v4369 = vmul.f32 %v4178, %v1925
        %v4370 = vmul.f32 %v4182, %v1931
        %v4371 = vmul.f32 %v4186, %v1935
        %v4372 = vmul.f32 %v4190, %v1941
        %v4373 = vmul.f32 %v4194, %v1945
        %v4374 = vmul.f32 %v4198, %v1951
        %v4375 = vmul.f32 %v4202, %v1955
        %v4376 = vmul.f32 %v4206, %v1961
        %v4377 = vmul.f32 %v4210, %v1965
        %v4378 = vmul.f32 %v4214, %v1971
        %v4379 = vmul.f32 %v4218, %v1975
        %v4380 = vmul.f32 %v4222, %v1981
        %v4381 = vmul.f32 %v4226, %v1985
        %v4382 = vmul.f32 %v4230, %v1991
        %v4383 = vmul.f32 %v4234, %v1995
        %v4384 = vmul.f32 %v4238, %v2001
        %v4385 = vmul.f32 %v4242, %v2005
        %v4386 = vmul.f32 %v4246, %v2011
        %v4387 = vmul.f32 %v4250, %v2015
        %v4388 = vmul.f32 %v4254, %v2021
        %v4389 = vmul.f32 %v4258, %v2025
        %v4390 = vmul.f32 %v4262, %v2031
        %v4391 = vmul.f32 %v4266, %v2035
        %v4392 = vmul.f32 %v4270, %v2041
        %v4393 = vmul.f32 %v4274, %v2045
        %v4394 = vmul.f32 %v4278, %v2051
        %v4395 = vmul.f32 %v4282, %v2055
        %v4396 = vmul.f32 %v4286, %v2061
        %v4397 = vmul.f32 %v4290, %v2065
        %v4398 = vmul.f32 %v4294, %v2071
        %v4399 = vmul.f32 %v4298, %v2075
        %v4400 = vmul.f32 %v4302, %v2081
        %v4401 = vmul.f32 %v4306, %v2085
        %v4402 = vmul.f32 %v4310, %v2091
        %v4403 = vmul.f32 %v4314, %v2095
        %v4404 = vmul.f32 %v4318, %v2101
        %v4405 = vmul.f32 %v4322, %v2105
        %v4406 = vmul.f32 %v4326, %v2111
        %v4407 = vmul.f32 %v4330, %v2115
        %v4408 = vmul.f32 %v4334, %v2121
        %v4409 = vmul.f32 %v4338, %v2125
        %v4410 = vmul.f32 %v4342, %v2131
        %v4411 = vmul.f32 %v4346, %v2135
        %v4412 = vadd.f32 %v4028, %v4348
        %v4413 = vadd.f32 %v4029, %v4349
        %v4414 = vadd.f32 %v4030, %v4350
        %v4415 = vadd.f32 %v4031, %v4351
        %v4416 = vadd.f32 %v4032, %v4352
        %v4417 = vadd.f32 %v4033, %v4353
        %v4418 = vadd.f32 %v4034, %v4354
        %v4419 = vadd.f32 %v4035, %v4355
        %v4420 = vadd.f32 %v4036, %v4356
        %v4421 = vadd.f32 %v4037, %v4357
        %v4422 = vadd.f32 %v4038, %v4358
        %v4423 = vadd.f32 %v4039, %v4359
        %v4424 = vadd.f32 %v4040, %v4360
        %v4425 = vadd.f32 %v4041, %v4361
        %v4426 = vadd.f32 %v4042, %v4362
        %v4427 = vadd.f32 %v4043, %v4363
        %v4428 = vadd.f32 %v4044, %v4364
        %v4429 = vadd.f32 %v4045, %v4365
        %v4430 = vadd.f32 %v4046, %v4366
        %v4431 = vadd.f32 %v4047, %v4367
        %v4432 = vadd.f32 %v4048, %v4368
        %v4433 = vadd.f32 %v4049, %v4369
        %v4434 = vadd.f32 %v4050, %v4370
        %v4435 = vadd.f32 %v4051, %v4371
        %v4436 = vadd.f32 %v4052, %v4372
        %v4437 = vadd.f32 %v4053, %v4373
        %v4438 = vadd.f32 %v4054, %v4374
        %v4439 = vadd.f32 %v4055, %v4375
        %v4440 = vadd.f32 %v4056, %v4376
        %v4441 = vadd.f32 %v4057, %v4377
        %v4442 = vadd.f32 %v4058, %v4378
        %v4443 = vadd.f32 %v4059, %v4379
        %v4444 = vadd.f32 %v4060, %v4380
        %v4445 = vadd.f32 %v4061, %v4381
        %v4446 = vadd.f32 %v4062, %v4382
        %v4447 = vadd.f32 %v4063, %v4383
        %v4448 = vadd.f32 %v4064, %v4384
        %v4449 = vadd.f32 %v4065, %v4385
        %v4450 = vadd.f32 %v4066, %v4386
        %v4451 = vadd.f32 %v4067, %v4387
        %v4452 = vadd.f32 %v4068, %v4388
        %v4453 = vadd.f32 %v4069, %v4389
        %v4454 = vadd.f32 %v4070, %v4390
        %v4455 = vadd.f32 %v4071, %v4391
        %v4456 = vadd.f32 %v4072, %v4392
        %v4457 = vadd.f32 %v4073, %v4393
        %v4458 = vadd.f32 %v4074, %v4394
        %v4459 = vadd.f32 %v4075, %v4395
        %v4460 = vadd.f32 %v4076, %v4396
        %v4461 = vadd.f32 %v4077, %v4397
        %v4462 = vadd.f32 %v4078, %v4398
        %v4463 = vadd.f32 %v4079, %v4399
        %v4464 = vadd.f32 %v4080, %v4400
        %v4465 = vadd.f32 %v4081, %v4401
        %v4466 = vadd.f32 %v4082, %v4402
        %v4467 = vadd.f32 %v4083, %v4403
        %v4468 = vadd.f32 %v4084, %v4404
        %v4469 = vadd.f32 %v4085, %v4405
        %v4470 = vadd.f32 %v4086, %v4406
        %v4471 = vadd.f32 %v4087, %v4407
        %v4472 = vadd.f32 %v4088, %v4408
        %v4473 = vadd.f32 %v4089, %v4409
        %v4474 = vadd.f32 %v4090, %v4410
        %v4475 = vadd.f32 %v4091, %v4411
        %4476 = vset.pattern.permute.xlu0 5
        %4477 = vperm.xlu0 %4476, %v2492
        %v4478 = vpop.permute.xlu0 %4477
        %4480 = vset.pattern.permute.xlu0 5
        %4481 = vperm.xlu0 %4480, %v2493
        %v4482 = vpop.permute.xlu0 %4481
        %4484 = vset.pattern.permute.xlu0 5
        %4485 = vperm.xlu0 %4484, %v2494
        %v4486 = vpop.permute.xlu0 %4485
        %4488 = vset.pattern.permute.xlu0 5
        %4489 = vperm.xlu0 %4488, %v2495
        %v4490 = vpop.permute.xlu0 %4489
        %4492 = vset.pattern.permute.xlu0 5
        %4493 = vperm.xlu0 %4492, %v2496
        %v4494 = vpop.permute.xlu0 %4493
        %4496 = vset.pattern.permute.xlu0 5
        %4497 = vperm.xlu0 %4496, %v2497
        %v4498 = vpop.permute.xlu0 %4497
        %4500 = vset.pattern.permute.xlu0 5
        %4501 = vperm.xlu0 %4500, %v2498
        %v4502 = vpop.permute.xlu0 %4501
        %4504 = vset.pattern.permute.xlu0 5
        %4505 = vperm.xlu0 %4504, %v2499
        %v4506 = vpop.permute.xlu0 %4505
        %4508 = vset.pattern.permute.xlu0 5
        %4509 = vperm.xlu0 %4508, %v2500
        %v4510 = vpop.permute.xlu0 %4509
        %4512 = vset.pattern.permute.xlu0 5
        %4513 = vperm.xlu0 %4512, %v2501
        %v4514 = vpop.permute.xlu0 %4513
        %4516 = vset.pattern.permute.xlu0 5
        %4517 = vperm.xlu0 %4516, %v2502
        %v4518 = vpop.permute.xlu0 %4517
        %4520 = vset.pattern.permute.xlu0 5
        %4521 = vperm.xlu0 %4520, %v2503
        %v4522 = vpop.permute.xlu0 %4521
        %4524 = vset.pattern.permute.xlu0 5
        %4525 = vperm.xlu0 %4524, %v2504
        %v4526 = vpop.permute.xlu0 %4525
        %4528 = vset.pattern.permute.xlu0 5
        %4529 = vperm.xlu0 %4528, %v2505
        %v4530 = vpop.permute.xlu0 %4529
        %4532 = vset.pattern.permute.xlu0 5
        %4533 = vperm.xlu0 %4532, %v2506
        %v4534 = vpop.permute.xlu0 %4533
        %4536 = vset.pattern.permute.xlu0 5
        %4537 = vperm.xlu0 %4536, %v2507
        %v4538 = vpop.permute.xlu0 %4537
        %4540 = vset.pattern.permute.xlu0 5
        %4541 = vperm.xlu0 %4540, %v2508
        %v4542 = vpop.permute.xlu0 %4541
        %4544 = vset.pattern.permute.xlu0 5
        %4545 = vperm.xlu0 %4544, %v2509
        %v4546 = vpop.permute.xlu0 %4545
        %4548 = vset.pattern.permute.xlu0 5
        %4549 = vperm.xlu0 %4548, %v2510
        %v4550 = vpop.permute.xlu0 %4549
        %4552 = vset.pattern.permute.xlu0 5
        %4553 = vperm.xlu0 %4552, %v2511
        %v4554 = vpop.permute.xlu0 %4553
        %4556 = vset.pattern.permute.xlu0 5
        %4557 = vperm.xlu0 %4556, %v2512
        %v4558 = vpop.permute.xlu0 %4557
        %4560 = vset.pattern.permute.xlu0 5
        %4561 = vperm.xlu0 %4560, %v2513
        %v4562 = vpop.permute.xlu0 %4561
        %4564 = vset.pattern.permute.xlu0 5
        %4565 = vperm.xlu0 %4564, %v2514
        %v4566 = vpop.permute.xlu0 %4565
        %4568 = vset.pattern.permute.xlu0 5
        %4569 = vperm.xlu0 %4568, %v2515
        %v4570 = vpop.permute.xlu0 %4569
        %4572 = vset.pattern.permute.xlu0 5
        %4573 = vperm.xlu0 %4572, %v2516
        %v4574 = vpop.permute.xlu0 %4573
        %4576 = vset.pattern.permute.xlu0 5
        %4577 = vperm.xlu0 %4576, %v2517
        %v4578 = vpop.permute.xlu0 %4577
        %4580 = vset.pattern.permute.xlu0 5
        %4581 = vperm.xlu0 %4580, %v2518
        %v4582 = vpop.permute.xlu0 %4581
        %4584 = vset.pattern.permute.xlu0 5
        %4585 = vperm.xlu0 %4584, %v2519
        %v4586 = vpop.permute.xlu0 %4585
        %4588 = vset.pattern.permute.xlu0 5
        %4589 = vperm.xlu0 %4588, %v2520
        %v4590 = vpop.permute.xlu0 %4589
        %4592 = vset.pattern.permute.xlu0 5
        %4593 = vperm.xlu0 %4592, %v2521
        %v4594 = vpop.permute.xlu0 %4593
        %4596 = vset.pattern.permute.xlu0 5
        %4597 = vperm.xlu0 %4596, %v2522
        %v4598 = vpop.permute.xlu0 %4597
        %4600 = vset.pattern.permute.xlu0 5
        %4601 = vperm.xlu0 %4600, %v2523
        %v4602 = vpop.permute.xlu0 %4601
        %4604 = vset.pattern.permute.xlu0 5
        %4605 = vperm.xlu0 %4604, %v2524
        %v4606 = vpop.permute.xlu0 %4605
        %4608 = vset.pattern.permute.xlu0 5
        %4609 = vperm.xlu0 %4608, %v2525
        %v4610 = vpop.permute.xlu0 %4609
        %4612 = vset.pattern.permute.xlu0 5
        %4613 = vperm.xlu0 %4612, %v2526
        %v4614 = vpop.permute.xlu0 %4613
        %4616 = vset.pattern.permute.xlu0 5
        %4617 = vperm.xlu0 %4616, %v2527
        %v4618 = vpop.permute.xlu0 %4617
        %4620 = vset.pattern.permute.xlu0 5
        %4621 = vperm.xlu0 %4620, %v2528
        %v4622 = vpop.permute.xlu0 %4621
        %4624 = vset.pattern.permute.xlu0 5
        %4625 = vperm.xlu0 %4624, %v2529
        %v4626 = vpop.permute.xlu0 %4625
        %4628 = vset.pattern.permute.xlu0 5
        %4629 = vperm.xlu0 %4628, %v2530
        %v4630 = vpop.permute.xlu0 %4629
        %4632 = vset.pattern.permute.xlu0 5
        %4633 = vperm.xlu0 %4632, %v2531
        %v4634 = vpop.permute.xlu0 %4633
        %4636 = vset.pattern.permute.xlu0 5
        %4637 = vperm.xlu0 %4636, %v2532
        %v4638 = vpop.permute.xlu0 %4637
        %4640 = vset.pattern.permute.xlu0 5
        %4641 = vperm.xlu0 %4640, %v2533
        %v4642 = vpop.permute.xlu0 %4641
        %4644 = vset.pattern.permute.xlu0 5
        %4645 = vperm.xlu0 %4644, %v2534
        %v4646 = vpop.permute.xlu0 %4645
        %4648 = vset.pattern.permute.xlu0 5
        %4649 = vperm.xlu0 %4648, %v2535
        %v4650 = vpop.permute.xlu0 %4649
        %4652 = vset.pattern.permute.xlu0 5
        %4653 = vperm.xlu0 %4652, %v2536
        %v4654 = vpop.permute.xlu0 %4653
        %4656 = vset.pattern.permute.xlu0 5
        %4657 = vperm.xlu0 %4656, %v2537
        %v4658 = vpop.permute.xlu0 %4657
        %4660 = vset.pattern.permute.xlu0 5
        %4661 = vperm.xlu0 %4660, %v2538
        %v4662 = vpop.permute.xlu0 %4661
        %4664 = vset.pattern.permute.xlu0 5
        %4665 = vperm.xlu0 %4664, %v2539
        %v4666 = vpop.permute.xlu0 %4665
        %4668 = vset.pattern.permute.xlu0 5
        %4669 = vperm.xlu0 %4668, %v2540
        %v4670 = vpop.permute.xlu0 %4669
        %4672 = vset.pattern.permute.xlu0 5
        %4673 = vperm.xlu0 %4672, %v2541
        %v4674 = vpop.permute.xlu0 %4673
        %4676 = vset.pattern.permute.xlu0 5
        %4677 = vperm.xlu0 %4676, %v2542
        %v4678 = vpop.permute.xlu0 %4677
        %4680 = vset.pattern.permute.xlu0 5
        %4681 = vperm.xlu0 %4680, %v2543
        %v4682 = vpop.permute.xlu0 %4681
        %4684 = vset.pattern.permute.xlu0 5
        %4685 = vperm.xlu0 %4684, %v2544
        %v4686 = vpop.permute.xlu0 %4685
        %4688 = vset.pattern.permute.xlu0 5
        %4689 = vperm.xlu0 %4688, %v2545
        %v4690 = vpop.permute.xlu0 %4689
        %4692 = vset.pattern.permute.xlu0 5
        %4693 = vperm.xlu0 %4692, %v2546
        %v4694 = vpop.permute.xlu0 %4693
        %4696 = vset.pattern.permute.xlu0 5
        %4697 = vperm.xlu0 %4696, %v2547
        %v4698 = vpop.permute.xlu0 %4697
        %4700 = vset.pattern.permute.xlu0 5
        %4701 = vperm.xlu0 %4700, %v2548
        %v4702 = vpop.permute.xlu0 %4701
        %4704 = vset.pattern.permute.xlu0 5
        %4705 = vperm.xlu0 %4704, %v2549
        %v4706 = vpop.permute.xlu0 %4705
        %4708 = vset.pattern.permute.xlu0 5
        %4709 = vperm.xlu0 %4708, %v2550
        %v4710 = vpop.permute.xlu0 %4709
        %4712 = vset.pattern.permute.xlu0 5
        %4713 = vperm.xlu0 %4712, %v2551
        %v4714 = vpop.permute.xlu0 %4713
        %4716 = vset.pattern.permute.xlu0 5
        %4717 = vperm.xlu0 %4716, %v2552
        %v4718 = vpop.permute.xlu0 %4717
        %4720 = vset.pattern.permute.xlu0 5
        %4721 = vperm.xlu0 %4720, %v2553
        %v4722 = vpop.permute.xlu0 %4721
        %4724 = vset.pattern.permute.xlu0 5
        %4725 = vperm.xlu0 %4724, %v2554
        %v4726 = vpop.permute.xlu0 %4725
        %4728 = vset.pattern.permute.xlu0 5
        %4729 = vperm.xlu0 %4728, %v2555
        %v4730 = vpop.permute.xlu0 %4729
        %v4732 = vmul.f32 %v4478, %v1823
        %v4733 = vmul.f32 %v4482, %v1827
        %v4734 = vmul.f32 %v4486, %v1833
        %v4735 = vmul.f32 %v4490, %v1837
        %v4736 = vmul.f32 %v4494, %v1843
        %v4737 = vmul.f32 %v4498, %v1847
        %v4738 = vmul.f32 %v4502, %v1853
        %v4739 = vmul.f32 %v4506, %v1857
        %v4740 = vmul.f32 %v4510, %v1863
        %v4741 = vmul.f32 %v4514, %v1867
        %v4742 = vmul.f32 %v4518, %v1873
        %v4743 = vmul.f32 %v4522, %v1877
        %v4744 = vmul.f32 %v4526, %v1883
        %v4745 = vmul.f32 %v4530, %v1887
        %v4746 = vmul.f32 %v4534, %v1893
        %v4747 = vmul.f32 %v4538, %v1897
        %v4748 = vmul.f32 %v4542, %v1903
        %v4749 = vmul.f32 %v4546, %v1907
        %v4750 = vmul.f32 %v4550, %v1913
        %v4751 = vmul.f32 %v4554, %v1917
        %v4752 = vmul.f32 %v4558, %v1923
        %v4753 = vmul.f32 %v4562, %v1927
        %v4754 = vmul.f32 %v4566, %v1933
        %v4755 = vmul.f32 %v4570, %v1937
        %v4756 = vmul.f32 %v4574, %v1943
        %v4757 = vmul.f32 %v4578, %v1947
        %v4758 = vmul.f32 %v4582, %v1953
        %v4759 = vmul.f32 %v4586, %v1957
        %v4760 = vmul.f32 %v4590, %v1963
        %v4761 = vmul.f32 %v4594, %v1967
        %v4762 = vmul.f32 %v4598, %v1973
        %v4763 = vmul.f32 %v4602, %v1977
        %v4764 = vmul.f32 %v4606, %v1983
        %v4765 = vmul.f32 %v4610, %v1987
        %v4766 = vmul.f32 %v4614, %v1993
        %v4767 = vmul.f32 %v4618, %v1997
        %v4768 = vmul.f32 %v4622, %v2003
        %v4769 = vmul.f32 %v4626, %v2007
        %v4770 = vmul.f32 %v4630, %v2013
        %v4771 = vmul.f32 %v4634, %v2017
        %v4772 = vmul.f32 %v4638, %v2023
        %v4773 = vmul.f32 %v4642, %v2027
        %v4774 = vmul.f32 %v4646, %v2033
        %v4775 = vmul.f32 %v4650, %v2037
        %v4776 = vmul.f32 %v4654, %v2043
        %v4777 = vmul.f32 %v4658, %v2047
        %v4778 = vmul.f32 %v4662, %v2053
        %v4779 = vmul.f32 %v4666, %v2057
        %v4780 = vmul.f32 %v4670, %v2063
        %v4781 = vmul.f32 %v4674, %v2067
        %v4782 = vmul.f32 %v4678, %v2073
        %v4783 = vmul.f32 %v4682, %v2077
        %v4784 = vmul.f32 %v4686, %v2083
        %v4785 = vmul.f32 %v4690, %v2087
        %v4786 = vmul.f32 %v4694, %v2093
        %v4787 = vmul.f32 %v4698, %v2097
        %v4788 = vmul.f32 %v4702, %v2103
        %v4789 = vmul.f32 %v4706, %v2107
        %v4790 = vmul.f32 %v4710, %v2113
        %v4791 = vmul.f32 %v4714, %v2117
        %v4792 = vmul.f32 %v4718, %v2123
        %v4793 = vmul.f32 %v4722, %v2127
        %v4794 = vmul.f32 %v4726, %v2133
        %v4795 = vmul.f32 %v4730, %v2137
        %v4796 = vadd.f32 %v4412, %v4732
        %v4797 = vadd.f32 %v4413, %v4733
        %v4798 = vadd.f32 %v4414, %v4734
        %v4799 = vadd.f32 %v4415, %v4735
        %v4800 = vadd.f32 %v4416, %v4736
        %v4801 = vadd.f32 %v4417, %v4737
        %v4802 = vadd.f32 %v4418, %v4738
        %v4803 = vadd.f32 %v4419, %v4739
        %v4804 = vadd.f32 %v4420, %v4740
        %v4805 = vadd.f32 %v4421, %v4741
        %v4806 = vadd.f32 %v4422, %v4742
        %v4807 = vadd.f32 %v4423, %v4743
        %v4808 = vadd.f32 %v4424, %v4744
        %v4809 = vadd.f32 %v4425, %v4745
        %v4810 = vadd.f32 %v4426, %v4746
        %v4811 = vadd.f32 %v4427, %v4747
        %v4812 = vadd.f32 %v4428, %v4748
        %v4813 = vadd.f32 %v4429, %v4749
        %v4814 = vadd.f32 %v4430, %v4750
        %v4815 = vadd.f32 %v4431, %v4751
        %v4816 = vadd.f32 %v4432, %v4752
        %v4817 = vadd.f32 %v4433, %v4753
        %v4818 = vadd.f32 %v4434, %v4754
        %v4819 = vadd.f32 %v4435, %v4755
        %v4820 = vadd.f32 %v4436, %v4756
        %v4821 = vadd.f32 %v4437, %v4757
        %v4822 = vadd.f32 %v4438, %v4758
        %v4823 = vadd.f32 %v4439, %v4759
        %v4824 = vadd.f32 %v4440, %v4760
        %v4825 = vadd.f32 %v4441, %v4761
        %v4826 = vadd.f32 %v4442, %v4762
        %v4827 = vadd.f32 %v4443, %v4763
        %v4828 = vadd.f32 %v4444, %v4764
        %v4829 = vadd.f32 %v4445, %v4765
        %v4830 = vadd.f32 %v4446, %v4766
        %v4831 = vadd.f32 %v4447, %v4767
        %v4832 = vadd.f32 %v4448, %v4768
        %v4833 = vadd.f32 %v4449, %v4769
        %v4834 = vadd.f32 %v4450, %v4770
        %v4835 = vadd.f32 %v4451, %v4771
        %v4836 = vadd.f32 %v4452, %v4772
        %v4837 = vadd.f32 %v4453, %v4773
        %v4838 = vadd.f32 %v4454, %v4774
        %v4839 = vadd.f32 %v4455, %v4775
        %v4840 = vadd.f32 %v4456, %v4776
        %v4841 = vadd.f32 %v4457, %v4777
        %v4842 = vadd.f32 %v4458, %v4778
        %v4843 = vadd.f32 %v4459, %v4779
        %v4844 = vadd.f32 %v4460, %v4780
        %v4845 = vadd.f32 %v4461, %v4781
        %v4846 = vadd.f32 %v4462, %v4782
        %v4847 = vadd.f32 %v4463, %v4783
        %v4848 = vadd.f32 %v4464, %v4784
        %v4849 = vadd.f32 %v4465, %v4785
        %v4850 = vadd.f32 %v4466, %v4786
        %v4851 = vadd.f32 %v4467, %v4787
        %v4852 = vadd.f32 %v4468, %v4788
        %v4853 = vadd.f32 %v4469, %v4789
        %v4854 = vadd.f32 %v4470, %v4790
        %v4855 = vadd.f32 %v4471, %v4791
        %v4856 = vadd.f32 %v4472, %v4792
        %v4857 = vadd.f32 %v4473, %v4793
        %v4858 = vadd.f32 %v4474, %v4794
        %v4859 = vadd.f32 %v4475, %v4795
        %4860 = vset.pattern.permute.xlu0 6
        %4861 = vperm.xlu0 %4860, %v2492
        %v4862 = vpop.permute.xlu0 %4861
        %4864 = vset.pattern.permute.xlu0 6
        %4865 = vperm.xlu0 %4864, %v2493
        %v4866 = vpop.permute.xlu0 %4865
        %4868 = vset.pattern.permute.xlu0 6
        %4869 = vperm.xlu0 %4868, %v2494
        %v4870 = vpop.permute.xlu0 %4869
        %4872 = vset.pattern.permute.xlu0 6
        %4873 = vperm.xlu0 %4872, %v2495
        %v4874 = vpop.permute.xlu0 %4873
        %4876 = vset.pattern.permute.xlu0 6
        %4877 = vperm.xlu0 %4876, %v2496
        %v4878 = vpop.permute.xlu0 %4877
        %4880 = vset.pattern.permute.xlu0 6
        %4881 = vperm.xlu0 %4880, %v2497
        %v4882 = vpop.permute.xlu0 %4881
        %4884 = vset.pattern.permute.xlu0 6
        %4885 = vperm.xlu0 %4884, %v2498
        %v4886 = vpop.permute.xlu0 %4885
        %4888 = vset.pattern.permute.xlu0 6
        %4889 = vperm.xlu0 %4888, %v2499
        %v4890 = vpop.permute.xlu0 %4889
        %4892 = vset.pattern.permute.xlu0 6
        %4893 = vperm.xlu0 %4892, %v2500
        %v4894 = vpop.permute.xlu0 %4893
        %4896 = vset.pattern.permute.xlu0 6
        %4897 = vperm.xlu0 %4896, %v2501
        %v4898 = vpop.permute.xlu0 %4897
        %4900 = vset.pattern.permute.xlu0 6
        %4901 = vperm.xlu0 %4900, %v2502
        %v4902 = vpop.permute.xlu0 %4901
        %4904 = vset.pattern.permute.xlu0 6
        %4905 = vperm.xlu0 %4904, %v2503
        %v4906 = vpop.permute.xlu0 %4905
        %4908 = vset.pattern.permute.xlu0 6
        %4909 = vperm.xlu0 %4908, %v2504
        %v4910 = vpop.permute.xlu0 %4909
        %4912 = vset.pattern.permute.xlu0 6
        %4913 = vperm.xlu0 %4912, %v2505
        %v4914 = vpop.permute.xlu0 %4913
        %4916 = vset.pattern.permute.xlu0 6
        %4917 = vperm.xlu0 %4916, %v2506
        %v4918 = vpop.permute.xlu0 %4917
        %4920 = vset.pattern.permute.xlu0 6
        %4921 = vperm.xlu0 %4920, %v2507
        %v4922 = vpop.permute.xlu0 %4921
        %4924 = vset.pattern.permute.xlu0 6
        %4925 = vperm.xlu0 %4924, %v2508
        %v4926 = vpop.permute.xlu0 %4925
        %4928 = vset.pattern.permute.xlu0 6
        %4929 = vperm.xlu0 %4928, %v2509
        %v4930 = vpop.permute.xlu0 %4929
        %4932 = vset.pattern.permute.xlu0 6
        %4933 = vperm.xlu0 %4932, %v2510
        %v4934 = vpop.permute.xlu0 %4933
        %4936 = vset.pattern.permute.xlu0 6
        %4937 = vperm.xlu0 %4936, %v2511
        %v4938 = vpop.permute.xlu0 %4937
        %4940 = vset.pattern.permute.xlu0 6
        %4941 = vperm.xlu0 %4940, %v2512
        %v4942 = vpop.permute.xlu0 %4941
        %4944 = vset.pattern.permute.xlu0 6
        %4945 = vperm.xlu0 %4944, %v2513
        %v4946 = vpop.permute.xlu0 %4945
        %4948 = vset.pattern.permute.xlu0 6
        %4949 = vperm.xlu0 %4948, %v2514
        %v4950 = vpop.permute.xlu0 %4949
        %4952 = vset.pattern.permute.xlu0 6
        %4953 = vperm.xlu0 %4952, %v2515
        %v4954 = vpop.permute.xlu0 %4953
        %4956 = vset.pattern.permute.xlu0 6
        %4957 = vperm.xlu0 %4956, %v2516
        %v4958 = vpop.permute.xlu0 %4957
        %4960 = vset.pattern.permute.xlu0 6
        %4961 = vperm.xlu0 %4960, %v2517
        %v4962 = vpop.permute.xlu0 %4961
        %4964 = vset.pattern.permute.xlu0 6
        %4965 = vperm.xlu0 %4964, %v2518
        %v4966 = vpop.permute.xlu0 %4965
        %4968 = vset.pattern.permute.xlu0 6
        %4969 = vperm.xlu0 %4968, %v2519
        %v4970 = vpop.permute.xlu0 %4969
        %4972 = vset.pattern.permute.xlu0 6
        %4973 = vperm.xlu0 %4972, %v2520
        %v4974 = vpop.permute.xlu0 %4973
        %4976 = vset.pattern.permute.xlu0 6
        %4977 = vperm.xlu0 %4976, %v2521
        %v4978 = vpop.permute.xlu0 %4977
        %4980 = vset.pattern.permute.xlu0 6
        %4981 = vperm.xlu0 %4980, %v2522
        %v4982 = vpop.permute.xlu0 %4981
        %4984 = vset.pattern.permute.xlu0 6
        %4985 = vperm.xlu0 %4984, %v2523
        %v4986 = vpop.permute.xlu0 %4985
        %4988 = vset.pattern.permute.xlu0 6
        %4989 = vperm.xlu0 %4988, %v2524
        %v4990 = vpop.permute.xlu0 %4989
        %4992 = vset.pattern.permute.xlu0 6
        %4993 = vperm.xlu0 %4992, %v2525
        %v4994 = vpop.permute.xlu0 %4993
        %4996 = vset.pattern.permute.xlu0 6
        %4997 = vperm.xlu0 %4996, %v2526
        %v4998 = vpop.permute.xlu0 %4997
        %5000 = vset.pattern.permute.xlu0 6
        %5001 = vperm.xlu0 %5000, %v2527
        %v5002 = vpop.permute.xlu0 %5001
        %5004 = vset.pattern.permute.xlu0 6
        %5005 = vperm.xlu0 %5004, %v2528
        %v5006 = vpop.permute.xlu0 %5005
        %5008 = vset.pattern.permute.xlu0 6
        %5009 = vperm.xlu0 %5008, %v2529
        %v5010 = vpop.permute.xlu0 %5009
        %5012 = vset.pattern.permute.xlu0 6
        %5013 = vperm.xlu0 %5012, %v2530
        %v5014 = vpop.permute.xlu0 %5013
        %5016 = vset.pattern.permute.xlu0 6
        %5017 = vperm.xlu0 %5016, %v2531
        %v5018 = vpop.permute.xlu0 %5017
        %5020 = vset.pattern.permute.xlu0 6
        %5021 = vperm.xlu0 %5020, %v2532
        %v5022 = vpop.permute.xlu0 %5021
        %5024 = vset.pattern.permute.xlu0 6
        %5025 = vperm.xlu0 %5024, %v2533
        %v5026 = vpop.permute.xlu0 %5025
        %5028 = vset.pattern.permute.xlu0 6
        %5029 = vperm.xlu0 %5028, %v2534
        %v5030 = vpop.permute.xlu0 %5029
        %5032 = vset.pattern.permute.xlu0 6
        %5033 = vperm.xlu0 %5032, %v2535
        %v5034 = vpop.permute.xlu0 %5033
        %5036 = vset.pattern.permute.xlu0 6
        %5037 = vperm.xlu0 %5036, %v2536
        %v5038 = vpop.permute.xlu0 %5037
        %5040 = vset.pattern.permute.xlu0 6
        %5041 = vperm.xlu0 %5040, %v2537
        %v5042 = vpop.permute.xlu0 %5041
        %5044 = vset.pattern.permute.xlu0 6
        %5045 = vperm.xlu0 %5044, %v2538
        %v5046 = vpop.permute.xlu0 %5045
        %5048 = vset.pattern.permute.xlu0 6
        %5049 = vperm.xlu0 %5048, %v2539
        %v5050 = vpop.permute.xlu0 %5049
        %5052 = vset.pattern.permute.xlu0 6
        %5053 = vperm.xlu0 %5052, %v2540
        %v5054 = vpop.permute.xlu0 %5053
        %5056 = vset.pattern.permute.xlu0 6
        %5057 = vperm.xlu0 %5056, %v2541
        %v5058 = vpop.permute.xlu0 %5057
        %5060 = vset.pattern.permute.xlu0 6
        %5061 = vperm.xlu0 %5060, %v2542
        %v5062 = vpop.permute.xlu0 %5061
        %5064 = vset.pattern.permute.xlu0 6
        %5065 = vperm.xlu0 %5064, %v2543
        %v5066 = vpop.permute.xlu0 %5065
        %5068 = vset.pattern.permute.xlu0 6
        %5069 = vperm.xlu0 %5068, %v2544
        %v5070 = vpop.permute.xlu0 %5069
        %5072 = vset.pattern.permute.xlu0 6
        %5073 = vperm.xlu0 %5072, %v2545
        %v5074 = vpop.permute.xlu0 %5073
        %5076 = vset.pattern.permute.xlu0 6
        %5077 = vperm.xlu0 %5076, %v2546
        %v5078 = vpop.permute.xlu0 %5077
        %5080 = vset.pattern.permute.xlu0 6
        %5081 = vperm.xlu0 %5080, %v2547
        %v5082 = vpop.permute.xlu0 %5081
        %5084 = vset.pattern.permute.xlu0 6
        %5085 = vperm.xlu0 %5084, %v2548
        %v5086 = vpop.permute.xlu0 %5085
        %5088 = vset.pattern.permute.xlu0 6
        %5089 = vperm.xlu0 %5088, %v2549
        %v5090 = vpop.permute.xlu0 %5089
        %5092 = vset.pattern.permute.xlu0 6
        %5093 = vperm.xlu0 %5092, %v2550
        %v5094 = vpop.permute.xlu0 %5093
        %5096 = vset.pattern.permute.xlu0 6
        %5097 = vperm.xlu0 %5096, %v2551
        %v5098 = vpop.permute.xlu0 %5097
        %5100 = vset.pattern.permute.xlu0 6
        %5101 = vperm.xlu0 %5100, %v2552
        %v5102 = vpop.permute.xlu0 %5101
        %5104 = vset.pattern.permute.xlu0 6
        %5105 = vperm.xlu0 %5104, %v2553
        %v5106 = vpop.permute.xlu0 %5105
        %5108 = vset.pattern.permute.xlu0 6
        %5109 = vperm.xlu0 %5108, %v2554
        %v5110 = vpop.permute.xlu0 %5109
        %5112 = vset.pattern.permute.xlu0 6
        %5113 = vperm.xlu0 %5112, %v2555
        %v5114 = vpop.permute.xlu0 %5113
        %v5116 = vmul.f32 %v4862, %v2174
        %v5117 = vmul.f32 %v4866, %v2178
        %v5118 = vmul.f32 %v4870, %v2184
        %v5119 = vmul.f32 %v4874, %v2188
        %v5120 = vmul.f32 %v4878, %v2194
        %v5121 = vmul.f32 %v4882, %v2198
        %v5122 = vmul.f32 %v4886, %v2204
        %v5123 = vmul.f32 %v4890, %v2208
        %v5124 = vmul.f32 %v4894, %v2214
        %v5125 = vmul.f32 %v4898, %v2218
        %v5126 = vmul.f32 %v4902, %v2224
        %v5127 = vmul.f32 %v4906, %v2228
        %v5128 = vmul.f32 %v4910, %v2234
        %v5129 = vmul.f32 %v4914, %v2238
        %v5130 = vmul.f32 %v4918, %v2244
        %v5131 = vmul.f32 %v4922, %v2248
        %v5132 = vmul.f32 %v4926, %v2254
        %v5133 = vmul.f32 %v4930, %v2258
        %v5134 = vmul.f32 %v4934, %v2264
        %v5135 = vmul.f32 %v4938, %v2268
        %v5136 = vmul.f32 %v4942, %v2274
        %v5137 = vmul.f32 %v4946, %v2278
        %v5138 = vmul.f32 %v4950, %v2284
        %v5139 = vmul.f32 %v4954, %v2288
        %v5140 = vmul.f32 %v4958, %v2294
        %v5141 = vmul.f32 %v4962, %v2298
        %v5142 = vmul.f32 %v4966, %v2304
        %v5143 = vmul.f32 %v4970, %v2308
        %v5144 = vmul.f32 %v4974, %v2314
        %v5145 = vmul.f32 %v4978, %v2318
        %v5146 = vmul.f32 %v4982, %v2324
        %v5147 = vmul.f32 %v4986, %v2328
        %v5148 = vmul.f32 %v4990, %v2334
        %v5149 = vmul.f32 %v4994, %v2338
        %v5150 = vmul.f32 %v4998, %v2344
        %v5151 = vmul.f32 %v5002, %v2348
        %v5152 = vmul.f32 %v5006, %v2354
        %v5153 = vmul.f32 %v5010, %v2358
        %v5154 = vmul.f32 %v5014, %v2364
        %v5155 = vmul.f32 %v5018, %v2368
        %v5156 = vmul.f32 %v5022, %v2374
        %v5157 = vmul.f32 %v5026, %v2378
        %v5158 = vmul.f32 %v5030, %v2384
        %v5159 = vmul.f32 %v5034, %v2388
        %v5160 = vmul.f32 %v5038, %v2394
        %v5161 = vmul.f32 %v5042, %v2398
        %v5162 = vmul.f32 %v5046, %v2404
        %v5163 = vmul.f32 %v5050, %v2408
        %v5164 = vmul.f32 %v5054, %v2414
        %v5165 = vmul.f32 %v5058, %v2418
        %v5166 = vmul.f32 %v5062, %v2424
        %v5167 = vmul.f32 %v5066, %v2428
        %v5168 = vmul.f32 %v5070, %v2434
        %v5169 = vmul.f32 %v5074, %v2438
        %v5170 = vmul.f32 %v5078, %v2444
        %v5171 = vmul.f32 %v5082, %v2448
        %v5172 = vmul.f32 %v5086, %v2454
        %v5173 = vmul.f32 %v5090, %v2458
        %v5174 = vmul.f32 %v5094, %v2464
        %v5175 = vmul.f32 %v5098, %v2468
        %v5176 = vmul.f32 %v5102, %v2474
        %v5177 = vmul.f32 %v5106, %v2478
        %v5178 = vmul.f32 %v5110, %v2484
        %v5179 = vmul.f32 %v5114, %v2488
        %v5180 = vadd.f32 %v4796, %v5116
        %v5181 = vadd.f32 %v4797, %v5117
        %v5182 = vadd.f32 %v4798, %v5118
        %v5183 = vadd.f32 %v4799, %v5119
        %v5184 = vadd.f32 %v4800, %v5120
        %v5185 = vadd.f32 %v4801, %v5121
        %v5186 = vadd.f32 %v4802, %v5122
        %v5187 = vadd.f32 %v4803, %v5123
        %v5188 = vadd.f32 %v4804, %v5124
        %v5189 = vadd.f32 %v4805, %v5125
        %v5190 = vadd.f32 %v4806, %v5126
        %v5191 = vadd.f32 %v4807, %v5127
        %v5192 = vadd.f32 %v4808, %v5128
        %v5193 = vadd.f32 %v4809, %v5129
        %v5194 = vadd.f32 %v4810, %v5130
        %v5195 = vadd.f32 %v4811, %v5131
        %v5196 = vadd.f32 %v4812, %v5132
        %v5197 = vadd.f32 %v4813, %v5133
        %v5198 = vadd.f32 %v4814, %v5134
        %v5199 = vadd.f32 %v4815, %v5135
        %v5200 = vadd.f32 %v4816, %v5136
        %v5201 = vadd.f32 %v4817, %v5137
        %v5202 = vadd.f32 %v4818, %v5138
        %v5203 = vadd.f32 %v4819, %v5139
        %v5204 = vadd.f32 %v4820, %v5140
        %v5205 = vadd.f32 %v4821, %v5141
        %v5206 = vadd.f32 %v4822, %v5142
        %v5207 = vadd.f32 %v4823, %v5143
        %v5208 = vadd.f32 %v4824, %v5144
        %v5209 = vadd.f32 %v4825, %v5145
        %v5210 = vadd.f32 %v4826, %v5146
        %v5211 = vadd.f32 %v4827, %v5147
        %v5212 = vadd.f32 %v4828, %v5148
        %v5213 = vadd.f32 %v4829, %v5149
        %v5214 = vadd.f32 %v4830, %v5150
        %v5215 = vadd.f32 %v4831, %v5151
        %v5216 = vadd.f32 %v4832, %v5152
        %v5217 = vadd.f32 %v4833, %v5153
        %v5218 = vadd.f32 %v4834, %v5154
        %v5219 = vadd.f32 %v4835, %v5155
        %v5220 = vadd.f32 %v4836, %v5156
        %v5221 = vadd.f32 %v4837, %v5157
        %v5222 = vadd.f32 %v4838, %v5158
        %v5223 = vadd.f32 %v4839, %v5159
        %v5224 = vadd.f32 %v4840, %v5160
        %v5225 = vadd.f32 %v4841, %v5161
        %v5226 = vadd.f32 %v4842, %v5162
        %v5227 = vadd.f32 %v4843, %v5163
        %v5228 = vadd.f32 %v4844, %v5164
        %v5229 = vadd.f32 %v4845, %v5165
        %v5230 = vadd.f32 %v4846, %v5166
        %v5231 = vadd.f32 %v4847, %v5167
        %v5232 = vadd.f32 %v4848, %v5168
        %v5233 = vadd.f32 %v4849, %v5169
        %v5234 = vadd.f32 %v4850, %v5170
        %v5235 = vadd.f32 %v4851, %v5171
        %v5236 = vadd.f32 %v4852, %v5172
        %v5237 = vadd.f32 %v4853, %v5173
        %v5238 = vadd.f32 %v4854, %v5174
        %v5239 = vadd.f32 %v4855, %v5175
        %v5240 = vadd.f32 %v4856, %v5176
        %v5241 = vadd.f32 %v4857, %v5177
        %v5242 = vadd.f32 %v4858, %v5178
        %v5243 = vadd.f32 %v4859, %v5179
        %5244 = vset.pattern.permute.xlu0 7
        %5245 = vperm.xlu0 %5244, %v2492
        %v5246 = vpop.permute.xlu0 %5245
        %5248 = vset.pattern.permute.xlu0 7
        %5249 = vperm.xlu0 %5248, %v2493
        %v5250 = vpop.permute.xlu0 %5249
        %5252 = vset.pattern.permute.xlu0 7
        %5253 = vperm.xlu0 %5252, %v2494
        %v5254 = vpop.permute.xlu0 %5253
        %5256 = vset.pattern.permute.xlu0 7
        %5257 = vperm.xlu0 %5256, %v2495
        %v5258 = vpop.permute.xlu0 %5257
        %5260 = vset.pattern.permute.xlu0 7
        %5261 = vperm.xlu0 %5260, %v2496
        %v5262 = vpop.permute.xlu0 %5261
        %5264 = vset.pattern.permute.xlu0 7
        %5265 = vperm.xlu0 %5264, %v2497
        %v5266 = vpop.permute.xlu0 %5265
        %5268 = vset.pattern.permute.xlu0 7
        %5269 = vperm.xlu0 %5268, %v2498
        %v5270 = vpop.permute.xlu0 %5269
        %5272 = vset.pattern.permute.xlu0 7
        %5273 = vperm.xlu0 %5272, %v2499
        %v5274 = vpop.permute.xlu0 %5273
        %5276 = vset.pattern.permute.xlu0 7
        %5277 = vperm.xlu0 %5276, %v2500
        %v5278 = vpop.permute.xlu0 %5277
        %5280 = vset.pattern.permute.xlu0 7
        %5281 = vperm.xlu0 %5280, %v2501
        %v5282 = vpop.permute.xlu0 %5281
        %5284 = vset.pattern.permute.xlu0 7
        %5285 = vperm.xlu0 %5284, %v2502
        %v5286 = vpop.permute.xlu0 %5285
        %5288 = vset.pattern.permute.xlu0 7
        %5289 = vperm.xlu0 %5288, %v2503
        %v5290 = vpop.permute.xlu0 %5289
        %5292 = vset.pattern.permute.xlu0 7
        %5293 = vperm.xlu0 %5292, %v2504
        %v5294 = vpop.permute.xlu0 %5293
        %5296 = vset.pattern.permute.xlu0 7
        %5297 = vperm.xlu0 %5296, %v2505
        %v5298 = vpop.permute.xlu0 %5297
        %5300 = vset.pattern.permute.xlu0 7
        %5301 = vperm.xlu0 %5300, %v2506
        %v5302 = vpop.permute.xlu0 %5301
        %5304 = vset.pattern.permute.xlu0 7
        %5305 = vperm.xlu0 %5304, %v2507
        %v5306 = vpop.permute.xlu0 %5305
        %5308 = vset.pattern.permute.xlu0 7
        %5309 = vperm.xlu0 %5308, %v2508
        %v5310 = vpop.permute.xlu0 %5309
        %5312 = vset.pattern.permute.xlu0 7
        %5313 = vperm.xlu0 %5312, %v2509
        %v5314 = vpop.permute.xlu0 %5313
        %5316 = vset.pattern.permute.xlu0 7
        %5317 = vperm.xlu0 %5316, %v2510
        %v5318 = vpop.permute.xlu0 %5317
        %5320 = vset.pattern.permute.xlu0 7
        %5321 = vperm.xlu0 %5320, %v2511
        %v5322 = vpop.permute.xlu0 %5321
        %5324 = vset.pattern.permute.xlu0 7
        %5325 = vperm.xlu0 %5324, %v2512
        %v5326 = vpop.permute.xlu0 %5325
        %5328 = vset.pattern.permute.xlu0 7
        %5329 = vperm.xlu0 %5328, %v2513
        %v5330 = vpop.permute.xlu0 %5329
        %5332 = vset.pattern.permute.xlu0 7
        %5333 = vperm.xlu0 %5332, %v2514
        %v5334 = vpop.permute.xlu0 %5333
        %5336 = vset.pattern.permute.xlu0 7
        %5337 = vperm.xlu0 %5336, %v2515
        %v5338 = vpop.permute.xlu0 %5337
        %5340 = vset.pattern.permute.xlu0 7
        %5341 = vperm.xlu0 %5340, %v2516
        %v5342 = vpop.permute.xlu0 %5341
        %5344 = vset.pattern.permute.xlu0 7
        %5345 = vperm.xlu0 %5344, %v2517
        %v5346 = vpop.permute.xlu0 %5345
        %5348 = vset.pattern.permute.xlu0 7
        %5349 = vperm.xlu0 %5348, %v2518
        %v5350 = vpop.permute.xlu0 %5349
        %5352 = vset.pattern.permute.xlu0 7
        %5353 = vperm.xlu0 %5352, %v2519
        %v5354 = vpop.permute.xlu0 %5353
        %5356 = vset.pattern.permute.xlu0 7
        %5357 = vperm.xlu0 %5356, %v2520
        %v5358 = vpop.permute.xlu0 %5357
        %5360 = vset.pattern.permute.xlu0 7
        %5361 = vperm.xlu0 %5360, %v2521
        %v5362 = vpop.permute.xlu0 %5361
        %5364 = vset.pattern.permute.xlu0 7
        %5365 = vperm.xlu0 %5364, %v2522
        %v5366 = vpop.permute.xlu0 %5365
        %5368 = vset.pattern.permute.xlu0 7
        %5369 = vperm.xlu0 %5368, %v2523
        %v5370 = vpop.permute.xlu0 %5369
        %5372 = vset.pattern.permute.xlu0 7
        %5373 = vperm.xlu0 %5372, %v2524
        %v5374 = vpop.permute.xlu0 %5373
        %5376 = vset.pattern.permute.xlu0 7
        %5377 = vperm.xlu0 %5376, %v2525
        %v5378 = vpop.permute.xlu0 %5377
        %5380 = vset.pattern.permute.xlu0 7
        %5381 = vperm.xlu0 %5380, %v2526
        %v5382 = vpop.permute.xlu0 %5381
        %5384 = vset.pattern.permute.xlu0 7
        %5385 = vperm.xlu0 %5384, %v2527
        %v5386 = vpop.permute.xlu0 %5385
        %5388 = vset.pattern.permute.xlu0 7
        %5389 = vperm.xlu0 %5388, %v2528
        %v5390 = vpop.permute.xlu0 %5389
        %5392 = vset.pattern.permute.xlu0 7
        %5393 = vperm.xlu0 %5392, %v2529
        %v5394 = vpop.permute.xlu0 %5393
        %5396 = vset.pattern.permute.xlu0 7
        %5397 = vperm.xlu0 %5396, %v2530
        %v5398 = vpop.permute.xlu0 %5397
        %5400 = vset.pattern.permute.xlu0 7
        %5401 = vperm.xlu0 %5400, %v2531
        %v5402 = vpop.permute.xlu0 %5401
        %5404 = vset.pattern.permute.xlu0 7
        %5405 = vperm.xlu0 %5404, %v2532
        %v5406 = vpop.permute.xlu0 %5405
        %5408 = vset.pattern.permute.xlu0 7
        %5409 = vperm.xlu0 %5408, %v2533
        %v5410 = vpop.permute.xlu0 %5409
        %5412 = vset.pattern.permute.xlu0 7
        %5413 = vperm.xlu0 %5412, %v2534
        %v5414 = vpop.permute.xlu0 %5413
        %5416 = vset.pattern.permute.xlu0 7
        %5417 = vperm.xlu0 %5416, %v2535
        %v5418 = vpop.permute.xlu0 %5417
        %5420 = vset.pattern.permute.xlu0 7
        %5421 = vperm.xlu0 %5420, %v2536
        %v5422 = vpop.permute.xlu0 %5421
        %5424 = vset.pattern.permute.xlu0 7
        %5425 = vperm.xlu0 %5424, %v2537
        %v5426 = vpop.permute.xlu0 %5425
        %5428 = vset.pattern.permute.xlu0 7
        %5429 = vperm.xlu0 %5428, %v2538
        %v5430 = vpop.permute.xlu0 %5429
        %5432 = vset.pattern.permute.xlu0 7
        %5433 = vperm.xlu0 %5432, %v2539
        %v5434 = vpop.permute.xlu0 %5433
        %5436 = vset.pattern.permute.xlu0 7
        %5437 = vperm.xlu0 %5436, %v2540
        %v5438 = vpop.permute.xlu0 %5437
        %5440 = vset.pattern.permute.xlu0 7
        %5441 = vperm.xlu0 %5440, %v2541
        %v5442 = vpop.permute.xlu0 %5441
        %5444 = vset.pattern.permute.xlu0 7
        %5445 = vperm.xlu0 %5444, %v2542
        %v5446 = vpop.permute.xlu0 %5445
        %5448 = vset.pattern.permute.xlu0 7
        %5449 = vperm.xlu0 %5448, %v2543
        %v5450 = vpop.permute.xlu0 %5449
        %5452 = vset.pattern.permute.xlu0 7
        %5453 = vperm.xlu0 %5452, %v2544
        %v5454 = vpop.permute.xlu0 %5453
        %5456 = vset.pattern.permute.xlu0 7
        %5457 = vperm.xlu0 %5456, %v2545
        %v5458 = vpop.permute.xlu0 %5457
        %5460 = vset.pattern.permute.xlu0 7
        %5461 = vperm.xlu0 %5460, %v2546
        %v5462 = vpop.permute.xlu0 %5461
        %5464 = vset.pattern.permute.xlu0 7
        %5465 = vperm.xlu0 %5464, %v2547
        %v5466 = vpop.permute.xlu0 %5465
        %5468 = vset.pattern.permute.xlu0 7
        %5469 = vperm.xlu0 %5468, %v2548
        %v5470 = vpop.permute.xlu0 %5469
        %5472 = vset.pattern.permute.xlu0 7
        %5473 = vperm.xlu0 %5472, %v2549
        %v5474 = vpop.permute.xlu0 %5473
        %5476 = vset.pattern.permute.xlu0 7
        %5477 = vperm.xlu0 %5476, %v2550
        %v5478 = vpop.permute.xlu0 %5477
        %5480 = vset.pattern.permute.xlu0 7
        %5481 = vperm.xlu0 %5480, %v2551
        %v5482 = vpop.permute.xlu0 %5481
        %5484 = vset.pattern.permute.xlu0 7
        %5485 = vperm.xlu0 %5484, %v2552
        %v5486 = vpop.permute.xlu0 %5485
        %5488 = vset.pattern.permute.xlu0 7
        %5489 = vperm.xlu0 %5488, %v2553
        %v5490 = vpop.permute.xlu0 %5489
        %5492 = vset.pattern.permute.xlu0 7
        %5493 = vperm.xlu0 %5492, %v2554
        %v5494 = vpop.permute.xlu0 %5493
        %5496 = vset.pattern.permute.xlu0 7
        %5497 = vperm.xlu0 %5496, %v2555
        %v5498 = vpop.permute.xlu0 %5497
        %v5500 = vmul.f32 %v5246, %v2176
        %v5501 = vmul.f32 %v5250, %v2180
        %v5502 = vmul.f32 %v5254, %v2186
        %v5503 = vmul.f32 %v5258, %v2190
        %v5504 = vmul.f32 %v5262, %v2196
        %v5505 = vmul.f32 %v5266, %v2200
        %v5506 = vmul.f32 %v5270, %v2206
        %v5507 = vmul.f32 %v5274, %v2210
        %v5508 = vmul.f32 %v5278, %v2216
        %v5509 = vmul.f32 %v5282, %v2220
        %v5510 = vmul.f32 %v5286, %v2226
        %v5511 = vmul.f32 %v5290, %v2230
        %v5512 = vmul.f32 %v5294, %v2236
        %v5513 = vmul.f32 %v5298, %v2240
        %v5514 = vmul.f32 %v5302, %v2246
        %v5515 = vmul.f32 %v5306, %v2250
        %v5516 = vmul.f32 %v5310, %v2256
        %v5517 = vmul.f32 %v5314, %v2260
        %v5518 = vmul.f32 %v5318, %v2266
        %v5519 = vmul.f32 %v5322, %v2270
        %v5520 = vmul.f32 %v5326, %v2276
        %v5521 = vmul.f32 %v5330, %v2280
        %v5522 = vmul.f32 %v5334, %v2286
        %v5523 = vmul.f32 %v5338, %v2290
        %v5524 = vmul.f32 %v5342, %v2296
        %v5525 = vmul.f32 %v5346, %v2300
        %v5526 = vmul.f32 %v5350, %v2306
        %v5527 = vmul.f32 %v5354, %v2310
        %v5528 = vmul.f32 %v5358, %v2316
        %v5529 = vmul.f32 %v5362, %v2320
        %v5530 = vmul.f32 %v5366, %v2326
        %v5531 = vmul.f32 %v5370, %v2330
        %v5532 = vmul.f32 %v5374, %v2336
        %v5533 = vmul.f32 %v5378, %v2340
        %v5534 = vmul.f32 %v5382, %v2346
        %v5535 = vmul.f32 %v5386, %v2350
        %v5536 = vmul.f32 %v5390, %v2356
        %v5537 = vmul.f32 %v5394, %v2360
        %v5538 = vmul.f32 %v5398, %v2366
        %v5539 = vmul.f32 %v5402, %v2370
        %v5540 = vmul.f32 %v5406, %v2376
        %v5541 = vmul.f32 %v5410, %v2380
        %v5542 = vmul.f32 %v5414, %v2386
        %v5543 = vmul.f32 %v5418, %v2390
        %v5544 = vmul.f32 %v5422, %v2396
        %v5545 = vmul.f32 %v5426, %v2400
        %v5546 = vmul.f32 %v5430, %v2406
        %v5547 = vmul.f32 %v5434, %v2410
        %v5548 = vmul.f32 %v5438, %v2416
        %v5549 = vmul.f32 %v5442, %v2420
        %v5550 = vmul.f32 %v5446, %v2426
        %v5551 = vmul.f32 %v5450, %v2430
        %v5552 = vmul.f32 %v5454, %v2436
        %v5553 = vmul.f32 %v5458, %v2440
        %v5554 = vmul.f32 %v5462, %v2446
        %v5555 = vmul.f32 %v5466, %v2450
        %v5556 = vmul.f32 %v5470, %v2456
        %v5557 = vmul.f32 %v5474, %v2460
        %v5558 = vmul.f32 %v5478, %v2466
        %v5559 = vmul.f32 %v5482, %v2470
        %v5560 = vmul.f32 %v5486, %v2476
        %v5561 = vmul.f32 %v5490, %v2480
        %v5562 = vmul.f32 %v5494, %v2486
        %v5563 = vmul.f32 %v5498, %v2490
        %v5564 = vadd.f32 %v5180, %v5500
        %v5565 = vadd.f32 %v5181, %v5501
        %v5566 = vadd.f32 %v5182, %v5502
        %v5567 = vadd.f32 %v5183, %v5503
        %v5568 = vadd.f32 %v5184, %v5504
        %v5569 = vadd.f32 %v5185, %v5505
        %v5570 = vadd.f32 %v5186, %v5506
        %v5571 = vadd.f32 %v5187, %v5507
        %v5572 = vadd.f32 %v5188, %v5508
        %v5573 = vadd.f32 %v5189, %v5509
        %v5574 = vadd.f32 %v5190, %v5510
        %v5575 = vadd.f32 %v5191, %v5511
        %v5576 = vadd.f32 %v5192, %v5512
        %v5577 = vadd.f32 %v5193, %v5513
        %v5578 = vadd.f32 %v5194, %v5514
        %v5579 = vadd.f32 %v5195, %v5515
        %v5580 = vadd.f32 %v5196, %v5516
        %v5581 = vadd.f32 %v5197, %v5517
        %v5582 = vadd.f32 %v5198, %v5518
        %v5583 = vadd.f32 %v5199, %v5519
        %v5584 = vadd.f32 %v5200, %v5520
        %v5585 = vadd.f32 %v5201, %v5521
        %v5586 = vadd.f32 %v5202, %v5522
        %v5587 = vadd.f32 %v5203, %v5523
        %v5588 = vadd.f32 %v5204, %v5524
        %v5589 = vadd.f32 %v5205, %v5525
        %v5590 = vadd.f32 %v5206, %v5526
        %v5591 = vadd.f32 %v5207, %v5527
        %v5592 = vadd.f32 %v5208, %v5528
        %v5593 = vadd.f32 %v5209, %v5529
        %v5594 = vadd.f32 %v5210, %v5530
        %v5595 = vadd.f32 %v5211, %v5531
        %v5596 = vadd.f32 %v5212, %v5532
        %v5597 = vadd.f32 %v5213, %v5533
        %v5598 = vadd.f32 %v5214, %v5534
        %v5599 = vadd.f32 %v5215, %v5535
        %v5600 = vadd.f32 %v5216, %v5536
        %v5601 = vadd.f32 %v5217, %v5537
        %v5602 = vadd.f32 %v5218, %v5538
        %v5603 = vadd.f32 %v5219, %v5539
        %v5604 = vadd.f32 %v5220, %v5540
        %v5605 = vadd.f32 %v5221, %v5541
        %v5606 = vadd.f32 %v5222, %v5542
        %v5607 = vadd.f32 %v5223, %v5543
        %v5608 = vadd.f32 %v5224, %v5544
        %v5609 = vadd.f32 %v5225, %v5545
        %v5610 = vadd.f32 %v5226, %v5546
        %v5611 = vadd.f32 %v5227, %v5547
        %v5612 = vadd.f32 %v5228, %v5548
        %v5613 = vadd.f32 %v5229, %v5549
        %v5614 = vadd.f32 %v5230, %v5550
        %v5615 = vadd.f32 %v5231, %v5551
        %v5616 = vadd.f32 %v5232, %v5552
        %v5617 = vadd.f32 %v5233, %v5553
        %v5618 = vadd.f32 %v5234, %v5554
        %v5619 = vadd.f32 %v5235, %v5555
        %v5620 = vadd.f32 %v5236, %v5556
        %v5621 = vadd.f32 %v5237, %v5557
        %v5622 = vadd.f32 %v5238, %v5558
        %v5623 = vadd.f32 %v5239, %v5559
        %v5624 = vadd.f32 %v5240, %v5560
        %v5625 = vadd.f32 %v5241, %v5561
        %v5626 = vadd.f32 %v5242, %v5562
        %v5627 = vadd.f32 %v5243, %v5563
        %5628 = vst [vmem:[%s182] sm:$0xff] %v5564
        %5629 = vst [vmem:[%s182 + $0x8] sm:$0xff] %v5565
        %5630 = vst [vmem:[%s182 + $0x10] sm:$0xff] %v5566
        %5631 = vst [vmem:[%s182 + $0x18] sm:$0xff] %v5567
        %5632 = vst [vmem:[%s182 + $0x20] sm:$0xff] %v5568
        %5633 = vst [vmem:[%s182 + $0x28] sm:$0xff] %v5569
        %5634 = vst [vmem:[%s182 + $0x30] sm:$0xff] %v5570
        %5635 = vst [vmem:[%s182 + $0x38] sm:$0xff] %v5571
        %5636 = vst [vmem:[%s182 + $0x40] sm:$0xff] %v5572
        %5637 = vst [vmem:[%s182 + $0x48] sm:$0xff] %v5573
        %5638 = vst [vmem:[%s182 + $0x50] sm:$0xff] %v5574
        %5639 = vst [vmem:[%s182 + $0x58] sm:$0xff] %v5575
        %5640 = vst [vmem:[%s182 + $0x60] sm:$0xff] %v5576
        %5641 = vst [vmem:[%s182 + $0x68] sm:$0xff] %v5577
        %5642 = vst [vmem:[%s182 + $0x70] sm:$0xff] %v5578
        %5643 = vst [vmem:[%s182 + $0x78] sm:$0xff] %v5579
        %5644 = vst [vmem:[%s182 + $0x80] sm:$0xff] %v5580
        %5645 = vst [vmem:[%s182 + $0x88] sm:$0xff] %v5581
        %5646 = vst [vmem:[%s182 + $0x90] sm:$0xff] %v5582
        %5647 = vst [vmem:[%s182 + $0x98] sm:$0xff] %v5583
        %5648 = vst [vmem:[%s182 + $0xa0] sm:$0xff] %v5584
        %5649 = vst [vmem:[%s182 + $0xa8] sm:$0xff] %v5585
        %5650 = vst [vmem:[%s182 + $0xb0] sm:$0xff] %v5586
        %5651 = vst [vmem:[%s182 + $0xb8] sm:$0xff] %v5587
        %5652 = vst [vmem:[%s182 + $0xc0] sm:$0xff] %v5588
        %5653 = vst [vmem:[%s182 + $0xc8] sm:$0xff] %v5589
        %5654 = vst [vmem:[%s182 + $0xd0] sm:$0xff] %v5590
        %5655 = vst [vmem:[%s182 + $0xd8] sm:$0xff] %v5591
        %5656 = vst [vmem:[%s182 + $0xe0] sm:$0xff] %v5592
        %5657 = vst [vmem:[%s182 + $0xe8] sm:$0xff] %v5593
        %5658 = vst [vmem:[%s182 + $0xf0] sm:$0xff] %v5594
        %5659 = vst [vmem:[%s182 + $0xf8] sm:$0xff] %v5595
        %5660 = vst [vmem:[%s182 + $0x100] sm:$0xff] %v5596
        %5661 = vst [vmem:[%s182 + $0x108] sm:$0xff] %v5597
        %5662 = vst [vmem:[%s182 + $0x110] sm:$0xff] %v5598
        %5663 = vst [vmem:[%s182 + $0x118] sm:$0xff] %v5599
        %5664 = vst [vmem:[%s182 + $0x120] sm:$0xff] %v5600
        %5665 = vst [vmem:[%s182 + $0x128] sm:$0xff] %v5601
        %5666 = vst [vmem:[%s182 + $0x130] sm:$0xff] %v5602
        %5667 = vst [vmem:[%s182 + $0x138] sm:$0xff] %v5603
        %5668 = vst [vmem:[%s182 + $0x140] sm:$0xff] %v5604
        %5669 = vst [vmem:[%s182 + $0x148] sm:$0xff] %v5605
        %5670 = vst [vmem:[%s182 + $0x150] sm:$0xff] %v5606
        %5671 = vst [vmem:[%s182 + $0x158] sm:$0xff] %v5607
        %5672 = vst [vmem:[%s182 + $0x160] sm:$0xff] %v5608
        %5673 = vst [vmem:[%s182 + $0x168] sm:$0xff] %v5609
        %5674 = vst [vmem:[%s182 + $0x170] sm:$0xff] %v5610
        %5675 = vst [vmem:[%s182 + $0x178] sm:$0xff] %v5611
        %5676 = vst [vmem:[%s182 + $0x180] sm:$0xff] %v5612
        %5677 = vst [vmem:[%s182 + $0x188] sm:$0xff] %v5613
        %5678 = vst [vmem:[%s182 + $0x190] sm:$0xff] %v5614
        %5679 = vst [vmem:[%s182 + $0x198] sm:$0xff] %v5615
        %5680 = vst [vmem:[%s182 + $0x1a0] sm:$0xff] %v5616
        %5681 = vst [vmem:[%s182 + $0x1a8] sm:$0xff] %v5617
        %5682 = vst [vmem:[%s182 + $0x1b0] sm:$0xff] %v5618
        %5683 = vst [vmem:[%s182 + $0x1b8] sm:$0xff] %v5619
        %5684 = vst [vmem:[%s182 + $0x1c0] sm:$0xff] %v5620
        %5685 = vst [vmem:[%s182 + $0x1c8] sm:$0xff] %v5621
        %5686 = vst [vmem:[%s182 + $0x1d0] sm:$0xff] %v5622
        %5687 = vst [vmem:[%s182 + $0x1d8] sm:$0xff] %v5623
        %5688 = vst [vmem:[%s182 + $0x1e0] sm:$0xff] %v5624
        %5689 = vst [vmem:[%s182 + $0x1e8] sm:$0xff] %v5625
        %5690 = vst [vmem:[%s182 + $0x1f0] sm:$0xff] %v5626
        %5691 = vst [vmem:[%s182 + $0x1f8] sm:$0xff] %v5627
        %s5692 = sand.u32 %s98, 1
        %s5693 = scalar_lea.sflag [#allocation3], %s5692
        %s5694 = sand.u32 %s98, 1
        %s5695 = smul.addr %s5694, 512
        %s5696 = scalar_lea.vmem [#allocation2], %s5695
        // Predicated region
        $region33: #{tpu_custom_call.1} parent=31 // pred_check
          %p5697 = pneg %p108
        $region34: #{tpu_custom_call.1} parent=31 // pred_check_branch
          %5699 = sbr.rel (%p5697) target = $region36
        $region35: #{tpu_custom_call.1} parent=31 // pred_region
          %s5700 = smul.u32 64, %s17
          %s5702 = ssub.s32 8192, 8192
          %5703 = vsyncadd %s5693, %s5702
          %s5704 = smul.addr %s5700, 128
          %s5705 = scalar_lea.hbm %s3, %s5704
          %s5706 = sshll.u32 %s5696, 4
          %s5707 = int_to_ptr.vmem [resolvable:$true] %s5706
          %5712 = dma.vmem_to_hbm [thread:$0]  %s5707, 8192, %s5705, %s5693, 128, 128, 8
        $region36: #{tpu_custom_call.1} parent=31 // pred_fallthru
          _
      $region32: #{tpu_custom_call.1} parent=5 // pred_fallthru
        _
      %p5713 = scmp.le.s32.totalorder 2, %s12
      // Predicated region
      $region37: #{tpu_custom_call.1} parent=5 // pred_check
        %p5714 = pneg %p5713
      $region38: #{tpu_custom_call.1} parent=5 // pred_check_branch
        %5716 = sbr.rel (%p5714) target = $region40
      $region39: #{tpu_custom_call.1} parent=5 // pred_region
        %s5717 = ssub.s32 %s12, 2
        // Predicated region
        $region41: #{tpu_custom_call.1} parent=39 // pred_check
          %p5718 = pneg %p114
        $region42: #{tpu_custom_call.1} parent=39 // pred_check_branch
          %5720 = sbr.rel (%p5718) target = $region44
        $region43: #{tpu_custom_call.1} parent=39 // pred_region
          %s5721 = sand.u32 %s99, 1
          %s5722 = scalar_lea.sflag [#allocation3], %s5721
          %s5723 = sand.u32 %s99, 1
          %s5724 = smul.addr %s5723, 512
          %s5725 = scalar_lea.vmem [#allocation2], %s5724
          %5726 = dma.done %s5722, 8192
        $region44: #{tpu_custom_call.1} parent=39 // pred_fallthru
          _
      $region40: #{tpu_custom_call.1} parent=5 // pred_fallthru
        _
    $region6: #{tpu_custom_call.1} parent=1 // loop_footer
      %s16 = sadd.s32 1, %s12
    $region7: #{tpu_custom_call.1} parent=1 // loop_footer_branch
      %11 = sbr.rel target = $region3
    $region8: #{tpu_custom_call.1} parent=1 // loop_exit
      _
    %5727 = vsyncpa [#allocation3], 1
    %s5728 = scalar_lea.sflag [#allocation3], 1
    %5729 = vsyncpa %s5728, 1

</llo_original>
